<compile_context>
chip_gen: v5e
topology: v5e:2x2
jax: 0.10.0
libtpu: 0.0.40
codegen_flags: <defaults>
</compile_context>

<pallas_src>
import functools

import jax
import jax.numpy as jnp
from jax.experimental import pallas as pl
from jax.experimental.pallas import tpu as pltpu

_VMEM_LIMIT = 48 * 1024 * 1024   # <= v7x physical 64 MiB; re-derive per chip at prod sizes


def _round_up(n, m):
    return ((n + m - 1) // m) * m


def _batch_tile(B, cap=64):
    """Largest multiple-of-8 batch tile <= cap dividing B, capped at B//2 when B >= 16
    so every kernel has >= 2 grid steps (pipeline overlap + v7x two-TensorCore split).
    The wrapper pads B to a multiple of 8 before any kernel is called."""
    assert B % 8 == 0
    target = min(cap, B // 2) if B >= 16 else B
    bt = max(8, (target // 8) * 8)
    while B % bt != 0:
        bt -= 8
    return bt


def _col_tile(n, pref=512):
    """Column tile for the classifier output matmul: multiple of 128 dividing n,
    preferring ~512-wide tiles and >= 2 tiles when n allows it."""
    if n % 128 != 0:
        return n   # TODO(synk): pad mid/out features (e.g. 3000 -> 3072) for lane-dense stores.
    ot = min(pref, n // 2) if n >= 256 else n
    ot = max(128, (ot // 128) * 128)
    while n % ot != 0:
        ot -= 128
    return ot


# ---------------------------------------------------------------------------
# Kernel 1: one LSTM layer, batch-tiled.  Hoisted time-independent x @ W_ih as a
# single MXU matmul (stored bf16 in scratch); only h_{t-1} @ W_hh runs inside the
# fori_loop.  Gate columns are (i, f, o, g): one sigmoid over 3H lanes, one tanh
# over H.  (Permute from PyTorch's (i, f, g, o) and merge bias = b_ih + b_hh when
# porting real weights.)
# ---------------------------------------------------------------------------
def lstm_layer_kernel(x_ref, wih_ref, whh_ref, b_ref, out_ref, gx_sc):
    T, BT, Ein = x_ref.shape
    H = whh_ref.shape[0]
    bf16 = jnp.bfloat16

    # Hoisted input projection: one (T*BT, Ein) @ (Ein, 4H) MXU matmul, stored bf16.
    gx = jnp.dot(x_ref[...].reshape(T * BT, Ein).astype(bf16), wih_ref[...],
                 preferred_element_type=jnp.float32)
    gx_sc[...] = gx.reshape(T, BT, 4 * H).astype(bf16)
    bias = b_ref[...]                                   # (1, 4H) f32, hoisted load

    def step(t, carry):
        h_prev, c_prev = carry
        g = (gx_sc[t].astype(jnp.float32) + bias
             + jnp.dot(h_prev.astype(bf16), whh_ref[...],
                       preferred_element_type=jnp.float32))          # (BT, 4H)
        sig = jax.nn.sigmoid(g[:, :3 * H])              # gates (i, f, o) in one pass
        i = sig[:, 0:H]
        f = sig[:, H:2 * H]
        o = sig[:, 2 * H:3 * H]
        gg = jnp.tanh(g[:, 3 * H:])                     # gate g
        c_new = f * c_prev + i * gg
        h_new = o * jnp.tanh(c_new)
        out_ref[t] = h_new.astype(out_ref.dtype)
        return (h_new, c_new)

    zeros = jnp.zeros((BT, H), jnp.float32)
    jax.lax.fori_loop(0, T, step, (zeros, zeros), unroll=True)


def lstm_layer(x_tbe, wih, whh, bias):
    """One LSTM layer, time-major in (T, B, Ein) -> (T, B, H) bf16."""
    T, B, Ein = x_tbe.shape
    H = whh.shape[0]
    BT = _batch_tile(B, cap=64)
    return pl.pallas_call(
        lstm_layer_kernel,
        out_shape=jax.ShapeDtypeStruct((T, B, H), jnp.bfloat16),
        grid=(B // BT,),
        in_specs=[
            pl.BlockSpec((T, BT, Ein), lambda b: (0, b, 0)),
            pl.BlockSpec((Ein, 4 * H), lambda b: (0, 0)),
            pl.BlockSpec((H, 4 * H), lambda b: (0, 0)),
            pl.BlockSpec((1, 4 * H), lambda b: (0, 0)),
        ],
        out_specs=pl.BlockSpec((T, BT, H), lambda b: (0, b, 0)),
        scratch_shapes=[pltpu.VMEM((T, BT, 4 * H), jnp.bfloat16)],
        compiler_params=pltpu.CompilerParams(
            dimension_semantics=("parallel",),
            vmem_limit_bytes=_VMEM_LIMIT),
    )(x_tbe, wih, whh, bias)


# ---------------------------------------------------------------------------
# Kernel 2: Qmodel self-attention pooling over time (time-major, bf16 input)
#           + dense1, fused.  Width-1 score Linear = VPU multiply + lane reduce
#           (its scalar bias cancels under softmax).
# ---------------------------------------------------------------------------
def qpool_dense_kernel(h_ref, w1_ref, b1_ref, w2_ref, wd_ref, bd_ref, yq_ref):
    T, BT, H = h_ref.shape
    QH = w1_ref.shape[1]
    h = h_ref[...]                                                  # (T, BT, H) bf16
    pre = (jnp.dot(h.reshape(T * BT, H), w1_ref[...],
                   preferred_element_type=jnp.float32) + b1_ref[...])
    act = jnp.maximum(pre, 0.0).reshape(T, BT, QH)
    s = jnp.sum(act * w2_ref[...][None], axis=-1)                   # (T, BT)
    s = s - jnp.max(s, axis=0, keepdims=True)
    p = jnp.exp(s)
    alpha = p / jnp.sum(p, axis=0, keepdims=True)
    pooled = jnp.sum(alpha[:, :, None] * h.astype(jnp.float32), axis=0)   # (BT, H)
    yq_ref[...] = (jnp.dot(pooled.astype(jnp.bfloat16), wd_ref[...],
                           preferred_element_type=jnp.float32) + bd_ref[...])


def qpool_dense(lstm_out, w1, b1, w2, wd, bd):
    T, B, H = lstm_out.shape
    QH = w1.shape[1]
    FEAT = wd.shape[1]
    BT = _batch_tile(B, cap=64)
    return pl.pallas_call(
        qpool_dense_kernel,
        out_shape=jax.ShapeDtypeStruct((B, FEAT), jnp.float32),
        grid=(B // BT,),
        in_specs=[
            pl.BlockSpec((T, BT, H), lambda b: (0, b, 0)),
            pl.BlockSpec((H, QH), lambda b: (0, 0)),
            pl.BlockSpec((1, QH), lambda b: (0, 0)),
            pl.BlockSpec((1, QH), lambda b: (0, 0)),
            pl.BlockSpec((H, FEAT), lambda b: (0, 0)),
            pl.BlockSpec((1, FEAT), lambda b: (0, 0)),
        ],
        out_specs=pl.BlockSpec((BT, FEAT), lambda b: (b, 0)),
        compiler_params=pltpu.CompilerParams(
            dimension_semantics=("parallel",),
            vmem_limit_bytes=_VMEM_LIMIT),
    )(lstm_out, w1, b1, w2, wd, bd)


# ---------------------------------------------------------------------------
# Kernel 3: Attention(v, q) + weighted sum over objects.  The q half of the
#           concat-FC (cat(v,q) @ W1 = v @ W1_v + q @ W1_q) is folded in here.
#           The object dimension is zero-padded to a multiple of 8; padded
#           scores are masked to -inf before the softmax.
# ---------------------------------------------------------------------------
def vattn_kernel(n_valid, v_ref, yq_ref, w1v_ref, w1q_ref, b1_ref, w2_ref, yv_ref):
    BT, NP, D = v_ref.shape
    AH = w1v_ref.shape[1]
    bf16 = jnp.bfloat16
    v = v_ref[...]                                                  # (BT, NP, D) bf16
    brow = (jnp.dot(yq_ref[...].astype(bf16), w1q_ref[...],
                    preferred_element_type=jnp.float32) + b1_ref[...])       # (BT, AH)
    pre = jnp.dot(v.reshape(BT * NP, D), w1v_ref[...],
                  preferred_element_type=jnp.float32).reshape(BT, NP, AH)
    act = jnp.maximum(pre + brow[:, None, :], 0.0)
    s = jnp.sum(act * w2_ref[...][None], axis=-1)                   # (BT, NP)
    obj_idx = jax.lax.broadcasted_iota(jnp.int32, (BT, NP), 1)
    s = jnp.where(obj_idx < n_valid, s, -jnp.inf)
    s = s - jnp.max(s, axis=1, keepdims=True)
    p = jnp.exp(s)
    alpha = p / jnp.sum(p, axis=1, keepdims=True)
    yv_ref[...] = jnp.sum(alpha[:, :, None] * v.astype(jnp.float32), axis=1)  # (BT, D)


def v_attention_pool(v_bf16, y_q, w1v, w1q, b1, w2, n_valid):
    B, NP, D = v_bf16.shape
    FEAT = y_q.shape[1]
    AH = w1v.shape[1]
    BT = _batch_tile(B, cap=32)   # small tile: v block x2 buffers stays in scoped VMEM
    kernel = functools.partial(vattn_kernel, n_valid)
    return pl.pallas_call(
        kernel,
        out_shape=jax.ShapeDtypeStruct((B, D), jnp.float32),
        grid=(B // BT,),
        in_specs=[
            pl.BlockSpec((BT, NP, D), lambda b: (b, 0, 0)),
            pl.BlockSpec((BT, FEAT), lambda b: (b, 0)),
            pl.BlockSpec((D, AH), lambda b: (0, 0)),
            pl.BlockSpec((FEAT, AH), lambda b: (0, 0)),
            pl.BlockSpec((1, AH), lambda b: (0, 0)),
            pl.BlockSpec((1, AH), lambda b: (0, 0)),
        ],
        out_specs=pl.BlockSpec((BT, D), lambda b: (b, 0)),
        compiler_params=pltpu.CompilerParams(
            dimension_semantics=("parallel",),
            vmem_limit_bytes=_VMEM_LIMIT),
    )(v_bf16, y_q, w1v, w1q, b1, w2)


# ---------------------------------------------------------------------------
# Kernel 4: fused head:  z = y_v * y_q ; dense ; classifier (linear-relu-linear).
#           The final (MID, OUT) matmul is column-tiled over an "arbitrary" grid
#           axis; the relu hidden is computed once per batch tile (pl.when(j==0))
#           and cached in a bf16 VMEM scratch.
# ---------------------------------------------------------------------------
def head_kernel(yv_ref, yq_ref, wd_ref, bd_ref, wc1_ref, bc1_ref, wc2_ref, bc2_ref,
                out_ref, h_sc):
    j = pl.program_id(1)
    bf16 = jnp.bfloat16

    @pl.when(j == 0)
    def _():
        z = yv_ref[...] * yq_ref[...]
        z = (jnp.dot(z.astype(bf16), wd_ref[...], preferred_element_type=jnp.float32)
             + bd_ref[...])
        h = jnp.maximum(
            jnp.dot(z.astype(bf16), wc1_ref[...], preferred_element_type=jnp.float32)
            + bc1_ref[...], 0.0)
        h_sc[...] = h.astype(bf16)

    out_ref[...] = (jnp.dot(h_sc[...], wc2_ref[...],
                            preferred_element_type=jnp.float32) + bc2_ref[...])


def head(y_v, y_q, wd, bd, wc1, bc1, wc2, bc2):
    B, FEAT = y_v.shape
    MID = wc1.shape[1]
    OUT = wc2.shape[1]
    BT = _batch_tile(B, cap=64)
    OT = _col_tile(OUT)
    return pl.pallas_call(
        head_kernel,
        out_shape=jax.ShapeDtypeStruct((B, OUT), jnp.float32),
        grid=(B // BT, OUT // OT),
        in_specs=[
            pl.BlockSpec((BT, FEAT), lambda b, j: (b, 0)),
            pl.BlockSpec((BT, FEAT), lambda b, j: (b, 0)),
            pl.BlockSpec((FEAT, FEAT), lambda b, j: (0, 0)),
            pl.BlockSpec((1, FEAT), lambda b, j: (0, 0)),
            pl.BlockSpec((FEAT, MID), lambda b, j: (0, 0)),
            pl.BlockSpec((1, MID), lambda b, j: (0, 0)),
            pl.BlockSpec((MID, OT), lambda b, j: (0, j)),
            pl.BlockSpec((1, OT), lambda b, j: (0, j)),
        ],
        out_specs=pl.BlockSpec((BT, OT), lambda b, j: (b, j)),
        scratch_shapes=[pltpu.VMEM((BT, MID), jnp.bfloat16)],
        compiler_params=pltpu.CompilerParams(
            dimension_semantics=("parallel", "arbitrary"),
            vmem_limit_bytes=_VMEM_LIMIT),
    )(y_v, y_q, wd, bd, wc1, bc1, wc2, bc2)


# ---------------------------------------------------------------------------
# Model wrapper (glue: padding, embedding gather, parameter plumbing).
# ---------------------------------------------------------------------------
def my_model_forward(params, v, q_ids):
    B, N, _ = v.shape
    B_pad = _round_up(B, 8)
    N_pad = _round_up(N, 8)
    if B_pad != B:
        v = jnp.pad(v, ((0, B_pad - B), (0, 0), (0, 0)))
        q_ids = jnp.pad(q_ids, ((0, B_pad - B), (0, 0)))
    if N_pad != N:
        v = jnp.pad(v, ((0, 0), (0, N_pad - N), (0, 0)))
    v_bf16 = v.astype(jnp.bfloat16)

    # Embedding lookup (glue), produced directly in time-major (T, B, E) bf16 so no
    # transposes are needed around the LSTM.  Dropout is identity (eval).
    x_tbe = jnp.take(params['emb'], q_ids.T, axis=0).astype(jnp.bfloat16)   # (T, B, E)

    # 2-layer LSTM, one pallas_call per layer (per-layer weight residency for v7x);
    # the layer-1 hidden sequence round-trips HBM in bf16.
    h1 = lstm_layer(x_tbe, params['wih1'], params['whh1'], params['blstm1'])
    h2 = lstm_layer(h1, params['wih2'], params['whh2'], params['blstm2'])   # (T, B, H) bf16

    # Qmodel self-attention pooling over time + dense1 (fused).
    y_q = qpool_dense(h2, params['q_attn_w1'], params['q_attn_b1'],
                      params['q_attn_w2'], params['dense1_w'], params['dense1_b'])

    # Attention(v, y_q) with folded q-projection + weighted sum over (padded) objects.
    y_v = v_attention_pool(v_bf16, y_q, params['a_w1_v'], params['a_w1_q'],
                           params['a_b1'], params['a_w2'], n_valid=N)

    # Pointwise fusion + dense + classifier (dropout p=0.5 identity in eval).
    out = head(y_v, y_q, params['dense_w'], params['dense_b'],
               params['cls_w1'], params['cls_b1'],
               params['cls_w2'], params['cls_b2'])
    return out[:B]


# ---------------------------------------------------------------------------
# Deterministic parameter init.
# ---------------------------------------------------------------------------
def init_params(key, V, E, H, FEAT, Q_HID, A_HID, MID, OUT):
    ks = jax.random.split(key, 22)

    def w(k, shape, s=0.02):                       # MXU weights -> bf16 storage
        return (s * jax.random.normal(k, shape)).astype(jnp.bfloat16)

    def f32(k, shape, s=0.02):                     # biases / score rows -> f32
        return (s * jax.random.normal(k, shape)).astype(jnp.float32)

    return {
        # embedding ("glove") table
        'emb': jax.random.normal(ks[0], (V, E)).astype(jnp.float32),
        # 2-layer LSTM: weights stored [in, 4H] with gate order (i, f, o, g);
        # bias = b_ih + b_hh merged (permute from PyTorch (i, f, g, o) when porting).
        'wih1': w(ks[1], (E, 4 * H)), 'whh1': w(ks[2], (H, 4 * H)),
        'blstm1': f32(ks[3], (1, 4 * H)),
        'wih2': w(ks[4], (H, 4 * H)), 'whh2': w(ks[5], (H, 4 * H)),
        'blstm2': f32(ks[6], (1, 4 * H)),
        # Qmodel self-attention: FC([H, Q_HID]) + Linear(Q_HID, 1) score row
        # (scalar score bias cancels under softmax and is omitted).
        'q_attn_w1': w(ks[7], (H, Q_HID), 0.01), 'q_attn_b1': f32(ks[8], (1, Q_HID)),
        'q_attn_w2': f32(ks[9], (1, Q_HID), 0.01),
        # Qmodel.dense1: H -> FEAT
        'dense1_w': w(ks[10], (H, FEAT)), 'dense1_b': f32(ks[11], (1, FEAT)),
        # Attention: FC([v_dim + q_dim, A_HID]) split into v / q halves (cat order
        # is (v, q)), + Linear(A_HID, 1) score row.
        'a_w1_v': w(ks[12], (FEAT, A_HID), 0.01), 'a_w1_q': w(ks[13], (FEAT, A_HID), 0.01),
        'a_b1': f32(ks[14], (1, A_HID)),
        'a_w2': f32(ks[15], (1, A_HID), 0.01),
        # MyModel.dense: FEAT -> FEAT
        'dense_w': w(ks[16], (FEAT, FEAT)), 'dense_b': f32(ks[17], (1, FEAT)),
        # Classifier: FEAT -> MID -> OUT
        'cls_w1': w(ks[18], (FEAT, MID)), 'cls_b1': f32(ks[19], (1, MID)),
        'cls_w2': w(ks[20], (MID, OUT)), 'cls_b2': f32(ks[21], (1, OUT)),
    }


if __name__ == "__main__":
    # Small, mostly-aligned stand-ins for the production sizes (hidden=2048,
    # features=2048, glove=300, mid/out~3000, 36 objects).  B=13 / N=9 deliberately
    # exercise the batch/object padding paths; B pads to 16 so every kernel runs
    # with >= 2 grid steps, and OUT=256 exercises the classifier column tiling.
    B, T, N = 13, 7, 9         # batch, question length, num_objs
    V, E = 64, 128             # vocab, embedding_dim
    H = 128                    # LSTM hidden_size
    FEAT = 128                 # NLP_out_feature = q_dim = v_dim = pointwise = in_features
    Q_HID, A_HID = 128, 128    # attention hidden dims
    MID, OUT = 256, 256        # classifier mid / out features

    key = jax.random.PRNGKey(0)
    kp, kv, kq = jax.random.split(key, 3)
    params = init_params(kp, V, E, H, FEAT, Q_HID, A_HID, MID, OUT)

    v = jax.random.normal(kv, (B, N, FEAT), dtype=jnp.float32)       # image features
    q_ids = jax.random.randint(kq, (B, T), 0, V, dtype=jnp.int32)    # question token ids

    out = jax.block_until_ready(my_model_forward(params, v, q_ids))
    assert out.shape == (B, OUT) and out.dtype == jnp.float32
    assert bool(jnp.all(jnp.isfinite(out)))
    print("KERNEL_OK")
</pallas_src>

<mosaic_0001>
module attributes {stable_mosaic.version = 11 : i64} {
  func.func @lstm_layer_kernel(%arg0: i32, %arg1: memref<7x8x128xbf16, #tpu.memory_space<vmem>>, %arg2: memref<128x512xbf16, #tpu.memory_space<vmem>>, %arg3: memref<128x512xbf16, #tpu.memory_space<vmem>>, %arg4: memref<1x512xf32, #tpu.memory_space<vmem>>, %arg5: memref<7x8x128xbf16, #tpu.memory_space<vmem>>, %arg6: memref<7x8x512xbf16, #tpu.memory_space<vmem>>) attributes {dimension_semantics = [#tpu.dimension_semantics<parallel>], iteration_bounds = array<i64: 2>, scalar_prefetch = 0 : i64, scratch_operands = 1 : i64, tpu.core_type = #tpu.core_type<tc>, window_params = [{transform_indices = @transform_0, window_bounds = array<i64: 7, 8, 128>}, {pipeline_mode = #tpu.pipeline_mode<synchronous>, transform_indices = @transform_1, window_bounds = array<i64: 128, 512>}, {pipeline_mode = #tpu.pipeline_mode<synchronous>, transform_indices = @transform_2, window_bounds = array<i64: 128, 512>}, {pipeline_mode = #tpu.pipeline_mode<synchronous>, transform_indices = @transform_3, window_bounds = array<i64: 1, 512>}, {transform_indices = @transform_4, window_bounds = array<i64: 7, 8, 128>}]} {
    %c0 = arith.constant 0 : index
    %c0_0 = arith.constant 0 : index
    %c0_1 = arith.constant 0 : index
    %0 = vector.load %arg1[%c0, %c0_0, %c0_1] : memref<7x8x128xbf16, #tpu.memory_space<vmem>>, vector<7x8x128xbf16>
    %1 = vector.shape_cast %0 : vector<7x8x128xbf16> to vector<56x128xbf16>
    %c0_2 = arith.constant 0 : index
    %c0_3 = arith.constant 0 : index
    %2 = vector.load %arg2[%c0_2, %c0_3] : memref<128x512xbf16, #tpu.memory_space<vmem>>, vector<128x512xbf16>
    %cst = arith.constant dense<0.000000e+00> : vector<56x512xf32>
    %3 = tpu.matmul %1, %2, %cst {dimension_numbers = #tpu.dot_dimension_numbers<[1], [0], [0], [1], [0, 0, 1, 1], [], []>} : vector<56x128xbf16>, vector<128x512xbf16>, vector<56x512xf32> -> vector<56x512xf32>
    %4 = vector.shape_cast %3 : vector<56x512xf32> to vector<7x8x512xf32>
    %5 = arith.truncf %4 : vector<7x8x512xf32> to vector<7x8x512xbf16>
    %c0_4 = arith.constant 0 : index
    %c0_5 = arith.constant 0 : index
    %c0_6 = arith.constant 0 : index
    %6 = vector.load %arg6[%c0_4, %c0_5, %c0_6] : memref<7x8x512xbf16, #tpu.memory_space<vmem>>, vector<7x8x512xbf16>
    tpu.vector_store %arg6[%c0_4, %c0_5, %c0_6], %5 {strides = array<i32>} : memref<7x8x512xbf16, #tpu.memory_space<vmem>>, vector<7x8x512xbf16>,
    %c0_7 = arith.constant 0 : index
    %c0_8 = arith.constant 0 : index
    %7 = vector.load %arg4[%c0_7, %c0_8] : memref<1x512xf32, #tpu.memory_space<vmem>>, vector<1x512xf32>
    %cst_9 = arith.constant 0.000000e+00 : f32
    %8 = vector.broadcast %cst_9 : f32 to vector<8x128xf32>
    %c0_i32 = arith.constant 0 : i32
    %9 = arith.index_cast %c0_i32 : i32 to index
    %c0_10 = arith.constant 0 : index
    %c0_11 = arith.constant 0 : index
    %10 = vector.load %arg6[%9, %c0_10, %c0_11] : memref<7x8x512xbf16, #tpu.memory_space<vmem>>, vector<1x8x512xbf16>
    %11 = vector.shape_cast %10 : vector<1x8x512xbf16> to vector<8x512xbf16>
    %12 = arith.extf %11 : vector<8x512xbf16> to vector<8x512xf32>
    %13 = vector.broadcast %7 : vector<1x512xf32> to vector<8x512xf32>
    %14 = arith.addf %12, %13 : vector<8x512xf32>
    %15 = arith.truncf %8 : vector<8x128xf32> to vector<8x128xbf16>
    %c0_12 = arith.constant 0 : index
    %c0_13 = arith.constant 0 : index
    %16 = vector.load %arg3[%c0_12, %c0_13] : memref<128x512xbf16, #tpu.memory_space<vmem>>, vector<128x512xbf16>
    %cst_14 = arith.constant dense<0.000000e+00> : vector<8x512xf32>
    %17 = tpu.matmul %15, %16, %cst_14 {dimension_numbers = #tpu.dot_dimension_numbers<[1], [0], [0], [1], [0, 0, 1, 1], [], []>} : vector<8x128xbf16>, vector<128x512xbf16>, vector<8x512xf32> -> vector<8x512xf32>
    %18 = arith.addf %14, %17 : vector<8x512xf32>
    %19 = vector.extract_strided_slice %18 {offsets = [0, 0], sizes = [8, 384], strides = [1, 1]} : vector<8x512xf32> to vector<8x384xf32>
    %20 = arith.negf %19 : vector<8x384xf32>
    %21 = math.exp %20 : vector<8x384xf32>
    %cst_15 = arith.constant 1.000000e+00 : f32
    %22 = vector.broadcast %cst_15 : f32 to vector<8x384xf32>
    %23 = arith.addf %22, %21 : vector<8x384xf32>
    %24 = arith.divf %22, %23 : vector<8x384xf32>
    %25 = vector.extract_strided_slice %24 {offsets = [0, 0], sizes = [8, 128], strides = [1, 1]} : vector<8x384xf32> to vector<8x128xf32>
    %26 = vector.extract_strided_slice %24 {offsets = [0, 128], sizes = [8, 128], strides = [1, 1]} : vector<8x384xf32> to vector<8x128xf32>
    %27 = vector.extract_strided_slice %24 {offsets = [0, 256], sizes = [8, 128], strides = [1, 1]} : vector<8x384xf32> to vector<8x128xf32>
    %28 = vector.extract_strided_slice %18 {offsets = [0, 384], sizes = [8, 128], strides = [1, 1]} : vector<8x512xf32> to vector<8x128xf32>
    %29 = math.tanh %28 : vector<8x128xf32>
    %30 = arith.mulf %26, %8 : vector<8x128xf32>
    %31 = arith.mulf %25, %29 : vector<8x128xf32>
    %32 = arith.addf %30, %31 : vector<8x128xf32>
    %33 = math.tanh %32 : vector<8x128xf32>
    %34 = arith.mulf %27, %33 : vector<8x128xf32>
    %35 = arith.truncf %34 : vector<8x128xf32> to vector<8x128xbf16>
    %36 = arith.index_cast %c0_i32 : i32 to index
    %c0_16 = arith.constant 0 : index
    %c0_17 = arith.constant 0 : index
    %37 = vector.load %arg5[%36, %c0_16, %c0_17] : memref<7x8x128xbf16, #tpu.memory_space<vmem>>, vector<1x8x128xbf16>
    %38 = vector.shape_cast %37 : vector<1x8x128xbf16> to vector<8x128xbf16>
    %39 = vector.shape_cast %35 : vector<8x128xbf16> to vector<1x8x128xbf16>
    tpu.vector_store %arg5[%36, %c0_16, %c0_17], %39 {strides = array<i32>} : memref<7x8x128xbf16, #tpu.memory_space<vmem>>, vector<1x8x128xbf16>,
    %c1_i32 = arith.constant 1 : i32
    %40 = arith.index_cast %c1_i32 : i32 to index
    %c0_18 = arith.constant 0 : index
    %c0_19 = arith.constant 0 : index
    %41 = vector.load %arg6[%40, %c0_18, %c0_19] : memref<7x8x512xbf16, #tpu.memory_space<vmem>>, vector<1x8x512xbf16>
    %42 = vector.shape_cast %41 : vector<1x8x512xbf16> to vector<8x512xbf16>
    %43 = arith.extf %42 : vector<8x512xbf16> to vector<8x512xf32>
    %44 = vector.broadcast %7 : vector<1x512xf32> to vector<8x512xf32>
    %45 = arith.addf %43, %44 : vector<8x512xf32>
    %46 = arith.truncf %34 : vector<8x128xf32> to vector<8x128xbf16>
    %c0_20 = arith.constant 0 : index
    %c0_21 = arith.constant 0 : index
    %47 = vector.load %arg3[%c0_20, %c0_21] : memref<128x512xbf16, #tpu.memory_space<vmem>>, vector<128x512xbf16>
    %cst_22 = arith.constant dense<0.000000e+00> : vector<8x512xf32>
    %48 = tpu.matmul %46, %47, %cst_22 {dimension_numbers = #tpu.dot_dimension_numbers<[1], [0], [0], [1], [0, 0, 1, 1], [], []>} : vector<8x128xbf16>, vector<128x512xbf16>, vector<8x512xf32> -> vector<8x512xf32>
    %49 = arith.addf %45, %48 : vector<8x512xf32>
    %50 = vector.extract_strided_slice %49 {offsets = [0, 0], sizes = [8, 384], strides = [1, 1]} : vector<8x512xf32> to vector<8x384xf32>
    %51 = arith.negf %50 : vector<8x384xf32>
    %52 = math.exp %51 : vector<8x384xf32>
    %cst_23 = arith.constant 1.000000e+00 : f32
    %53 = vector.broadcast %cst_23 : f32 to vector<8x384xf32>
    %54 = arith.addf %53, %52 : vector<8x384xf32>
    %55 = arith.divf %53, %54 : vector<8x384xf32>
    %56 = vector.extract_strided_slice %55 {offsets = [0, 0], sizes = [8, 128], strides = [1, 1]} : vector<8x384xf32> to vector<8x128xf32>
    %57 = vector.extract_strided_slice %55 {offsets = [0, 128], sizes = [8, 128], strides = [1, 1]} : vector<8x384xf32> to vector<8x128xf32>
    %58 = vector.extract_strided_slice %55 {offsets = [0, 256], sizes = [8, 128], strides = [1, 1]} : vector<8x384xf32> to vector<8x128xf32>
    %59 = vector.extract_strided_slice %49 {offsets = [0, 384], sizes = [8, 128], strides = [1, 1]} : vector<8x512xf32> to vector<8x128xf32>
    %60 = math.tanh %59 : vector<8x128xf32>
    %61 = arith.mulf %57, %32 : vector<8x128xf32>
    %62 = arith.mulf %56, %60 : vector<8x128xf32>
    %63 = arith.addf %61, %62 : vector<8x128xf32>
    %64 = math.tanh %63 : vector<8x128xf32>
    %65 = arith.mulf %58, %64 : vector<8x128xf32>
    %66 = arith.truncf %65 : vector<8x128xf32> to vector<8x128xbf16>
    %67 = arith.index_cast %c1_i32 : i32 to index
    %c0_24 = arith.constant 0 : index
    %c0_25 = arith.constant 0 : index
    %68 = vector.load %arg5[%67, %c0_24, %c0_25] : memref<7x8x128xbf16, #tpu.memory_space<vmem>>, vector<1x8x128xbf16>
    %69 = vector.shape_cast %68 : vector<1x8x128xbf16> to vector<8x128xbf16>
    %70 = vector.shape_cast %66 : vector<8x128xbf16> to vector<1x8x128xbf16>
    tpu.vector_store %arg5[%67, %c0_24, %c0_25], %70 {strides = array<i32>} : memref<7x8x128xbf16, #tpu.memory_space<vmem>>, vector<1x8x128xbf16>,
    %c2_i32 = arith.constant 2 : i32
    %71 = arith.index_cast %c2_i32 : i32 to index
    %c0_26 = arith.constant 0 : index
    %c0_27 = arith.constant 0 : index
    %72 = vector.load %arg6[%71, %c0_26, %c0_27] : memref<7x8x512xbf16, #tpu.memory_space<vmem>>, vector<1x8x512xbf16>
    %73 = vector.shape_cast %72 : vector<1x8x512xbf16> to vector<8x512xbf16>
    %74 = arith.extf %73 : vector<8x512xbf16> to vector<8x512xf32>
    %75 = vector.broadcast %7 : vector<1x512xf32> to vector<8x512xf32>
    %76 = arith.addf %74, %75 : vector<8x512xf32>
    %77 = arith.truncf %65 : vector<8x128xf32> to vector<8x128xbf16>
    %c0_28 = arith.constant 0 : index
    %c0_29 = arith.constant 0 : index
    %78 = vector.load %arg3[%c0_28, %c0_29] : memref<128x512xbf16, #tpu.memory_space<vmem>>, vector<128x512xbf16>
    %cst_30 = arith.constant dense<0.000000e+00> : vector<8x512xf32>
    %79 = tpu.matmul %77, %78, %cst_30 {dimension_numbers = #tpu.dot_dimension_numbers<[1], [0], [0], [1], [0, 0, 1, 1], [], []>} : vector<8x128xbf16>, vector<128x512xbf16>, vector<8x512xf32> -> vector<8x512xf32>
    %80 = arith.addf %76, %79 : vector<8x512xf32>
    %81 = vector.extract_strided_slice %80 {offsets = [0, 0], sizes = [8, 384], strides = [1, 1]} : vector<8x512xf32> to vector<8x384xf32>
    %82 = arith.negf %81 : vector<8x384xf32>
    %83 = math.exp %82 : vector<8x384xf32>
    %cst_31 = arith.constant 1.000000e+00 : f32
    %84 = vector.broadcast %cst_31 : f32 to vector<8x384xf32>
    %85 = arith.addf %84, %83 : vector<8x384xf32>
    %86 = arith.divf %84, %85 : vector<8x384xf32>
    %87 = vector.extract_strided_slice %86 {offsets = [0, 0], sizes = [8, 128], strides = [1, 1]} : vector<8x384xf32> to vector<8x128xf32>
    %88 = vector.extract_strided_slice %86 {offsets = [0, 128], sizes = [8, 128], strides = [1, 1]} : vector<8x384xf32> to vector<8x128xf32>
    %89 = vector.extract_strided_slice %86 {offsets = [0, 256], sizes = [8, 128], strides = [1, 1]} : vector<8x384xf32> to vector<8x128xf32>
    %90 = vector.extract_strided_slice %80 {offsets = [0, 384], sizes = [8, 128], strides = [1, 1]} : vector<8x512xf32> to vector<8x128xf32>
    %91 = math.tanh %90 : vector<8x128xf32>
    %92 = arith.mulf %88, %63 : vector<8x128xf32>
    %93 = arith.mulf %87, %91 : vector<8x128xf32>
    %94 = arith.addf %92, %93 : vector<8x128xf32>
    %95 = math.tanh %94 : vector<8x128xf32>
    %96 = arith.mulf %89, %95 : vector<8x128xf32>
    %97 = arith.truncf %96 : vector<8x128xf32> to vector<8x128xbf16>
    %98 = arith.index_cast %c2_i32 : i32 to index
    %c0_32 = arith.constant 0 : index
    %c0_33 = arith.constant 0 : index
    %99 = vector.load %arg5[%98, %c0_32, %c0_33] : memref<7x8x128xbf16, #tpu.memory_space<vmem>>, vector<1x8x128xbf16>
    %100 = vector.shape_cast %99 : vector<1x8x128xbf16> to vector<8x128xbf16>
    %101 = vector.shape_cast %97 : vector<8x128xbf16> to vector<1x8x128xbf16>
    tpu.vector_store %arg5[%98, %c0_32, %c0_33], %101 {strides = array<i32>} : memref<7x8x128xbf16, #tpu.memory_space<vmem>>, vector<1x8x128xbf16>,
    %c3_i32 = arith.constant 3 : i32
    %102 = arith.index_cast %c3_i32 : i32 to index
    %c0_34 = arith.constant 0 : index
    %c0_35 = arith.constant 0 : index
    %103 = vector.load %arg6[%102, %c0_34, %c0_35] : memref<7x8x512xbf16, #tpu.memory_space<vmem>>, vector<1x8x512xbf16>
    %104 = vector.shape_cast %103 : vector<1x8x512xbf16> to vector<8x512xbf16>
    %105 = arith.extf %104 : vector<8x512xbf16> to vector<8x512xf32>
    %106 = vector.broadcast %7 : vector<1x512xf32> to vector<8x512xf32>
    %107 = arith.addf %105, %106 : vector<8x512xf32>
    %108 = arith.truncf %96 : vector<8x128xf32> to vector<8x128xbf16>
    %c0_36 = arith.constant 0 : index
    %c0_37 = arith.constant 0 : index
    %109 = vector.load %arg3[%c0_36, %c0_37] : memref<128x512xbf16, #tpu.memory_space<vmem>>, vector<128x512xbf16>
    %cst_38 = arith.constant dense<0.000000e+00> : vector<8x512xf32>
    %110 = tpu.matmul %108, %109, %cst_38 {dimension_numbers = #tpu.dot_dimension_numbers<[1], [0], [0], [1], [0, 0, 1, 1], [], []>} : vector<8x128xbf16>, vector<128x512xbf16>, vector<8x512xf32> -> vector<8x512xf32>
    %111 = arith.addf %107, %110 : vector<8x512xf32>
    %112 = vector.extract_strided_slice %111 {offsets = [0, 0], sizes = [8, 384], strides = [1, 1]} : vector<8x512xf32> to vector<8x384xf32>
    %113 = arith.negf %112 : vector<8x384xf32>
    %114 = math.exp %113 : vector<8x384xf32>
    %cst_39 = arith.constant 1.000000e+00 : f32
    %115 = vector.broadcast %cst_39 : f32 to vector<8x384xf32>
    %116 = arith.addf %115, %114 : vector<8x384xf32>
    %117 = arith.divf %115, %116 : vector<8x384xf32>
    %118 = vector.extract_strided_slice %117 {offsets = [0, 0], sizes = [8, 128], strides = [1, 1]} : vector<8x384xf32> to vector<8x128xf32>
    %119 = vector.extract_strided_slice %117 {offsets = [0, 128], sizes = [8, 128], strides = [1, 1]} : vector<8x384xf32> to vector<8x128xf32>
    %120 = vector.extract_strided_slice %117 {offsets = [0, 256], sizes = [8, 128], strides = [1, 1]} : vector<8x384xf32> to vector<8x128xf32>
    %121 = vector.extract_strided_slice %111 {offsets = [0, 384], sizes = [8, 128], strides = [1, 1]} : vector<8x512xf32> to vector<8x128xf32>
    %122 = math.tanh %121 : vector<8x128xf32>
    %123 = arith.mulf %119, %94 : vector<8x128xf32>
    %124 = arith.mulf %118, %122 : vector<8x128xf32>
    %125 = arith.addf %123, %124 : vector<8x128xf32>
    %126 = math.tanh %125 : vector<8x128xf32>
    %127 = arith.mulf %120, %126 : vector<8x128xf32>
    %128 = arith.truncf %127 : vector<8x128xf32> to vector<8x128xbf16>
    %129 = arith.index_cast %c3_i32 : i32 to index
    %c0_40 = arith.constant 0 : index
    %c0_41 = arith.constant 0 : index
    %130 = vector.load %arg5[%129, %c0_40, %c0_41] : memref<7x8x128xbf16, #tpu.memory_space<vmem>>, vector<1x8x128xbf16>
    %131 = vector.shape_cast %130 : vector<1x8x128xbf16> to vector<8x128xbf16>
    %132 = vector.shape_cast %128 : vector<8x128xbf16> to vector<1x8x128xbf16>
    tpu.vector_store %arg5[%129, %c0_40, %c0_41], %132 {strides = array<i32>} : memref<7x8x128xbf16, #tpu.memory_space<vmem>>, vector<1x8x128xbf16>,
    %c4_i32 = arith.constant 4 : i32
    %133 = arith.index_cast %c4_i32 : i32 to index
    %c0_42 = arith.constant 0 : index
    %c0_43 = arith.constant 0 : index
    %134 = vector.load %arg6[%133, %c0_42, %c0_43] : memref<7x8x512xbf16, #tpu.memory_space<vmem>>, vector<1x8x512xbf16>
    %135 = vector.shape_cast %134 : vector<1x8x512xbf16> to vector<8x512xbf16>
    %136 = arith.extf %135 : vector<8x512xbf16> to vector<8x512xf32>
    %137 = vector.broadcast %7 : vector<1x512xf32> to vector<8x512xf32>
    %138 = arith.addf %136, %137 : vector<8x512xf32>
    %139 = arith.truncf %127 : vector<8x128xf32> to vector<8x128xbf16>
    %c0_44 = arith.constant 0 : index
    %c0_45 = arith.constant 0 : index
    %140 = vector.load %arg3[%c0_44, %c0_45] : memref<128x512xbf16, #tpu.memory_space<vmem>>, vector<128x512xbf16>
    %cst_46 = arith.constant dense<0.000000e+00> : vector<8x512xf32>
    %141 = tpu.matmul %139, %140, %cst_46 {dimension_numbers = #tpu.dot_dimension_numbers<[1], [0], [0], [1], [0, 0, 1, 1], [], []>} : vector<8x128xbf16>, vector<128x512xbf16>, vector<8x512xf32> -> vector<8x512xf32>
    %142 = arith.addf %138, %141 : vector<8x512xf32>
    %143 = vector.extract_strided_slice %142 {offsets = [0, 0], sizes = [8, 384], strides = [1, 1]} : vector<8x512xf32> to vector<8x384xf32>
    %144 = arith.negf %143 : vector<8x384xf32>
    %145 = math.exp %144 : vector<8x384xf32>
    %cst_47 = arith.constant 1.000000e+00 : f32
    %146 = vector.broadcast %cst_47 : f32 to vector<8x384xf32>
    %147 = arith.addf %146, %145 : vector<8x384xf32>
    %148 = arith.divf %146, %147 : vector<8x384xf32>
    %149 = vector.extract_strided_slice %148 {offsets = [0, 0], sizes = [8, 128], strides = [1, 1]} : vector<8x384xf32> to vector<8x128xf32>
    %150 = vector.extract_strided_slice %148 {offsets = [0, 128], sizes = [8, 128], strides = [1, 1]} : vector<8x384xf32> to vector<8x128xf32>
    %151 = vector.extract_strided_slice %148 {offsets = [0, 256], sizes = [8, 128], strides = [1, 1]} : vector<8x384xf32> to vector<8x128xf32>
    %152 = vector.extract_strided_slice %142 {offsets = [0, 384], sizes = [8, 128], strides = [1, 1]} : vector<8x512xf32> to vector<8x128xf32>
    %153 = math.tanh %152 : vector<8x128xf32>
    %154 = arith.mulf %150, %125 : vector<8x128xf32>
    %155 = arith.mulf %149, %153 : vector<8x128xf32>
    %156 = arith.addf %154, %155 : vector<8x128xf32>
    %157 = math.tanh %156 : vector<8x128xf32>
    %158 = arith.mulf %151, %157 : vector<8x128xf32>
    %159 = arith.truncf %158 : vector<8x128xf32> to vector<8x128xbf16>
    %160 = arith.index_cast %c4_i32 : i32 to index
    %c0_48 = arith.constant 0 : index
    %c0_49 = arith.constant 0 : index
    %161 = vector.load %arg5[%160, %c0_48, %c0_49] : memref<7x8x128xbf16, #tpu.memory_space<vmem>>, vector<1x8x128xbf16>
    %162 = vector.shape_cast %161 : vector<1x8x128xbf16> to vector<8x128xbf16>
    %163 = vector.shape_cast %159 : vector<8x128xbf16> to vector<1x8x128xbf16>
    tpu.vector_store %arg5[%160, %c0_48, %c0_49], %163 {strides = array<i32>} : memref<7x8x128xbf16, #tpu.memory_space<vmem>>, vector<1x8x128xbf16>,
    %c5_i32 = arith.constant 5 : i32
    %164 = arith.index_cast %c5_i32 : i32 to index
    %c0_50 = arith.constant 0 : index
    %c0_51 = arith.constant 0 : index
    %165 = vector.load %arg6[%164, %c0_50, %c0_51] : memref<7x8x512xbf16, #tpu.memory_space<vmem>>, vector<1x8x512xbf16>
    %166 = vector.shape_cast %165 : vector<1x8x512xbf16> to vector<8x512xbf16>
    %167 = arith.extf %166 : vector<8x512xbf16> to vector<8x512xf32>
    %168 = vector.broadcast %7 : vector<1x512xf32> to vector<8x512xf32>
    %169 = arith.addf %167, %168 : vector<8x512xf32>
    %170 = arith.truncf %158 : vector<8x128xf32> to vector<8x128xbf16>
    %c0_52 = arith.constant 0 : index
    %c0_53 = arith.constant 0 : index
    %171 = vector.load %arg3[%c0_52, %c0_53] : memref<128x512xbf16, #tpu.memory_space<vmem>>, vector<128x512xbf16>
    %cst_54 = arith.constant dense<0.000000e+00> : vector<8x512xf32>
    %172 = tpu.matmul %170, %171, %cst_54 {dimension_numbers = #tpu.dot_dimension_numbers<[1], [0], [0], [1], [0, 0, 1, 1], [], []>} : vector<8x128xbf16>, vector<128x512xbf16>, vector<8x512xf32> -> vector<8x512xf32>
    %173 = arith.addf %169, %172 : vector<8x512xf32>
    %174 = vector.extract_strided_slice %173 {offsets = [0, 0], sizes = [8, 384], strides = [1, 1]} : vector<8x512xf32> to vector<8x384xf32>
    %175 = arith.negf %174 : vector<8x384xf32>
    %176 = math.exp %175 : vector<8x384xf32>
    %cst_55 = arith.constant 1.000000e+00 : f32
    %177 = vector.broadcast %cst_55 : f32 to vector<8x384xf32>
    %178 = arith.addf %177, %176 : vector<8x384xf32>
    %179 = arith.divf %177, %178 : vector<8x384xf32>
    %180 = vector.extract_strided_slice %179 {offsets = [0, 0], sizes = [8, 128], strides = [1, 1]} : vector<8x384xf32> to vector<8x128xf32>
    %181 = vector.extract_strided_slice %179 {offsets = [0, 128], sizes = [8, 128], strides = [1, 1]} : vector<8x384xf32> to vector<8x128xf32>
    %182 = vector.extract_strided_slice %179 {offsets = [0, 256], sizes = [8, 128], strides = [1, 1]} : vector<8x384xf32> to vector<8x128xf32>
    %183 = vector.extract_strided_slice %173 {offsets = [0, 384], sizes = [8, 128], strides = [1, 1]} : vector<8x512xf32> to vector<8x128xf32>
    %184 = math.tanh %183 : vector<8x128xf32>
    %185 = arith.mulf %181, %156 : vector<8x128xf32>
    %186 = arith.mulf %180, %184 : vector<8x128xf32>
    %187 = arith.addf %185, %186 : vector<8x128xf32>
    %188 = math.tanh %187 : vector<8x128xf32>
    %189 = arith.mulf %182, %188 : vector<8x128xf32>
    %190 = arith.truncf %189 : vector<8x128xf32> to vector<8x128xbf16>
    %191 = arith.index_cast %c5_i32 : i32 to index
    %c0_56 = arith.constant 0 : index
    %c0_57 = arith.constant 0 : index
    %192 = vector.load %arg5[%191, %c0_56, %c0_57] : memref<7x8x128xbf16, #tpu.memory_space<vmem>>, vector<1x8x128xbf16>
    %193 = vector.shape_cast %192 : vector<1x8x128xbf16> to vector<8x128xbf16>
    %194 = vector.shape_cast %190 : vector<8x128xbf16> to vector<1x8x128xbf16>
    tpu.vector_store %arg5[%191, %c0_56, %c0_57], %194 {strides = array<i32>} : memref<7x8x128xbf16, #tpu.memory_space<vmem>>, vector<1x8x128xbf16>,
    %c6_i32 = arith.constant 6 : i32
    %195 = arith.index_cast %c6_i32 : i32 to index
    %c0_58 = arith.constant 0 : index
    %c0_59 = arith.constant 0 : index
    %196 = vector.load %arg6[%195, %c0_58, %c0_59] : memref<7x8x512xbf16, #tpu.memory_space<vmem>>, vector<1x8x512xbf16>
    %197 = vector.shape_cast %196 : vector<1x8x512xbf16> to vector<8x512xbf16>
    %198 = arith.extf %197 : vector<8x512xbf16> to vector<8x512xf32>
    %199 = vector.broadcast %7 : vector<1x512xf32> to vector<8x512xf32>
    %200 = arith.addf %198, %199 : vector<8x512xf32>
    %201 = arith.truncf %189 : vector<8x128xf32> to vector<8x128xbf16>
    %c0_60 = arith.constant 0 : index
    %c0_61 = arith.constant 0 : index
    %202 = vector.load %arg3[%c0_60, %c0_61] : memref<128x512xbf16, #tpu.memory_space<vmem>>, vector<128x512xbf16>
    %cst_62 = arith.constant dense<0.000000e+00> : vector<8x512xf32>
    %203 = tpu.matmul %201, %202, %cst_62 {dimension_numbers = #tpu.dot_dimension_numbers<[1], [0], [0], [1], [0, 0, 1, 1], [], []>} : vector<8x128xbf16>, vector<128x512xbf16>, vector<8x512xf32> -> vector<8x512xf32>
    %204 = arith.addf %200, %203 : vector<8x512xf32>
    %205 = vector.extract_strided_slice %204 {offsets = [0, 0], sizes = [8, 384], strides = [1, 1]} : vector<8x512xf32> to vector<8x384xf32>
    %206 = arith.negf %205 : vector<8x384xf32>
    %207 = math.exp %206 : vector<8x384xf32>
    %cst_63 = arith.constant 1.000000e+00 : f32
    %208 = vector.broadcast %cst_63 : f32 to vector<8x384xf32>
    %209 = arith.addf %208, %207 : vector<8x384xf32>
    %210 = arith.divf %208, %209 : vector<8x384xf32>
    %211 = vector.extract_strided_slice %210 {offsets = [0, 0], sizes = [8, 128], strides = [1, 1]} : vector<8x384xf32> to vector<8x128xf32>
    %212 = vector.extract_strided_slice %210 {offsets = [0, 128], sizes = [8, 128], strides = [1, 1]} : vector<8x384xf32> to vector<8x128xf32>
    %213 = vector.extract_strided_slice %210 {offsets = [0, 256], sizes = [8, 128], strides = [1, 1]} : vector<8x384xf32> to vector<8x128xf32>
    %214 = vector.extract_strided_slice %204 {offsets = [0, 384], sizes = [8, 128], strides = [1, 1]} : vector<8x512xf32> to vector<8x128xf32>
    %215 = math.tanh %214 : vector<8x128xf32>
    %216 = arith.mulf %212, %187 : vector<8x128xf32>
    %217 = arith.mulf %211, %215 : vector<8x128xf32>
    %218 = arith.addf %216, %217 : vector<8x128xf32>
    %219 = math.tanh %218 : vector<8x128xf32>
    %220 = arith.mulf %213, %219 : vector<8x128xf32>
    %221 = arith.truncf %220 : vector<8x128xf32> to vector<8x128xbf16>
    %222 = arith.index_cast %c6_i32 : i32 to index
    %c0_64 = arith.constant 0 : index
    %c0_65 = arith.constant 0 : index
    %223 = vector.load %arg5[%222, %c0_64, %c0_65] : memref<7x8x128xbf16, #tpu.memory_space<vmem>>, vector<1x8x128xbf16>
    %224 = vector.shape_cast %223 : vector<1x8x128xbf16> to vector<8x128xbf16>
    %225 = vector.shape_cast %221 : vector<8x128xbf16> to vector<1x8x128xbf16>
    tpu.vector_store %arg5[%222, %c0_64, %c0_65], %225 {strides = array<i32>} : memref<7x8x128xbf16, #tpu.memory_space<vmem>>, vector<1x8x128xbf16>,
    %c7_i32 = arith.constant 7 : i32
    return
  }
  func.func @transform_0(%arg0: i32) -> (i32, i32, i32) {
    %c0_i32 = arith.constant 0 : i32
    %c0_i32_0 = arith.constant 0 : i32
    %c0_i32_1 = arith.constant 0 : i32
    return %c0_i32, %arg0, %c0_i32_0 : i32, i32, i32
  }
  func.func @transform_1(%arg0: i32) -> (i32, i32) {
    %c0_i32 = arith.constant 0 : i32
    %c0_i32_0 = arith.constant 0 : i32
    %c0_i32_1 = arith.constant 0 : i32
    return %c0_i32, %c0_i32_0 : i32, i32
  }
  func.func @transform_2(%arg0: i32) -> (i32, i32) {
    %c0_i32 = arith.constant 0 : i32
    %c0_i32_0 = arith.constant 0 : i32
    %c0_i32_1 = arith.constant 0 : i32
    return %c0_i32, %c0_i32_0 : i32, i32
  }
  func.func @transform_3(%arg0: i32) -> (i32, i32) {
    %c0_i32 = arith.constant 0 : i32
    %c0_i32_0 = arith.constant 0 : i32
    %c0_i32_1 = arith.constant 0 : i32
    return %c0_i32, %c0_i32_0 : i32, i32
  }
  func.func @transform_4(%arg0: i32) -> (i32, i32, i32) {
    %c0_i32 = arith.constant 0 : i32
    %c0_i32_0 = arith.constant 0 : i32
    %c0_i32_1 = arith.constant 0 : i32
    return %c0_i32, %arg0, %c0_i32_0 : i32, i32, i32
  }
}

</mosaic_0001>

<llo_original>
// kernel: tpu_custom_call.1
$region0: #{tpu_custom_call.1}
  #allocation0 [shape = 'u32[]', space=smem, size = 0x4, offset = 0x4, fixed_abs, tag = 'smem constant byte address 0x4 - core index']
  #allocation1 [shape = 'u32[72,128]{1,0:T(1,128)}', space=vmem, size = 0x9000, scoped, tag = 'internal scratch']
  #allocation2 [shape = 'bf16[7,8,512]{2,1,0:T(8,128)(2,1)}', space=vmem, size = 0xe000, scoped, tag = 'scratch operand']
  %s0 = inlined_call_operand.hbm [shape: bf16[7,16,128], index: 0, kind: input, shape index: {}]
  %s1 = inlined_call_operand.hbm [shape: bf16[128,512], index: 1, kind: input, shape index: {}]
  %s2 = inlined_call_operand.hbm [shape: bf16[128,512], index: 2, kind: input, shape index: {}]
  %s3 = inlined_call_operand.hbm [shape: f32[1,512], index: 3, kind: input, shape index: {}]
  %s4 = inlined_call_operand.hbm [shape: bf16[7,16,128], index: 4, kind: output, shape index: {}]
  %s5 = sld [smem:[#allocation0]]
  $region65: #{tpu_custom_call.1} parent=0
    _
  %s7 = ssub.s32 1, %s5
  %s8 = scalar_select 0, %s7, %s5
  $region1: #{tpu_custom_call.1} parent=0
    #allocation3 [shape = 'u8[28672]{0}', space=vmem, size = 0x7000, scoped, tag = 'input window, operand 0']
    #allocation4 [shape = 's32[2]{0}', space=sflag, size = 0x8, scoped, tag = 'scoped memory for tpu_custom_call.1']
    #allocation5 [shape = 's32[2]{0}', space=sflag, size = 0x8, scoped, tag = 'scoped memory for tpu_custom_call.1']
    #allocation6 [shape = 'u8[131072]{0}', space=vmem, size = 0x20000, scoped, tag = 'input window, operand 1, single buffered']
    #allocation7 [shape = 's32[1]{0}', space=sflag, size = 0x4, scoped, tag = 'scoped memory for tpu_custom_call.1']
    #allocation8 [shape = 'u8[131072]{0}', space=vmem, size = 0x20000, scoped, tag = 'input window, operand 2, single buffered']
    #allocation9 [shape = 'u8[2048]{0}', space=vmem, size = 0x800, scoped, tag = 'input window, operand 3, single buffered']
    #allocation10 [shape = 's32[1]{0}', space=sflag, size = 0x4, scoped, tag = 'scoped memory for tpu_custom_call.1']
    #allocation11 [shape = 'u8[28672]{0}', space=vmem, size = 0x7000, scoped, tag = 'output window, operand 0']
    %9 = vsyncpa [#allocation4], 0
    %s10 = scalar_lea.sflag [#allocation4], 1
    %11 = vsyncpa %s10, 0
    %12 = vsyncpa [#allocation7], 0
    %13 = vsyncpa [#allocation10], 0
    %14 = vsyncpa [#allocation5], 0
    %s15 = scalar_lea.sflag [#allocation5], 1
    %16 = vsyncpa %s15, 0
    loop: start=0, step=1, limit=4
    $region2: #{tpu_custom_call.1} parent=1 // loop_pre_header
      _
    $region3: #{tpu_custom_call.1} parent=1 // loop_header
      %s18 = sphi 0, %s22
      %p19 = scmp.ge.s32.totalorder %s18, 4
      %s28 = sphi 0, %s30
      %s31 = sphi 0, %s28
      %s32 = sphi 0, %s31
      %s48 = sphi 0, %s32
      %s52 = sphi 0, %s52
      %s54 = sphi 0, %s52
      %s55 = sphi 0, %s54
      %s69 = sphi 0, %s55
      %s73 = sphi 0, %s73
      %s75 = sphi 0, %s73
      %s76 = sphi 0, %s75
      %s90 = sphi 0, %s76
      %s94 = sphi 0, %s94
      %s96 = sphi 0, %s94
      %s97 = sphi 0, %s96
      %s111 = sphi 0, %s97
      %s117 = sphi 0, %s119
      %s120 = sphi 0, %s117
      %s121 = sphi 0, %s120
      %s137 = sphi 0, %s121
    $region4: #{tpu_custom_call.1} parent=1 // loop_header_branch
      %21 = sbr.rel (%p19) target = $region8
    $region5: #{tpu_custom_call.1} parent=1 // loop_body
      %s23 = ssub.s32 %s18, 1
      %s24 = ssub.s32 %s18, 2
      %s25 = sadd.s32 %s18, 1
      %s26 = ssub.s32 %s18, %s25
      %p27 = scmp.eq.s32.totalorder %s26, 0
      %s29 = sadd.s32 %s28, 1
      %s30 = scalar_select %p27, %s28, %s29
      %p33 = pneg %p27
      %p34 = scmp.eq.s32.totalorder %s18, 1
      %p35 = por %p33, %p34
      %p36 = scmp.ne.s32.totalorder %s28, %s31
      %p37 = scmp.eq.s32.totalorder %s18, 0
      %p38 = por %p36, %p37
      %p39 = scmp.ne.s32.totalorder %s28, %s31
      %p40 = scmp.eq.s32.totalorder %s23, 1
      %p41 = por %p39, %p40
      %p42 = scmp.ne.s32.totalorder %s31, %s32
      %p43 = scmp.eq.s32.totalorder %s23, 0
      %p44 = por %p42, %p43
      %p45 = scmp.ne.s32.totalorder %s31, %s32
      %p46 = scmp.eq.s32.totalorder %s24, 1
      %p47 = por %p45, %p46
      %p49 = scmp.ne.s32.totalorder %s32, %s48
      %p50 = scmp.eq.s32.totalorder %s24, 0
      %p51 = por %p49, %p50
      %s53 = sadd.s32 %s52, 1
      %p56 = scmp.eq.s32.totalorder %s18, 1
      %p57 = scmp.ne.s32.totalorder %s52, %s54
      %p58 = scmp.eq.s32.totalorder %s18, 0
      %p59 = por %p57, %p58
      %p60 = scmp.ne.s32.totalorder %s52, %s54
      %p61 = scmp.eq.s32.totalorder %s23, 1
      %p62 = por %p60, %p61
      %p63 = scmp.ne.s32.totalorder %s54, %s55
      %p64 = scmp.eq.s32.totalorder %s23, 0
      %p65 = por %p63, %p64
      %p66 = scmp.ne.s32.totalorder %s54, %s55
      %p67 = scmp.eq.s32.totalorder %s24, 1
      %p68 = por %p66, %p67
      %p70 = scmp.ne.s32.totalorder %s55, %s69
      %p71 = scmp.eq.s32.totalorder %s24, 0
      %p72 = por %p70, %p71
      %s74 = sadd.s32 %s73, 1
      %p77 = scmp.eq.s32.totalorder %s18, 1
      %p78 = scmp.ne.s32.totalorder %s73, %s75
      %p79 = scmp.eq.s32.totalorder %s18, 0
      %p80 = por %p78, %p79
      %p81 = scmp.ne.s32.totalorder %s73, %s75
      %p82 = scmp.eq.s32.totalorder %s23, 1
      %p83 = por %p81, %p82
      %p84 = scmp.ne.s32.totalorder %s75, %s76
      %p85 = scmp.eq.s32.totalorder %s23, 0
      %p86 = por %p84, %p85
      %p87 = scmp.ne.s32.totalorder %s75, %s76
      %p88 = scmp.eq.s32.totalorder %s24, 1
      %p89 = por %p87, %p88
      %p91 = scmp.ne.s32.totalorder %s76, %s90
      %p92 = scmp.eq.s32.totalorder %s24, 0
      %p93 = por %p91, %p92
      %s95 = sadd.s32 %s94, 1
      %p98 = scmp.eq.s32.totalorder %s18, 1
      %p99 = scmp.ne.s32.totalorder %s94, %s96
      %p100 = scmp.eq.s32.totalorder %s18, 0
      %p101 = por %p99, %p100
      %p102 = scmp.ne.s32.totalorder %s94, %s96
      %p103 = scmp.eq.s32.totalorder %s23, 1
      %p104 = por %p102, %p103
      %p105 = scmp.ne.s32.totalorder %s96, %s97
      %p106 = scmp.eq.s32.totalorder %s23, 0
      %p107 = por %p105, %p106
      %p108 = scmp.ne.s32.totalorder %s96, %s97
      %p109 = scmp.eq.s32.totalorder %s24, 1
      %p110 = por %p108, %p109
      %p112 = scmp.ne.s32.totalorder %s97, %s111
      %p113 = scmp.eq.s32.totalorder %s24, 0
      %p114 = por %p112, %p113
      %s115 = ssub.s32 %s18, %s25
      %p116 = scmp.eq.s32.totalorder %s115, 0
      %s118 = sadd.s32 %s117, 1
      %s119 = scalar_select %p116, %s117, %s118
      %p122 = pneg %p116
      %p123 = scmp.eq.s32.totalorder %s18, 1
      %p124 = por %p122, %p123
      %p125 = scmp.ne.s32.totalorder %s117, %s120
      %p126 = scmp.eq.s32.totalorder %s18, 0
      %p127 = por %p125, %p126
      %p128 = scmp.ne.s32.totalorder %s117, %s120
      %p129 = scmp.eq.s32.totalorder %s23, 1
      %p130 = por %p128, %p129
      %p131 = scmp.ne.s32.totalorder %s120, %s121
      %p132 = scmp.eq.s32.totalorder %s23, 0
      %p133 = por %p131, %p132
      %p134 = scmp.ne.s32.totalorder %s120, %s121
      %p135 = scmp.eq.s32.totalorder %s24, 1
      %p136 = por %p134, %p135
      %p138 = scmp.ne.s32.totalorder %s121, %s137
      %p139 = scmp.eq.s32.totalorder %s24, 0
      %p140 = por %p138, %p139
      %p141 = scmp.le.s32.totalorder 1, %s18
      %p142 = scmp.lt.s32.totalorder %s18, 3
      %p143 = pnand %p141, %p142
      %p144 = pneg %p143
      // Predicated region
      $region9: #{tpu_custom_call.1} parent=5 // pred_check
        _
      $region10: #{tpu_custom_call.1} parent=5 // pred_check_branch
        %146 = sbr.rel (%p143) target = $region12
      $region11: #{tpu_custom_call.1} parent=5 // pred_region
        %s147 = ssub.s32 %s18, 1
        // Predicated region
        $region13: #{tpu_custom_call.1} parent=11 // pred_check
          %p148 = pneg %p65
        $region14: #{tpu_custom_call.1} parent=11 // pred_check_branch
          %150 = sbr.rel (%p148) target = $region16
        $region15: #{tpu_custom_call.1} parent=11 // pred_region
          %152 = vsyncadd [#allocation7], 0
          %s153 = sshll.u32 %s1, 4
          %s154 = int_to_ptr.hbm [resolvable:$true] %s153
          %s155 = sshll.u32 [#allocation6], 4
          %s156 = int_to_ptr.vmem [resolvable:$true] %s155
          %161 = dma.hbm_to_vmem [thread:$0]  %s154, 4096, %s156, [#allocation7], 256, 256, 16
        $region16: #{tpu_custom_call.1} parent=11 // pred_fallthru
          _
        // Predicated region
        $region17: #{tpu_custom_call.1} parent=11 // pred_check
          %p162 = pneg %p86
        $region18: #{tpu_custom_call.1} parent=11 // pred_check_branch
          %164 = sbr.rel (%p162) target = $region20
        $region19: #{tpu_custom_call.1} parent=11 // pred_region
          %166 = vsyncadd [#allocation7], 0
          %s167 = sshll.u32 %s2, 4
          %s168 = int_to_ptr.hbm [resolvable:$true] %s167
          %s169 = sshll.u32 [#allocation8], 4
          %s170 = int_to_ptr.vmem [resolvable:$true] %s169
          %175 = dma.hbm_to_vmem [thread:$0]  %s168, 4096, %s170, [#allocation7], 256, 256, 16
        $region20: #{tpu_custom_call.1} parent=11 // pred_fallthru
          _
        // Predicated region
        $region21: #{tpu_custom_call.1} parent=11 // pred_check
          %p176 = pneg %p107
        $region22: #{tpu_custom_call.1} parent=11 // pred_check_branch
          %178 = sbr.rel (%p176) target = $region24
        $region23: #{tpu_custom_call.1} parent=11 // pred_region
          %180 = vsyncadd [#allocation10], 0
          %s182 = sshll.u32 %s3, 4
          %s183 = int_to_ptr.hbm [resolvable:$true] %s182
          %s184 = sshll.u32 [#allocation9], 4
          %s185 = int_to_ptr.vmem [resolvable:$true] %s184
          %187 = dma.hbm_to_vmem [thread:$0]  %s183, 64, %s185, [#allocation10]
        $region24: #{tpu_custom_call.1} parent=11 // pred_fallthru
          _
      $region12: #{tpu_custom_call.1} parent=5 // pred_fallthru
        _
      %p188 = scmp.lt.s32.totalorder %s18, 2
      // Predicated region
      $region25: #{tpu_custom_call.1} parent=5 // pred_check
        %p189 = pneg %p188
      $region26: #{tpu_custom_call.1} parent=5 // pred_check_branch
        %191 = sbr.rel (%p189) target = $region28
      $region27: #{tpu_custom_call.1} parent=5 // pred_region
        // Predicated region
        $region29: #{tpu_custom_call.1} parent=27 // pred_check
          %p192 = pneg %p38
        $region30: #{tpu_custom_call.1} parent=27 // pred_check_branch
          %194 = sbr.rel (%p192) target = $region32
        $region31: #{tpu_custom_call.1} parent=27 // pred_region
          %s195 = sand.u32 %s28, 1
          %s196 = scalar_lea.sflag [#allocation4], %s195
          %s197 = sand.u32 %s28, 1
          %s198 = smul.addr %s197, 28
          %s199 = scalar_lea.vmem [#allocation3], %s198
          %201 = vsyncadd %s196, 0
          %s202 = smul.addr %s18, 4
          %s203 = scalar_lea.hbm %s0, %s202
          %s204 = sshll.u32 %s203, 4
          %s205 = int_to_ptr.hbm [resolvable:$true] %s204
          %s206 = sshll.u32 %s199, 4
          %s207 = int_to_ptr.vmem [resolvable:$true] %s206
          %212 = dma.hbm_to_vmem [thread:$0]  %s205, 448, %s207, %s196, 128, 64, 4
        $region32: #{tpu_custom_call.1} parent=27 // pred_fallthru
          _
      $region28: #{tpu_custom_call.1} parent=5 // pred_fallthru
        _
      %p213 = scmp.le.s32.totalorder 1, %s18
      %p214 = scmp.lt.s32.totalorder %s18, 3
      %p215 = pnand %p213, %p214
      %p216 = pneg %p215
      // Predicated region
      $region33: #{tpu_custom_call.1} parent=5 // pred_check
        _
      $region34: #{tpu_custom_call.1} parent=5 // pred_check_branch
        %218 = sbr.rel (%p215) target = $region36
      $region35: #{tpu_custom_call.1} parent=5 // pred_region
        %s219 = ssub.s32 %s18, 1
        %s220 = sand.u32 %s31, 1
        %s221 = scalar_lea.sflag [#allocation4], %s220
        %s222 = sand.u32 %s31, 1
        %s223 = smul.addr %s222, 28
        %s224 = scalar_lea.vmem [#allocation3], %s223
        // Predicated region
        $region37: #{tpu_custom_call.1} parent=35 // pred_check
          %p225 = pneg %p44
        $region38: #{tpu_custom_call.1} parent=35 // pred_check_branch
          %227 = sbr.rel (%p225) target = $region40
        $region39: #{tpu_custom_call.1} parent=35 // pred_region
          %229 = dma.done %s221, 448
        $region40: #{tpu_custom_call.1} parent=35 // pred_fallthru
          _
        // Predicated region
        $region41: #{tpu_custom_call.1} parent=35 // pred_check
          %p230 = pneg %p65
        $region42: #{tpu_custom_call.1} parent=35 // pred_check_branch
          %232 = sbr.rel (%p230) target = $region44
        $region43: #{tpu_custom_call.1} parent=35 // pred_region
          %234 = dma.done [#allocation7], 4096
        $region44: #{tpu_custom_call.1} parent=35 // pred_fallthru
          _
        // Predicated region
        $region45: #{tpu_custom_call.1} parent=35 // pred_check
          %p235 = pneg %p86
        $region46: #{tpu_custom_call.1} parent=35 // pred_check_branch
          %237 = sbr.rel (%p235) target = $region48
        $region47: #{tpu_custom_call.1} parent=35 // pred_region
          %239 = dma.done [#allocation7], 4096
        $region48: #{tpu_custom_call.1} parent=35 // pred_fallthru
          _
        // Predicated region
        $region49: #{tpu_custom_call.1} parent=35 // pred_check
          %p240 = pneg %p107
        $region50: #{tpu_custom_call.1} parent=35 // pred_check_branch
          %242 = sbr.rel (%p240) target = $region52
        $region51: #{tpu_custom_call.1} parent=35 // pred_region
          %244 = dma.done [#allocation10], 64
        $region52: #{tpu_custom_call.1} parent=35 // pred_fallthru
          _
        %s245 = sand.u32 %s31, 1
        %s246 = scalar_lea.sflag [#allocation4], %s245
        %s247 = sand.u32 %s31, 1
        %s248 = smul.addr %s247, 28
        %s249 = scalar_lea.vmem [#allocation3], %s248
        %p250 = pneg %p44
        %p251 = pneg %p41
        %p252 = pneg %p65
        %p253 = pneg %p62
        %p254 = pneg %p86
        %p255 = pneg %p83
        %p256 = pneg %p107
        %p257 = pneg %p104
        %p258 = pneg %p133
        %p259 = pneg %p130
        %s260 = sand.u32 %s120, 1
        %s261 = scalar_lea.sflag [#allocation5], %s260
        %s262 = sand.u32 %s120, 1
        %s263 = smul.addr %s262, 28
        %s264 = scalar_lea.vmem [#allocation11], %s263
        %v266 = vld [vmem:[%s224] sm:$0xf]
        %v267 = vld [vmem:[%s224 + $0x4] sm:$0xf]
        %v268 = vld [vmem:[%s224 + $0x8] sm:$0xf]
        %v269 = vld [vmem:[%s224 + $0xc] sm:$0xf]
        %v270 = vld [vmem:[%s224 + $0x10] sm:$0xf]
        %v271 = vld [vmem:[%s224 + $0x14] sm:$0xf]
        %v272 = vld [vmem:[%s224 + $0x18] sm:$0xf]
        %v273 = vld [vmem:[#allocation6] sm:$0xff]
        %v274 = vld [vmem:[#allocation6 + $0x8] sm:$0xff]
        %v275 = vld [vmem:[#allocation6 + $0x10] sm:$0xff]
        %v276 = vld [vmem:[#allocation6 + $0x18] sm:$0xff]
        %v277 = vld [vmem:[#allocation6 + $0x20] sm:$0xff]
        %v278 = vld [vmem:[#allocation6 + $0x28] sm:$0xff]
        %v279 = vld [vmem:[#allocation6 + $0x30] sm:$0xff]
        %v280 = vld [vmem:[#allocation6 + $0x38] sm:$0xff]
        %v281 = vld [vmem:[#allocation6 + $0x40] sm:$0xff]
        %v282 = vld [vmem:[#allocation6 + $0x48] sm:$0xff]
        %v283 = vld [vmem:[#allocation6 + $0x50] sm:$0xff]
        %v284 = vld [vmem:[#allocation6 + $0x58] sm:$0xff]
        %v285 = vld [vmem:[#allocation6 + $0x60] sm:$0xff]
        %v286 = vld [vmem:[#allocation6 + $0x68] sm:$0xff]
        %v287 = vld [vmem:[#allocation6 + $0x70] sm:$0xff]
        %v288 = vld [vmem:[#allocation6 + $0x78] sm:$0xff]
        %v289 = vld [vmem:[#allocation6 + $0x80] sm:$0xff]
        %v290 = vld [vmem:[#allocation6 + $0x88] sm:$0xff]
        %v291 = vld [vmem:[#allocation6 + $0x90] sm:$0xff]
        %v292 = vld [vmem:[#allocation6 + $0x98] sm:$0xff]
        %v293 = vld [vmem:[#allocation6 + $0xa0] sm:$0xff]
        %v294 = vld [vmem:[#allocation6 + $0xa8] sm:$0xff]
        %v295 = vld [vmem:[#allocation6 + $0xb0] sm:$0xff]
        %v296 = vld [vmem:[#allocation6 + $0xb8] sm:$0xff]
        %v297 = vld [vmem:[#allocation6 + $0xc0] sm:$0xff]
        %v298 = vld [vmem:[#allocation6 + $0xc8] sm:$0xff]
        %v299 = vld [vmem:[#allocation6 + $0xd0] sm:$0xff]
        %v300 = vld [vmem:[#allocation6 + $0xd8] sm:$0xff]
        %v301 = vld [vmem:[#allocation6 + $0xe0] sm:$0xff]
        %v302 = vld [vmem:[#allocation6 + $0xe8] sm:$0xff]
        %v303 = vld [vmem:[#allocation6 + $0xf0] sm:$0xff]
        %v304 = vld [vmem:[#allocation6 + $0xf8] sm:$0xff]
        %v312 = vunpack.c.l.b16 %v266
        %v313 = vunpack.c.l.b16 %v267
        %v314 = vunpack.c.l.b16 %v268
        %v315 = vunpack.c.l.b16 %v269
        %v316 = vunpack.c.l.b16 %v270
        %v317 = vunpack.c.l.b16 %v271
        %v318 = vunpack.c.l.b16 %v272
        %v319 = vpack.c.b16 %v313, %v312
        %v320 = vpack.c.b16 %v315, %v314
        %v321 = vpack.c.b16 %v317, %v316
        %v322 = vpack.c.b16 %v318, %v318
        %v359 = vunpack.c.l.b16 %v273
        %v360 = vunpack.c.h.b16 %v273
        %v361 = vunpack.c.l.b16 %v274
        %v362 = vunpack.c.h.b16 %v274
        %v363 = vunpack.c.l.b16 %v275
        %v364 = vunpack.c.h.b16 %v275
        %v365 = vunpack.c.l.b16 %v276
        %v366 = vunpack.c.h.b16 %v276
        %v367 = vunpack.c.l.b16 %v277
        %v368 = vunpack.c.h.b16 %v277
        %v369 = vunpack.c.l.b16 %v278
        %v370 = vunpack.c.h.b16 %v278
        %v371 = vunpack.c.l.b16 %v279
        %v372 = vunpack.c.h.b16 %v279
        %v373 = vunpack.c.l.b16 %v280
        %v374 = vunpack.c.h.b16 %v280
        %v375 = vunpack.c.l.b16 %v281
        %v376 = vunpack.c.h.b16 %v281
        %v377 = vunpack.c.l.b16 %v282
        %v378 = vunpack.c.h.b16 %v282
        %v379 = vunpack.c.l.b16 %v283
        %v380 = vunpack.c.h.b16 %v283
        %v381 = vunpack.c.l.b16 %v284
        %v382 = vunpack.c.h.b16 %v284
        %v383 = vunpack.c.l.b16 %v285
        %v384 = vunpack.c.h.b16 %v285
        %v385 = vunpack.c.l.b16 %v286
        %v386 = vunpack.c.h.b16 %v286
        %v387 = vunpack.c.l.b16 %v287
        %v388 = vunpack.c.h.b16 %v287
        %v389 = vunpack.c.l.b16 %v288
        %v390 = vunpack.c.h.b16 %v288
        %v391 = vunpack.c.l.b16 %v289
        %v392 = vunpack.c.h.b16 %v289
        %v393 = vunpack.c.l.b16 %v290
        %v394 = vunpack.c.h.b16 %v290
        %v395 = vunpack.c.l.b16 %v291
        %v396 = vunpack.c.h.b16 %v291
        %v397 = vunpack.c.l.b16 %v292
        %v398 = vunpack.c.h.b16 %v292
        %v399 = vunpack.c.l.b16 %v293
        %v400 = vunpack.c.h.b16 %v293
        %v401 = vunpack.c.l.b16 %v294
        %v402 = vunpack.c.h.b16 %v294
        %v403 = vunpack.c.l.b16 %v295
        %v404 = vunpack.c.h.b16 %v295
        %v405 = vunpack.c.l.b16 %v296
        %v406 = vunpack.c.h.b16 %v296
        %v407 = vunpack.c.l.b16 %v297
        %v408 = vunpack.c.h.b16 %v297
        %v409 = vunpack.c.l.b16 %v298
        %v410 = vunpack.c.h.b16 %v298
        %v411 = vunpack.c.l.b16 %v299
        %v412 = vunpack.c.h.b16 %v299
        %v413 = vunpack.c.l.b16 %v300
        %v414 = vunpack.c.h.b16 %v300
        %v415 = vunpack.c.l.b16 %v301
        %v416 = vunpack.c.h.b16 %v301
        %v417 = vunpack.c.l.b16 %v302
        %v418 = vunpack.c.h.b16 %v302
        %v419 = vunpack.c.l.b16 %v303
        %v420 = vunpack.c.h.b16 %v303
        %v421 = vunpack.c.l.b16 %v304
        %v422 = vunpack.c.h.b16 %v304
        %v423 = vpack.c.b16 %v363, %v359
        %v424 = vpack.c.b16 %v364, %v360
        %v425 = vpack.c.b16 %v365, %v361
        %v426 = vpack.c.b16 %v366, %v362
        %v427 = vpack.c.b16 %v371, %v367
        %v428 = vpack.c.b16 %v372, %v368
        %v429 = vpack.c.b16 %v373, %v369
        %v430 = vpack.c.b16 %v374, %v370
        %v431 = vpack.c.b16 %v379, %v375
        %v432 = vpack.c.b16 %v380, %v376
        %v433 = vpack.c.b16 %v381, %v377
        %v434 = vpack.c.b16 %v382, %v378
        %v435 = vpack.c.b16 %v387, %v383
        %v436 = vpack.c.b16 %v388, %v384
        %v437 = vpack.c.b16 %v389, %v385
        %v438 = vpack.c.b16 %v390, %v386
        %v439 = vpack.c.b16 %v395, %v391
        %v440 = vpack.c.b16 %v396, %v392
        %v441 = vpack.c.b16 %v397, %v393
        %v442 = vpack.c.b16 %v398, %v394
        %v443 = vpack.c.b16 %v403, %v399
        %v444 = vpack.c.b16 %v404, %v400
        %v445 = vpack.c.b16 %v405, %v401
        %v446 = vpack.c.b16 %v406, %v402
        %v447 = vpack.c.b16 %v411, %v407
        %v448 = vpack.c.b16 %v412, %v408
        %v449 = vpack.c.b16 %v413, %v409
        %v450 = vpack.c.b16 %v414, %v410
        %v451 = vpack.c.b16 %v419, %v415
        %v452 = vpack.c.b16 %v420, %v416
        %v453 = vpack.c.b16 %v421, %v417
        %v454 = vpack.c.b16 %v422, %v418
        %487 = vmatpush.bf16.msra.mxu0 %v451
        %488 = vmatpush.bf16.msra.mxu0 %v447
        %489 = vmatpush.bf16.msra.mxu0 %v443
        %490 = vmatpush.bf16.msra.mxu0 %v439
        %491 = vmatpush.bf16.msra.mxu0 %v435
        %492 = vmatpush.bf16.msra.mxu0 %v431
        %493 = vmatpush.bf16.msra.mxu0 %v427
        %494 = vmatpush.bf16.msra.mxu0 %v423
        %495 = vmatmul.bf16.gmra.mxu0 %v319
        %v496 = vpop.f32.mrf.mxu0
        %v497 = vadd.f32 0.0, %v496
        %v498 = vpop.f32.mrf.mxu0
        %v499 = vadd.f32 0.0, %v498
        %500 = vmatmul.bf16.gmra.mxu0 %v320
        %v501 = vpop.f32.mrf.mxu0
        %v502 = vadd.f32 0.0, %v501
        %v503 = vpop.f32.mrf.mxu0
        %v504 = vadd.f32 0.0, %v503
        %505 = vmatmul.bf16.gmra.mxu0 %v321
        %v506 = vpop.f32.mrf.mxu0
        %v507 = vadd.f32 0.0, %v506
        %v508 = vpop.f32.mrf.mxu0
        %v509 = vadd.f32 0.0, %v508
        %510 = vmatmul.bf16.gmra.mxu0 %v322
        %v511 = vpop.f32.mrf.mxu0
        %v512 = vadd.f32 0.0, %v511
        %v513 = vpop.f32.mrf.mxu0
        %514 = vdwg.mxu0
        %515 = vmatpush.bf16.msra.mxu0 %v452
        %516 = vmatpush.bf16.msra.mxu0 %v448
        %517 = vmatpush.bf16.msra.mxu0 %v444
        %518 = vmatpush.bf16.msra.mxu0 %v440
        %519 = vmatpush.bf16.msra.mxu0 %v436
        %520 = vmatpush.bf16.msra.mxu0 %v432
        %521 = vmatpush.bf16.msra.mxu0 %v428
        %522 = vmatpush.bf16.msra.mxu0 %v424
        %523 = vmatmul.bf16.gmra.mxu0 %v319
        %v524 = vpop.f32.mrf.mxu0
        %v525 = vadd.f32 0.0, %v524
        %v526 = vpop.f32.mrf.mxu0
        %v527 = vadd.f32 0.0, %v526
        %528 = vmatmul.bf16.gmra.mxu0 %v320
        %v529 = vpop.f32.mrf.mxu0
        %v530 = vadd.f32 0.0, %v529
        %v531 = vpop.f32.mrf.mxu0
        %v532 = vadd.f32 0.0, %v531
        %533 = vmatmul.bf16.gmra.mxu0 %v321
        %v534 = vpop.f32.mrf.mxu0
        %v535 = vadd.f32 0.0, %v534
        %v536 = vpop.f32.mrf.mxu0
        %v537 = vadd.f32 0.0, %v536
        %538 = vmatmul.bf16.gmra.mxu0 %v322
        %v539 = vpop.f32.mrf.mxu0
        %v540 = vadd.f32 0.0, %v539
        %v541 = vpop.f32.mrf.mxu0
        %542 = vdwg.mxu0
        %543 = vmatpush.bf16.msra.mxu0 %v453
        %544 = vmatpush.bf16.msra.mxu0 %v449
        %545 = vmatpush.bf16.msra.mxu0 %v445
        %546 = vmatpush.bf16.msra.mxu0 %v441
        %547 = vmatpush.bf16.msra.mxu0 %v437
        %548 = vmatpush.bf16.msra.mxu0 %v433
        %549 = vmatpush.bf16.msra.mxu0 %v429
        %550 = vmatpush.bf16.msra.mxu0 %v425
        %551 = vmatmul.bf16.gmra.mxu0 %v319
        %v552 = vpop.f32.mrf.mxu0
        %v553 = vadd.f32 0.0, %v552
        %v554 = vpop.f32.mrf.mxu0
        %v555 = vadd.f32 0.0, %v554
        %556 = vmatmul.bf16.gmra.mxu0 %v320
        %v557 = vpop.f32.mrf.mxu0
        %v558 = vadd.f32 0.0, %v557
        %v559 = vpop.f32.mrf.mxu0
        %v560 = vadd.f32 0.0, %v559
        %561 = vmatmul.bf16.gmra.mxu0 %v321
        %v562 = vpop.f32.mrf.mxu0
        %v563 = vadd.f32 0.0, %v562
        %v564 = vpop.f32.mrf.mxu0
        %v565 = vadd.f32 0.0, %v564
        %566 = vmatmul.bf16.gmra.mxu0 %v322
        %v567 = vpop.f32.mrf.mxu0
        %v568 = vadd.f32 0.0, %v567
        %v569 = vpop.f32.mrf.mxu0
        %570 = vdwg.mxu0
        %571 = vmatpush.bf16.msra.mxu0 %v454
        %572 = vmatpush.bf16.msra.mxu0 %v450
        %573 = vmatpush.bf16.msra.mxu0 %v446
        %574 = vmatpush.bf16.msra.mxu0 %v442
        %575 = vmatpush.bf16.msra.mxu0 %v438
        %576 = vmatpush.bf16.msra.mxu0 %v434
        %577 = vmatpush.bf16.msra.mxu0 %v430
        %578 = vmatpush.bf16.msra.mxu0 %v426
        %579 = vmatmul.bf16.gmra.mxu0 %v319
        %v580 = vpop.f32.mrf.mxu0
        %v581 = vadd.f32 0.0, %v580
        %v582 = vpop.f32.mrf.mxu0
        %v583 = vadd.f32 0.0, %v582
        %584 = vmatmul.bf16.gmra.mxu0 %v320
        %v585 = vpop.f32.mrf.mxu0
        %v586 = vadd.f32 0.0, %v585
        %v587 = vpop.f32.mrf.mxu0
        %v588 = vadd.f32 0.0, %v587
        %589 = vmatmul.bf16.gmra.mxu0 %v321
        %v590 = vpop.f32.mrf.mxu0
        %v591 = vadd.f32 0.0, %v590
        %v592 = vpop.f32.mrf.mxu0
        %v593 = vadd.f32 0.0, %v592
        %594 = vmatmul.bf16.gmra.mxu0 %v322
        %v595 = vpop.f32.mrf.mxu0
        %v596 = vadd.f32 0.0, %v595
        %v597 = vpop.f32.mrf.mxu0
        %598 = vdwg.mxu0
        %v599 = vpack.c.bf16 %v525, %v497
        %v600 = vpack.c.bf16 %v581, %v553
        %v601 = vpack.c.bf16 %v527, %v499
        %v602 = vpack.c.bf16 %v583, %v555
        %v603 = vpack.c.bf16 %v530, %v502
        %v604 = vpack.c.bf16 %v586, %v558
        %v605 = vpack.c.bf16 %v532, %v504
        %v606 = vpack.c.bf16 %v588, %v560
        %v607 = vpack.c.bf16 %v535, %v507
        %v608 = vpack.c.bf16 %v591, %v563
        %v609 = vpack.c.bf16 %v537, %v509
        %v610 = vpack.c.bf16 %v593, %v565
        %v611 = vpack.c.bf16 %v540, %v512
        %v612 = vpack.c.bf16 %v596, %v568
        %613 = vst [vmem:[#allocation2] sm:$0xff] %v599
        %614 = vst [vmem:[#allocation2 + $0x8] sm:$0xff] %v600
        %615 = vst [vmem:[#allocation2 + $0x10] sm:$0xff] %v601
        %616 = vst [vmem:[#allocation2 + $0x18] sm:$0xff] %v602
        %617 = vst [vmem:[#allocation2 + $0x20] sm:$0xff] %v603
        %618 = vst [vmem:[#allocation2 + $0x28] sm:$0xff] %v604
        %619 = vst [vmem:[#allocation2 + $0x30] sm:$0xff] %v605
        %620 = vst [vmem:[#allocation2 + $0x38] sm:$0xff] %v606
        %621 = vst [vmem:[#allocation2 + $0x40] sm:$0xff] %v607
        %622 = vst [vmem:[#allocation2 + $0x48] sm:$0xff] %v608
        %623 = vst [vmem:[#allocation2 + $0x50] sm:$0xff] %v609
        %624 = vst [vmem:[#allocation2 + $0x58] sm:$0xff] %v610
        %625 = vst [vmem:[#allocation2 + $0x60] sm:$0xff] %v611
        %626 = vst [vmem:[#allocation2 + $0x68] sm:$0xff] %v612
        %v627 = vld [vmem:[#allocation9] sm:$0xf]
        %v628 = vld [vmem:[#allocation2] sm:$0xff]
        %v629 = vld [vmem:[#allocation2 + $0x8] sm:$0xff]
        %v630 = vunpack.c.l.bf16 %v628
        %v631 = vunpack.c.h.bf16 %v628
        %v632 = vunpack.c.l.bf16 %v629
        %v633 = vunpack.c.h.bf16 %v629
        %v635 = vperm.slane %v627, 0
        %v636 = vperm.slane %v627, 1
        %v637 = vperm.slane %v627, 2
        %v638 = vperm.slane %v627, 3
        %v643 = vadd.f32 %v630, %v635
        %v644 = vadd.f32 %v631, %v636
        %v645 = vadd.f32 %v632, %v637
        %v646 = vadd.f32 %v633, %v638
        %v647 = vld [vmem:[#allocation8] sm:$0xff]
        %v648 = vld [vmem:[#allocation8 + $0x8] sm:$0xff]
        %v649 = vld [vmem:[#allocation8 + $0x10] sm:$0xff]
        %v650 = vld [vmem:[#allocation8 + $0x18] sm:$0xff]
        %v651 = vld [vmem:[#allocation8 + $0x20] sm:$0xff]
        %v652 = vld [vmem:[#allocation8 + $0x28] sm:$0xff]
        %v653 = vld [vmem:[#allocation8 + $0x30] sm:$0xff]
        %v654 = vld [vmem:[#allocation8 + $0x38] sm:$0xff]
        %v655 = vld [vmem:[#allocation8 + $0x40] sm:$0xff]
        %v656 = vld [vmem:[#allocation8 + $0x48] sm:$0xff]
        %v657 = vld [vmem:[#allocation8 + $0x50] sm:$0xff]
        %v658 = vld [vmem:[#allocation8 + $0x58] sm:$0xff]
        %v659 = vld [vmem:[#allocation8 + $0x60] sm:$0xff]
        %v660 = vld [vmem:[#allocation8 + $0x68] sm:$0xff]
        %v661 = vld [vmem:[#allocation8 + $0x70] sm:$0xff]
        %v662 = vld [vmem:[#allocation8 + $0x78] sm:$0xff]
        %v663 = vld [vmem:[#allocation8 + $0x80] sm:$0xff]
        %v664 = vld [vmem:[#allocation8 + $0x88] sm:$0xff]
        %v665 = vld [vmem:[#allocation8 + $0x90] sm:$0xff]
        %v666 = vld [vmem:[#allocation8 + $0x98] sm:$0xff]
        %v667 = vld [vmem:[#allocation8 + $0xa0] sm:$0xff]
        %v668 = vld [vmem:[#allocation8 + $0xa8] sm:$0xff]
        %v669 = vld [vmem:[#allocation8 + $0xb0] sm:$0xff]
        %v670 = vld [vmem:[#allocation8 + $0xb8] sm:$0xff]
        %v671 = vld [vmem:[#allocation8 + $0xc0] sm:$0xff]
        %v672 = vld [vmem:[#allocation8 + $0xc8] sm:$0xff]
        %v673 = vld [vmem:[#allocation8 + $0xd0] sm:$0xff]
        %v674 = vld [vmem:[#allocation8 + $0xd8] sm:$0xff]
        %v675 = vld [vmem:[#allocation8 + $0xe0] sm:$0xff]
        %v676 = vld [vmem:[#allocation8 + $0xe8] sm:$0xff]
        %v677 = vld [vmem:[#allocation8 + $0xf0] sm:$0xff]
        %v678 = vld [vmem:[#allocation8 + $0xf8] sm:$0xff]
        %v711 = vunpack.c.l.b16 %v647
        %v712 = vunpack.c.h.b16 %v647
        %v713 = vunpack.c.l.b16 %v648
        %v714 = vunpack.c.h.b16 %v648
        %v715 = vunpack.c.l.b16 %v649
        %v716 = vunpack.c.h.b16 %v649
        %v717 = vunpack.c.l.b16 %v650
        %v718 = vunpack.c.h.b16 %v650
        %v719 = vunpack.c.l.b16 %v651
        %v720 = vunpack.c.h.b16 %v651
        %v721 = vunpack.c.l.b16 %v652
        %v722 = vunpack.c.h.b16 %v652
        %v723 = vunpack.c.l.b16 %v653
        %v724 = vunpack.c.h.b16 %v653
        %v725 = vunpack.c.l.b16 %v654
        %v726 = vunpack.c.h.b16 %v654
        %v727 = vunpack.c.l.b16 %v655
        %v728 = vunpack.c.h.b16 %v655
        %v729 = vunpack.c.l.b16 %v656
        %v730 = vunpack.c.h.b16 %v656
        %v731 = vunpack.c.l.b16 %v657
        %v732 = vunpack.c.h.b16 %v657
        %v733 = vunpack.c.l.b16 %v658
        %v734 = vunpack.c.h.b16 %v658
        %v735 = vunpack.c.l.b16 %v659
        %v736 = vunpack.c.h.b16 %v659
        %v737 = vunpack.c.l.b16 %v660
        %v738 = vunpack.c.h.b16 %v660
        %v739 = vunpack.c.l.b16 %v661
        %v740 = vunpack.c.h.b16 %v661
        %v741 = vunpack.c.l.b16 %v662
        %v742 = vunpack.c.h.b16 %v662
        %v743 = vunpack.c.l.b16 %v663
        %v744 = vunpack.c.h.b16 %v663
        %v745 = vunpack.c.l.b16 %v664
        %v746 = vunpack.c.h.b16 %v664
        %v747 = vunpack.c.l.b16 %v665
        %v748 = vunpack.c.h.b16 %v665
        %v749 = vunpack.c.l.b16 %v666
        %v750 = vunpack.c.h.b16 %v666
        %v751 = vunpack.c.l.b16 %v667
        %v752 = vunpack.c.h.b16 %v667
        %v753 = vunpack.c.l.b16 %v668
        %v754 = vunpack.c.h.b16 %v668
        %v755 = vunpack.c.l.b16 %v669
        %v756 = vunpack.c.h.b16 %v669
        %v757 = vunpack.c.l.b16 %v670
        %v758 = vunpack.c.h.b16 %v670
        %v759 = vunpack.c.l.b16 %v671
        %v760 = vunpack.c.h.b16 %v671
        %v761 = vunpack.c.l.b16 %v672
        %v762 = vunpack.c.h.b16 %v672
        %v763 = vunpack.c.l.b16 %v673
        %v764 = vunpack.c.h.b16 %v673
        %v765 = vunpack.c.l.b16 %v674
        %v766 = vunpack.c.h.b16 %v674
        %v767 = vunpack.c.l.b16 %v675
        %v768 = vunpack.c.h.b16 %v675
        %v769 = vunpack.c.l.b16 %v676
        %v770 = vunpack.c.h.b16 %v676
        %v771 = vunpack.c.l.b16 %v677
        %v772 = vunpack.c.h.b16 %v677
        %v773 = vunpack.c.l.b16 %v678
        %v774 = vunpack.c.h.b16 %v678
        %v775 = vpack.c.b16 %v715, %v711
        %v776 = vpack.c.b16 %v716, %v712
        %v777 = vpack.c.b16 %v717, %v713
        %v778 = vpack.c.b16 %v718, %v714
        %v779 = vpack.c.b16 %v723, %v719
        %v780 = vpack.c.b16 %v724, %v720
        %v781 = vpack.c.b16 %v725, %v721
        %v782 = vpack.c.b16 %v726, %v722
        %v783 = vpack.c.b16 %v731, %v727
        %v784 = vpack.c.b16 %v732, %v728
        %v785 = vpack.c.b16 %v733, %v729
        %v786 = vpack.c.b16 %v734, %v730
        %v787 = vpack.c.b16 %v739, %v735
        %v788 = vpack.c.b16 %v740, %v736
        %v789 = vpack.c.b16 %v741, %v737
        %v790 = vpack.c.b16 %v742, %v738
        %v791 = vpack.c.b16 %v747, %v743
        %v792 = vpack.c.b16 %v748, %v744
        %v793 = vpack.c.b16 %v749, %v745
        %v794 = vpack.c.b16 %v750, %v746
        %v795 = vpack.c.b16 %v755, %v751
        %v796 = vpack.c.b16 %v756, %v752
        %v797 = vpack.c.b16 %v757, %v753
        %v798 = vpack.c.b16 %v758, %v754
        %v799 = vpack.c.b16 %v763, %v759
        %v800 = vpack.c.b16 %v764, %v760
        %v801 = vpack.c.b16 %v765, %v761
        %v802 = vpack.c.b16 %v766, %v762
        %v803 = vpack.c.b16 %v771, %v767
        %v804 = vpack.c.b16 %v772, %v768
        %v805 = vpack.c.b16 %v773, %v769
        %v806 = vpack.c.b16 %v774, %v770
        %839 = vmatpush.bf16.msra.mxu0 %v803
        %840 = vmatpush.bf16.msra.mxu0 %v799
        %841 = vmatpush.bf16.msra.mxu0 %v795
        %842 = vmatpush.bf16.msra.mxu0 %v791
        %843 = vmatpush.bf16.msra.mxu0 %v787
        %844 = vmatpush.bf16.msra.mxu0 %v783
        %845 = vmatpush.bf16.msra.mxu0 %v779
        %846 = vmatpush.bf16.msra.mxu0 %v775
        %847 = vmatmul.bf16.gmra.mxu0 0
        %v848 = vpop.f32.mrf.mxu0
        %v849 = vadd.f32 0.0, %v848
        %v850 = vpop.f32.mrf.mxu0
        %851 = vdwg.mxu0
        %852 = vmatpush.bf16.msra.mxu0 %v804
        %853 = vmatpush.bf16.msra.mxu0 %v800
        %854 = vmatpush.bf16.msra.mxu0 %v796
        %855 = vmatpush.bf16.msra.mxu0 %v792
        %856 = vmatpush.bf16.msra.mxu0 %v788
        %857 = vmatpush.bf16.msra.mxu0 %v784
        %858 = vmatpush.bf16.msra.mxu0 %v780
        %859 = vmatpush.bf16.msra.mxu0 %v776
        %860 = vmatmul.bf16.gmra.mxu0 0
        %v861 = vpop.f32.mrf.mxu0
        %v862 = vadd.f32 0.0, %v861
        %v863 = vpop.f32.mrf.mxu0
        %864 = vdwg.mxu0
        %865 = vmatpush.bf16.msra.mxu0 %v805
        %866 = vmatpush.bf16.msra.mxu0 %v801
        %867 = vmatpush.bf16.msra.mxu0 %v797
        %868 = vmatpush.bf16.msra.mxu0 %v793
        %869 = vmatpush.bf16.msra.mxu0 %v789
        %870 = vmatpush.bf16.msra.mxu0 %v785
        %871 = vmatpush.bf16.msra.mxu0 %v781
        %872 = vmatpush.bf16.msra.mxu0 %v777
        %873 = vmatmul.bf16.gmra.mxu0 0
        %v874 = vpop.f32.mrf.mxu0
        %v875 = vadd.f32 0.0, %v874
        %v876 = vpop.f32.mrf.mxu0
        %877 = vdwg.mxu0
        %878 = vmatpush.bf16.msra.mxu0 %v806
        %879 = vmatpush.bf16.msra.mxu0 %v802
        %880 = vmatpush.bf16.msra.mxu0 %v798
        %881 = vmatpush.bf16.msra.mxu0 %v794
        %882 = vmatpush.bf16.msra.mxu0 %v790
        %883 = vmatpush.bf16.msra.mxu0 %v786
        %884 = vmatpush.bf16.msra.mxu0 %v782
        %885 = vmatpush.bf16.msra.mxu0 %v778
        %886 = vmatmul.bf16.gmra.mxu0 0
        %v887 = vpop.f32.mrf.mxu0
        %v888 = vadd.f32 0.0, %v887
        %v889 = vpop.f32.mrf.mxu0
        %890 = vdwg.mxu0
        %v891 = vadd.f32 %v643, %v849
        %v892 = vadd.f32 %v644, %v862
        %v893 = vadd.f32 %v645, %v875
        %v894 = vadd.f32 %v646, %v888
        %v895 = vxor.u32 %v891, 2147483648
        %v896 = vxor.u32 %v892, 2147483648
        %v897 = vxor.u32 %v893, 2147483648
        %v898 = vmul.f32 %v895, 1.442695
        %v899 = vpow.pop %v898
        %v900 = vmul.f32 %v896, 1.442695
        %v901 = vpow.pop %v900
        %v902 = vmul.f32 %v897, 1.442695
        %v903 = vpow.pop %v902
        %v904 = vadd.f32 %v899, 1.0
        %v905 = vadd.f32 %v901, 1.0
        %v906 = vadd.f32 %v903, 1.0
        %v907 = vrcp.pop %v904
        %v908 = vmul.f32 %v904, %v907
        %v909 = vsub.f32 1.0, %v908
        %v910 = vmul.f32 %v907, %v909
        %v911 = vadd.f32 %v907, %v910
        %vm912 = vweird.f32 %v904
        %vm913 = vweird.f32 %v907
        %vm914 = vmor %vm912, %vm913
        %v915 = vsel %vm914, %v907, %v911
        %v916 = vand.u32 2147483647, %v904
        %vm917 = vcmp.eq.f32.partialorder %v916, 8.507059e+37
        %v918 = vand.u32 %v904, 2147483648
        %v919 = vor.u32 1.1754944e-38, %v918
        %v920 = vsel %vm917, %v919, %v915
        %v921 = vmul.f32 1.0, %v920
        %v922 = vrcp.pop %v905
        %v923 = vmul.f32 %v905, %v922
        %v924 = vsub.f32 1.0, %v923
        %v925 = vmul.f32 %v922, %v924
        %v926 = vadd.f32 %v922, %v925
        %vm927 = vweird.f32 %v905
        %vm928 = vweird.f32 %v922
        %vm929 = vmor %vm927, %vm928
        %v930 = vsel %vm929, %v922, %v926
        %v931 = vand.u32 2147483647, %v905
        %vm932 = vcmp.eq.f32.partialorder %v931, 8.507059e+37
        %v933 = vand.u32 %v905, 2147483648
        %v934 = vor.u32 1.1754944e-38, %v933
        %v935 = vsel %vm932, %v934, %v930
        %v936 = vmul.f32 1.0, %v935
        %v937 = vrcp.pop %v906
        %v938 = vmul.f32 %v906, %v937
        %v939 = vsub.f32 1.0, %v938
        %v940 = vmul.f32 %v937, %v939
        %v941 = vadd.f32 %v937, %v940
        %vm942 = vweird.f32 %v906
        %vm943 = vweird.f32 %v937
        %vm944 = vmor %vm942, %vm943
        %v945 = vsel %vm944, %v937, %v941
        %v946 = vand.u32 2147483647, %v906
        %vm947 = vcmp.eq.f32.partialorder %v946, 8.507059e+37
        %v948 = vand.u32 %v906, 2147483648
        %v949 = vor.u32 1.1754944e-38, %v948
        %v950 = vsel %vm947, %v949, %v945
        %v951 = vmul.f32 1.0, %v950
        %v952 = vtanh.pop %v894
        %v953 = vmul.f32 %v936, 0.0
        %v954 = vmul.f32 %v921, %v952
        %v955 = vadd.f32 %v953, %v954
        %v956 = vtanh.pop %v955
        %v957 = vmul.f32 %v951, %v956
        %v958 = vpack.c.bf16 %v957, %v957
        %959 = vst [vmem:[%s264] sm:$0xf] %v958
        %s960 = scalar_lea.vmem [#allocation2], 16
        %v961 = vld [vmem:[%s960] sm:$0xff]
        %v962 = vld [vmem:[%s960 + $0x8] sm:$0xff]
        %v963 = vunpack.c.l.bf16 %v961
        %v964 = vunpack.c.h.bf16 %v961
        %v965 = vunpack.c.l.bf16 %v962
        %v966 = vunpack.c.h.bf16 %v962
        %v967 = vadd.f32 %v963, %v635
        %v968 = vadd.f32 %v964, %v636
        %v969 = vadd.f32 %v965, %v637
        %v970 = vadd.f32 %v966, %v638
        %v971 = vld [vmem:[#allocation8] sm:$0xff]
        %v972 = vld [vmem:[#allocation8 + $0x8] sm:$0xff]
        %v973 = vld [vmem:[#allocation8 + $0x10] sm:$0xff]
        %v974 = vld [vmem:[#allocation8 + $0x18] sm:$0xff]
        %v975 = vld [vmem:[#allocation8 + $0x20] sm:$0xff]
        %v976 = vld [vmem:[#allocation8 + $0x28] sm:$0xff]
        %v977 = vld [vmem:[#allocation8 + $0x30] sm:$0xff]
        %v978 = vld [vmem:[#allocation8 + $0x38] sm:$0xff]
        %v979 = vld [vmem:[#allocation8 + $0x40] sm:$0xff]
        %v980 = vld [vmem:[#allocation8 + $0x48] sm:$0xff]
        %v981 = vld [vmem:[#allocation8 + $0x50] sm:$0xff]
        %v982 = vld [vmem:[#allocation8 + $0x58] sm:$0xff]
        %v983 = vld [vmem:[#allocation8 + $0x60] sm:$0xff]
        %v984 = vld [vmem:[#allocation8 + $0x68] sm:$0xff]
        %v985 = vld [vmem:[#allocation8 + $0x70] sm:$0xff]
        %v986 = vld [vmem:[#allocation8 + $0x78] sm:$0xff]
        %v987 = vld [vmem:[#allocation8 + $0x80] sm:$0xff]
        %v988 = vld [vmem:[#allocation8 + $0x88] sm:$0xff]
        %v989 = vld [vmem:[#allocation8 + $0x90] sm:$0xff]
        %v990 = vld [vmem:[#allocation8 + $0x98] sm:$0xff]
        %v991 = vld [vmem:[#allocation8 + $0xa0] sm:$0xff]
        %v992 = vld [vmem:[#allocation8 + $0xa8] sm:$0xff]
        %v993 = vld [vmem:[#allocation8 + $0xb0] sm:$0xff]
        %v994 = vld [vmem:[#allocation8 + $0xb8] sm:$0xff]
        %v995 = vld [vmem:[#allocation8 + $0xc0] sm:$0xff]
        %v996 = vld [vmem:[#allocation8 + $0xc8] sm:$0xff]
        %v997 = vld [vmem:[#allocation8 + $0xd0] sm:$0xff]
        %v998 = vld [vmem:[#allocation8 + $0xd8] sm:$0xff]
        %v999 = vld [vmem:[#allocation8 + $0xe0] sm:$0xff]
        %v1000 = vld [vmem:[#allocation8 + $0xe8] sm:$0xff]
        %v1001 = vld [vmem:[#allocation8 + $0xf0] sm:$0xff]
        %v1002 = vld [vmem:[#allocation8 + $0xf8] sm:$0xff]
        %v1035 = vunpack.c.l.b16 %v971
        %v1036 = vunpack.c.h.b16 %v971
        %v1037 = vunpack.c.l.b16 %v972
        %v1038 = vunpack.c.h.b16 %v972
        %v1039 = vunpack.c.l.b16 %v973
        %v1040 = vunpack.c.h.b16 %v973
        %v1041 = vunpack.c.l.b16 %v974
        %v1042 = vunpack.c.h.b16 %v974
        %v1043 = vunpack.c.l.b16 %v975
        %v1044 = vunpack.c.h.b16 %v975
        %v1045 = vunpack.c.l.b16 %v976
        %v1046 = vunpack.c.h.b16 %v976
        %v1047 = vunpack.c.l.b16 %v977
        %v1048 = vunpack.c.h.b16 %v977
        %v1049 = vunpack.c.l.b16 %v978
        %v1050 = vunpack.c.h.b16 %v978
        %v1051 = vunpack.c.l.b16 %v979
        %v1052 = vunpack.c.h.b16 %v979
        %v1053 = vunpack.c.l.b16 %v980
        %v1054 = vunpack.c.h.b16 %v980
        %v1055 = vunpack.c.l.b16 %v981
        %v1056 = vunpack.c.h.b16 %v981
        %v1057 = vunpack.c.l.b16 %v982
        %v1058 = vunpack.c.h.b16 %v982
        %v1059 = vunpack.c.l.b16 %v983
        %v1060 = vunpack.c.h.b16 %v983
        %v1061 = vunpack.c.l.b16 %v984
        %v1062 = vunpack.c.h.b16 %v984
        %v1063 = vunpack.c.l.b16 %v985
        %v1064 = vunpack.c.h.b16 %v985
        %v1065 = vunpack.c.l.b16 %v986
        %v1066 = vunpack.c.h.b16 %v986
        %v1067 = vunpack.c.l.b16 %v987
        %v1068 = vunpack.c.h.b16 %v987
        %v1069 = vunpack.c.l.b16 %v988
        %v1070 = vunpack.c.h.b16 %v988
        %v1071 = vunpack.c.l.b16 %v989
        %v1072 = vunpack.c.h.b16 %v989
        %v1073 = vunpack.c.l.b16 %v990
        %v1074 = vunpack.c.h.b16 %v990
        %v1075 = vunpack.c.l.b16 %v991
        %v1076 = vunpack.c.h.b16 %v991
        %v1077 = vunpack.c.l.b16 %v992
        %v1078 = vunpack.c.h.b16 %v992
        %v1079 = vunpack.c.l.b16 %v993
        %v1080 = vunpack.c.h.b16 %v993
        %v1081 = vunpack.c.l.b16 %v994
        %v1082 = vunpack.c.h.b16 %v994
        %v1083 = vunpack.c.l.b16 %v995
        %v1084 = vunpack.c.h.b16 %v995
        %v1085 = vunpack.c.l.b16 %v996
        %v1086 = vunpack.c.h.b16 %v996
        %v1087 = vunpack.c.l.b16 %v997
        %v1088 = vunpack.c.h.b16 %v997
        %v1089 = vunpack.c.l.b16 %v998
        %v1090 = vunpack.c.h.b16 %v998
        %v1091 = vunpack.c.l.b16 %v999
        %v1092 = vunpack.c.h.b16 %v999
        %v1093 = vunpack.c.l.b16 %v1000
        %v1094 = vunpack.c.h.b16 %v1000
        %v1095 = vunpack.c.l.b16 %v1001
        %v1096 = vunpack.c.h.b16 %v1001
        %v1097 = vunpack.c.l.b16 %v1002
        %v1098 = vunpack.c.h.b16 %v1002
        %v1099 = vpack.c.b16 %v1039, %v1035
        %v1100 = vpack.c.b16 %v1040, %v1036
        %v1101 = vpack.c.b16 %v1041, %v1037
        %v1102 = vpack.c.b16 %v1042, %v1038
        %v1103 = vpack.c.b16 %v1047, %v1043
        %v1104 = vpack.c.b16 %v1048, %v1044
        %v1105 = vpack.c.b16 %v1049, %v1045
        %v1106 = vpack.c.b16 %v1050, %v1046
        %v1107 = vpack.c.b16 %v1055, %v1051
        %v1108 = vpack.c.b16 %v1056, %v1052
        %v1109 = vpack.c.b16 %v1057, %v1053
        %v1110 = vpack.c.b16 %v1058, %v1054
        %v1111 = vpack.c.b16 %v1063, %v1059
        %v1112 = vpack.c.b16 %v1064, %v1060
        %v1113 = vpack.c.b16 %v1065, %v1061
        %v1114 = vpack.c.b16 %v1066, %v1062
        %v1115 = vpack.c.b16 %v1071, %v1067
        %v1116 = vpack.c.b16 %v1072, %v1068
        %v1117 = vpack.c.b16 %v1073, %v1069
        %v1118 = vpack.c.b16 %v1074, %v1070
        %v1119 = vpack.c.b16 %v1079, %v1075
        %v1120 = vpack.c.b16 %v1080, %v1076
        %v1121 = vpack.c.b16 %v1081, %v1077
        %v1122 = vpack.c.b16 %v1082, %v1078
        %v1123 = vpack.c.b16 %v1087, %v1083
        %v1124 = vpack.c.b16 %v1088, %v1084
        %v1125 = vpack.c.b16 %v1089, %v1085
        %v1126 = vpack.c.b16 %v1090, %v1086
        %v1127 = vpack.c.b16 %v1095, %v1091
        %v1128 = vpack.c.b16 %v1096, %v1092
        %v1129 = vpack.c.b16 %v1097, %v1093
        %v1130 = vpack.c.b16 %v1098, %v1094
        %1163 = vmatpush.bf16.msra.mxu0 %v1127
        %1164 = vmatpush.bf16.msra.mxu0 %v1123
        %1165 = vmatpush.bf16.msra.mxu0 %v1119
        %1166 = vmatpush.bf16.msra.mxu0 %v1115
        %1167 = vmatpush.bf16.msra.mxu0 %v1111
        %1168 = vmatpush.bf16.msra.mxu0 %v1107
        %1169 = vmatpush.bf16.msra.mxu0 %v1103
        %1170 = vmatpush.bf16.msra.mxu0 %v1099
        %1171 = vmatmul.bf16.gmra.mxu0 %v958
        %v1172 = vpop.f32.mrf.mxu0
        %v1173 = vadd.f32 0.0, %v1172
        %v1174 = vpop.f32.mrf.mxu0
        %1175 = vdwg.mxu0
        %1176 = vmatpush.bf16.msra.mxu0 %v1128
        %1177 = vmatpush.bf16.msra.mxu0 %v1124
        %1178 = vmatpush.bf16.msra.mxu0 %v1120
        %1179 = vmatpush.bf16.msra.mxu0 %v1116
        %1180 = vmatpush.bf16.msra.mxu0 %v1112
        %1181 = vmatpush.bf16.msra.mxu0 %v1108
        %1182 = vmatpush.bf16.msra.mxu0 %v1104
        %1183 = vmatpush.bf16.msra.mxu0 %v1100
        %1184 = vmatmul.bf16.gmra.mxu0 %v958
        %v1185 = vpop.f32.mrf.mxu0
        %v1186 = vadd.f32 0.0, %v1185
        %v1187 = vpop.f32.mrf.mxu0
        %1188 = vdwg.mxu0
        %1189 = vmatpush.bf16.msra.mxu0 %v1129
        %1190 = vmatpush.bf16.msra.mxu0 %v1125
        %1191 = vmatpush.bf16.msra.mxu0 %v1121
        %1192 = vmatpush.bf16.msra.mxu0 %v1117
        %1193 = vmatpush.bf16.msra.mxu0 %v1113
        %1194 = vmatpush.bf16.msra.mxu0 %v1109
        %1195 = vmatpush.bf16.msra.mxu0 %v1105
        %1196 = vmatpush.bf16.msra.mxu0 %v1101
        %1197 = vmatmul.bf16.gmra.mxu0 %v958
        %v1198 = vpop.f32.mrf.mxu0
        %v1199 = vadd.f32 0.0, %v1198
        %v1200 = vpop.f32.mrf.mxu0
        %1201 = vdwg.mxu0
        %1202 = vmatpush.bf16.msra.mxu0 %v1130
        %1203 = vmatpush.bf16.msra.mxu0 %v1126
        %1204 = vmatpush.bf16.msra.mxu0 %v1122
        %1205 = vmatpush.bf16.msra.mxu0 %v1118
        %1206 = vmatpush.bf16.msra.mxu0 %v1114
        %1207 = vmatpush.bf16.msra.mxu0 %v1110
        %1208 = vmatpush.bf16.msra.mxu0 %v1106
        %1209 = vmatpush.bf16.msra.mxu0 %v1102
        %1210 = vmatmul.bf16.gmra.mxu0 %v958
        %v1211 = vpop.f32.mrf.mxu0
        %v1212 = vadd.f32 0.0, %v1211
        %v1213 = vpop.f32.mrf.mxu0
        %1214 = vdwg.mxu0
        %v1215 = vadd.f32 %v967, %v1173
        %v1216 = vadd.f32 %v968, %v1186
        %v1217 = vadd.f32 %v969, %v1199
        %v1218 = vadd.f32 %v970, %v1212
        %v1219 = vxor.u32 %v1215, 2147483648
        %v1220 = vxor.u32 %v1216, 2147483648
        %v1221 = vxor.u32 %v1217, 2147483648
        %v1222 = vmul.f32 %v1219, 1.442695
        %v1223 = vpow.pop %v1222
        %v1224 = vmul.f32 %v1220, 1.442695
        %v1225 = vpow.pop %v1224
        %v1226 = vmul.f32 %v1221, 1.442695
        %v1227 = vpow.pop %v1226
        %v1228 = vadd.f32 %v1223, 1.0
        %v1229 = vadd.f32 %v1225, 1.0
        %v1230 = vadd.f32 %v1227, 1.0
        %v1231 = vrcp.pop %v1228
        %v1232 = vmul.f32 %v1228, %v1231
        %v1233 = vsub.f32 1.0, %v1232
        %v1234 = vmul.f32 %v1231, %v1233
        %v1235 = vadd.f32 %v1231, %v1234
        %vm1236 = vweird.f32 %v1228
        %vm1237 = vweird.f32 %v1231
        %vm1238 = vmor %vm1236, %vm1237
        %v1239 = vsel %vm1238, %v1231, %v1235
        %v1240 = vand.u32 2147483647, %v1228
        %vm1241 = vcmp.eq.f32.partialorder %v1240, 8.507059e+37
        %v1242 = vand.u32 %v1228, 2147483648
        %v1243 = vor.u32 1.1754944e-38, %v1242
        %v1244 = vsel %vm1241, %v1243, %v1239
        %v1245 = vmul.f32 1.0, %v1244
        %v1246 = vrcp.pop %v1229
        %v1247 = vmul.f32 %v1229, %v1246
        %v1248 = vsub.f32 1.0, %v1247
        %v1249 = vmul.f32 %v1246, %v1248
        %v1250 = vadd.f32 %v1246, %v1249
        %vm1251 = vweird.f32 %v1229
        %vm1252 = vweird.f32 %v1246
        %vm1253 = vmor %vm1251, %vm1252
        %v1254 = vsel %vm1253, %v1246, %v1250
        %v1255 = vand.u32 2147483647, %v1229
        %vm1256 = vcmp.eq.f32.partialorder %v1255, 8.507059e+37
        %v1257 = vand.u32 %v1229, 2147483648
        %v1258 = vor.u32 1.1754944e-38, %v1257
        %v1259 = vsel %vm1256, %v1258, %v1254
        %v1260 = vmul.f32 1.0, %v1259
        %v1261 = vrcp.pop %v1230
        %v1262 = vmul.f32 %v1230, %v1261
        %v1263 = vsub.f32 1.0, %v1262
        %v1264 = vmul.f32 %v1261, %v1263
        %v1265 = vadd.f32 %v1261, %v1264
        %vm1266 = vweird.f32 %v1230
        %vm1267 = vweird.f32 %v1261
        %vm1268 = vmor %vm1266, %vm1267
        %v1269 = vsel %vm1268, %v1261, %v1265
        %v1270 = vand.u32 2147483647, %v1230
        %vm1271 = vcmp.eq.f32.partialorder %v1270, 8.507059e+37
        %v1272 = vand.u32 %v1230, 2147483648
        %v1273 = vor.u32 1.1754944e-38, %v1272
        %v1274 = vsel %vm1271, %v1273, %v1269
        %v1275 = vmul.f32 1.0, %v1274
        %v1276 = vtanh.pop %v1218
        %v1277 = vmul.f32 %v1260, %v955
        %v1278 = vmul.f32 %v1245, %v1276
        %v1279 = vadd.f32 %v1277, %v1278
        %v1280 = vtanh.pop %v1279
        %v1281 = vmul.f32 %v1275, %v1280
        %v1282 = vpack.c.bf16 %v1281, %v1281
        %s1283 = scalar_lea.vmem %s264, 4 [#allocation11]
        %1284 = vst [vmem:[%s1283] sm:$0xf] %v1282
        %s1285 = scalar_lea.vmem [#allocation2], 32
        %v1286 = vld [vmem:[%s1285] sm:$0xff]
        %v1287 = vld [vmem:[%s1285 + $0x8] sm:$0xff]
        %v1288 = vunpack.c.l.bf16 %v1286
        %v1289 = vunpack.c.h.bf16 %v1286
        %v1290 = vunpack.c.l.bf16 %v1287
        %v1291 = vunpack.c.h.bf16 %v1287
        %v1292 = vadd.f32 %v1288, %v635
        %v1293 = vadd.f32 %v1289, %v636
        %v1294 = vadd.f32 %v1290, %v637
        %v1295 = vadd.f32 %v1291, %v638
        %v1296 = vld [vmem:[#allocation8] sm:$0xff]
        %v1297 = vld [vmem:[#allocation8 + $0x8] sm:$0xff]
        %v1298 = vld [vmem:[#allocation8 + $0x10] sm:$0xff]
        %v1299 = vld [vmem:[#allocation8 + $0x18] sm:$0xff]
        %v1300 = vld [vmem:[#allocation8 + $0x20] sm:$0xff]
        %v1301 = vld [vmem:[#allocation8 + $0x28] sm:$0xff]
        %v1302 = vld [vmem:[#allocation8 + $0x30] sm:$0xff]
        %v1303 = vld [vmem:[#allocation8 + $0x38] sm:$0xff]
        %v1304 = vld [vmem:[#allocation8 + $0x40] sm:$0xff]
        %v1305 = vld [vmem:[#allocation8 + $0x48] sm:$0xff]
        %v1306 = vld [vmem:[#allocation8 + $0x50] sm:$0xff]
        %v1307 = vld [vmem:[#allocation8 + $0x58] sm:$0xff]
        %v1308 = vld [vmem:[#allocation8 + $0x60] sm:$0xff]
        %v1309 = vld [vmem:[#allocation8 + $0x68] sm:$0xff]
        %v1310 = vld [vmem:[#allocation8 + $0x70] sm:$0xff]
        %v1311 = vld [vmem:[#allocation8 + $0x78] sm:$0xff]
        %v1312 = vld [vmem:[#allocation8 + $0x80] sm:$0xff]
        %v1313 = vld [vmem:[#allocation8 + $0x88] sm:$0xff]
        %v1314 = vld [vmem:[#allocation8 + $0x90] sm:$0xff]
        %v1315 = vld [vmem:[#allocation8 + $0x98] sm:$0xff]
        %v1316 = vld [vmem:[#allocation8 + $0xa0] sm:$0xff]
        %v1317 = vld [vmem:[#allocation8 + $0xa8] sm:$0xff]
        %v1318 = vld [vmem:[#allocation8 + $0xb0] sm:$0xff]
        %v1319 = vld [vmem:[#allocation8 + $0xb8] sm:$0xff]
        %v1320 = vld [vmem:[#allocation8 + $0xc0] sm:$0xff]
        %v1321 = vld [vmem:[#allocation8 + $0xc8] sm:$0xff]
        %v1322 = vld [vmem:[#allocation8 + $0xd0] sm:$0xff]
        %v1323 = vld [vmem:[#allocation8 + $0xd8] sm:$0xff]
        %v1324 = vld [vmem:[#allocation8 + $0xe0] sm:$0xff]
        %v1325 = vld [vmem:[#allocation8 + $0xe8] sm:$0xff]
        %v1326 = vld [vmem:[#allocation8 + $0xf0] sm:$0xff]
        %v1327 = vld [vmem:[#allocation8 + $0xf8] sm:$0xff]
        %v1360 = vunpack.c.l.b16 %v1296
        %v1361 = vunpack.c.h.b16 %v1296
        %v1362 = vunpack.c.l.b16 %v1297
        %v1363 = vunpack.c.h.b16 %v1297
        %v1364 = vunpack.c.l.b16 %v1298
        %v1365 = vunpack.c.h.b16 %v1298
        %v1366 = vunpack.c.l.b16 %v1299
        %v1367 = vunpack.c.h.b16 %v1299
        %v1368 = vunpack.c.l.b16 %v1300
        %v1369 = vunpack.c.h.b16 %v1300
        %v1370 = vunpack.c.l.b16 %v1301
        %v1371 = vunpack.c.h.b16 %v1301
        %v1372 = vunpack.c.l.b16 %v1302
        %v1373 = vunpack.c.h.b16 %v1302
        %v1374 = vunpack.c.l.b16 %v1303
        %v1375 = vunpack.c.h.b16 %v1303
        %v1376 = vunpack.c.l.b16 %v1304
        %v1377 = vunpack.c.h.b16 %v1304
        %v1378 = vunpack.c.l.b16 %v1305
        %v1379 = vunpack.c.h.b16 %v1305
        %v1380 = vunpack.c.l.b16 %v1306
        %v1381 = vunpack.c.h.b16 %v1306
        %v1382 = vunpack.c.l.b16 %v1307
        %v1383 = vunpack.c.h.b16 %v1307
        %v1384 = vunpack.c.l.b16 %v1308
        %v1385 = vunpack.c.h.b16 %v1308
        %v1386 = vunpack.c.l.b16 %v1309
        %v1387 = vunpack.c.h.b16 %v1309
        %v1388 = vunpack.c.l.b16 %v1310
        %v1389 = vunpack.c.h.b16 %v1310
        %v1390 = vunpack.c.l.b16 %v1311
        %v1391 = vunpack.c.h.b16 %v1311
        %v1392 = vunpack.c.l.b16 %v1312
        %v1393 = vunpack.c.h.b16 %v1312
        %v1394 = vunpack.c.l.b16 %v1313
        %v1395 = vunpack.c.h.b16 %v1313
        %v1396 = vunpack.c.l.b16 %v1314
        %v1397 = vunpack.c.h.b16 %v1314
        %v1398 = vunpack.c.l.b16 %v1315
        %v1399 = vunpack.c.h.b16 %v1315
        %v1400 = vunpack.c.l.b16 %v1316
        %v1401 = vunpack.c.h.b16 %v1316
        %v1402 = vunpack.c.l.b16 %v1317
        %v1403 = vunpack.c.h.b16 %v1317
        %v1404 = vunpack.c.l.b16 %v1318
        %v1405 = vunpack.c.h.b16 %v1318
        %v1406 = vunpack.c.l.b16 %v1319
        %v1407 = vunpack.c.h.b16 %v1319
        %v1408 = vunpack.c.l.b16 %v1320
        %v1409 = vunpack.c.h.b16 %v1320
        %v1410 = vunpack.c.l.b16 %v1321
        %v1411 = vunpack.c.h.b16 %v1321
        %v1412 = vunpack.c.l.b16 %v1322
        %v1413 = vunpack.c.h.b16 %v1322
        %v1414 = vunpack.c.l.b16 %v1323
        %v1415 = vunpack.c.h.b16 %v1323
        %v1416 = vunpack.c.l.b16 %v1324
        %v1417 = vunpack.c.h.b16 %v1324
        %v1418 = vunpack.c.l.b16 %v1325
        %v1419 = vunpack.c.h.b16 %v1325
        %v1420 = vunpack.c.l.b16 %v1326
        %v1421 = vunpack.c.h.b16 %v1326
        %v1422 = vunpack.c.l.b16 %v1327
        %v1423 = vunpack.c.h.b16 %v1327
        %v1424 = vpack.c.b16 %v1364, %v1360
        %v1425 = vpack.c.b16 %v1365, %v1361
        %v1426 = vpack.c.b16 %v1366, %v1362
        %v1427 = vpack.c.b16 %v1367, %v1363
        %v1428 = vpack.c.b16 %v1372, %v1368
        %v1429 = vpack.c.b16 %v1373, %v1369
        %v1430 = vpack.c.b16 %v1374, %v1370
        %v1431 = vpack.c.b16 %v1375, %v1371
        %v1432 = vpack.c.b16 %v1380, %v1376
        %v1433 = vpack.c.b16 %v1381, %v1377
        %v1434 = vpack.c.b16 %v1382, %v1378
        %v1435 = vpack.c.b16 %v1383, %v1379
        %v1436 = vpack.c.b16 %v1388, %v1384
        %v1437 = vpack.c.b16 %v1389, %v1385
        %v1438 = vpack.c.b16 %v1390, %v1386
        %v1439 = vpack.c.b16 %v1391, %v1387
        %v1440 = vpack.c.b16 %v1396, %v1392
        %v1441 = vpack.c.b16 %v1397, %v1393
        %v1442 = vpack.c.b16 %v1398, %v1394
        %v1443 = vpack.c.b16 %v1399, %v1395
        %v1444 = vpack.c.b16 %v1404, %v1400
        %v1445 = vpack.c.b16 %v1405, %v1401
        %v1446 = vpack.c.b16 %v1406, %v1402
        %v1447 = vpack.c.b16 %v1407, %v1403
        %v1448 = vpack.c.b16 %v1412, %v1408
        %v1449 = vpack.c.b16 %v1413, %v1409
        %v1450 = vpack.c.b16 %v1414, %v1410
        %v1451 = vpack.c.b16 %v1415, %v1411
        %v1452 = vpack.c.b16 %v1420, %v1416
        %v1453 = vpack.c.b16 %v1421, %v1417
        %v1454 = vpack.c.b16 %v1422, %v1418
        %v1455 = vpack.c.b16 %v1423, %v1419
        %1488 = vmatpush.bf16.msra.mxu0 %v1452
        %1489 = vmatpush.bf16.msra.mxu0 %v1448
        %1490 = vmatpush.bf16.msra.mxu0 %v1444
        %1491 = vmatpush.bf16.msra.mxu0 %v1440
        %1492 = vmatpush.bf16.msra.mxu0 %v1436
        %1493 = vmatpush.bf16.msra.mxu0 %v1432
        %1494 = vmatpush.bf16.msra.mxu0 %v1428
        %1495 = vmatpush.bf16.msra.mxu0 %v1424
        %1496 = vmatmul.bf16.gmra.mxu0 %v1282
        %v1497 = vpop.f32.mrf.mxu0
        %v1498 = vadd.f32 0.0, %v1497
        %v1499 = vpop.f32.mrf.mxu0
        %1500 = vdwg.mxu0
        %1501 = vmatpush.bf16.msra.mxu0 %v1453
        %1502 = vmatpush.bf16.msra.mxu0 %v1449
        %1503 = vmatpush.bf16.msra.mxu0 %v1445
        %1504 = vmatpush.bf16.msra.mxu0 %v1441
        %1505 = vmatpush.bf16.msra.mxu0 %v1437
        %1506 = vmatpush.bf16.msra.mxu0 %v1433
        %1507 = vmatpush.bf16.msra.mxu0 %v1429
        %1508 = vmatpush.bf16.msra.mxu0 %v1425
        %1509 = vmatmul.bf16.gmra.mxu0 %v1282
        %v1510 = vpop.f32.mrf.mxu0
        %v1511 = vadd.f32 0.0, %v1510
        %v1512 = vpop.f32.mrf.mxu0
        %1513 = vdwg.mxu0
        %1514 = vmatpush.bf16.msra.mxu0 %v1454
        %1515 = vmatpush.bf16.msra.mxu0 %v1450
        %1516 = vmatpush.bf16.msra.mxu0 %v1446
        %1517 = vmatpush.bf16.msra.mxu0 %v1442
        %1518 = vmatpush.bf16.msra.mxu0 %v1438
        %1519 = vmatpush.bf16.msra.mxu0 %v1434
        %1520 = vmatpush.bf16.msra.mxu0 %v1430
        %1521 = vmatpush.bf16.msra.mxu0 %v1426
        %1522 = vmatmul.bf16.gmra.mxu0 %v1282
        %v1523 = vpop.f32.mrf.mxu0
        %v1524 = vadd.f32 0.0, %v1523
        %v1525 = vpop.f32.mrf.mxu0
        %1526 = vdwg.mxu0
        %1527 = vmatpush.bf16.msra.mxu0 %v1455
        %1528 = vmatpush.bf16.msra.mxu0 %v1451
        %1529 = vmatpush.bf16.msra.mxu0 %v1447
        %1530 = vmatpush.bf16.msra.mxu0 %v1443
        %1531 = vmatpush.bf16.msra.mxu0 %v1439
        %1532 = vmatpush.bf16.msra.mxu0 %v1435
        %1533 = vmatpush.bf16.msra.mxu0 %v1431
        %1534 = vmatpush.bf16.msra.mxu0 %v1427
        %1535 = vmatmul.bf16.gmra.mxu0 %v1282
        %v1536 = vpop.f32.mrf.mxu0
        %v1537 = vadd.f32 0.0, %v1536
        %v1538 = vpop.f32.mrf.mxu0
        %1539 = vdwg.mxu0
        %v1540 = vadd.f32 %v1292, %v1498
        %v1541 = vadd.f32 %v1293, %v1511
        %v1542 = vadd.f32 %v1294, %v1524
        %v1543 = vadd.f32 %v1295, %v1537
        %v1544 = vxor.u32 %v1540, 2147483648
        %v1545 = vxor.u32 %v1541, 2147483648
        %v1546 = vxor.u32 %v1542, 2147483648
        %v1547 = vmul.f32 %v1544, 1.442695
        %v1548 = vpow.pop %v1547
        %v1549 = vmul.f32 %v1545, 1.442695
        %v1550 = vpow.pop %v1549
        %v1551 = vmul.f32 %v1546, 1.442695
        %v1552 = vpow.pop %v1551
        %v1553 = vadd.f32 %v1548, 1.0
        %v1554 = vadd.f32 %v1550, 1.0
        %v1555 = vadd.f32 %v1552, 1.0
        %v1556 = vrcp.pop %v1553
        %v1557 = vmul.f32 %v1553, %v1556
        %v1558 = vsub.f32 1.0, %v1557
        %v1559 = vmul.f32 %v1556, %v1558
        %v1560 = vadd.f32 %v1556, %v1559
        %vm1561 = vweird.f32 %v1553
        %vm1562 = vweird.f32 %v1556
        %vm1563 = vmor %vm1561, %vm1562
        %v1564 = vsel %vm1563, %v1556, %v1560
        %v1565 = vand.u32 2147483647, %v1553
        %vm1566 = vcmp.eq.f32.partialorder %v1565, 8.507059e+37
        %v1567 = vand.u32 %v1553, 2147483648
        %v1568 = vor.u32 1.1754944e-38, %v1567
        %v1569 = vsel %vm1566, %v1568, %v1564
        %v1570 = vmul.f32 1.0, %v1569
        %v1571 = vrcp.pop %v1554
        %v1572 = vmul.f32 %v1554, %v1571
        %v1573 = vsub.f32 1.0, %v1572
        %v1574 = vmul.f32 %v1571, %v1573
        %v1575 = vadd.f32 %v1571, %v1574
        %vm1576 = vweird.f32 %v1554
        %vm1577 = vweird.f32 %v1571
        %vm1578 = vmor %vm1576, %vm1577
        %v1579 = vsel %vm1578, %v1571, %v1575
        %v1580 = vand.u32 2147483647, %v1554
        %vm1581 = vcmp.eq.f32.partialorder %v1580, 8.507059e+37
        %v1582 = vand.u32 %v1554, 2147483648
        %v1583 = vor.u32 1.1754944e-38, %v1582
        %v1584 = vsel %vm1581, %v1583, %v1579
        %v1585 = vmul.f32 1.0, %v1584
        %v1586 = vrcp.pop %v1555
        %v1587 = vmul.f32 %v1555, %v1586
        %v1588 = vsub.f32 1.0, %v1587
        %v1589 = vmul.f32 %v1586, %v1588
        %v1590 = vadd.f32 %v1586, %v1589
        %vm1591 = vweird.f32 %v1555
        %vm1592 = vweird.f32 %v1586
        %vm1593 = vmor %vm1591, %vm1592
        %v1594 = vsel %vm1593, %v1586, %v1590
        %v1595 = vand.u32 2147483647, %v1555
        %vm1596 = vcmp.eq.f32.partialorder %v1595, 8.507059e+37
        %v1597 = vand.u32 %v1555, 2147483648
        %v1598 = vor.u32 1.1754944e-38, %v1597
        %v1599 = vsel %vm1596, %v1598, %v1594
        %v1600 = vmul.f32 1.0, %v1599
        %v1601 = vtanh.pop %v1543
        %v1602 = vmul.f32 %v1585, %v1279
        %v1603 = vmul.f32 %v1570, %v1601
        %v1604 = vadd.f32 %v1602, %v1603
        %v1605 = vtanh.pop %v1604
        %v1606 = vmul.f32 %v1600, %v1605
        %v1607 = vpack.c.bf16 %v1606, %v1606
        %s1608 = scalar_lea.vmem %s264, 8 [#allocation11]
        %1609 = vst [vmem:[%s1608] sm:$0xf] %v1607
        %s1610 = scalar_lea.vmem [#allocation2], 48
        %v1611 = vld [vmem:[%s1610] sm:$0xff]
        %v1612 = vld [vmem:[%s1610 + $0x8] sm:$0xff]
        %v1613 = vunpack.c.l.bf16 %v1611
        %v1614 = vunpack.c.h.bf16 %v1611
        %v1615 = vunpack.c.l.bf16 %v1612
        %v1616 = vunpack.c.h.bf16 %v1612
        %v1617 = vadd.f32 %v1613, %v635
        %v1618 = vadd.f32 %v1614, %v636
        %v1619 = vadd.f32 %v1615, %v637
        %v1620 = vadd.f32 %v1616, %v638
        %v1621 = vld [vmem:[#allocation8] sm:$0xff]
        %v1622 = vld [vmem:[#allocation8 + $0x8] sm:$0xff]
        %v1623 = vld [vmem:[#allocation8 + $0x10] sm:$0xff]
        %v1624 = vld [vmem:[#allocation8 + $0x18] sm:$0xff]
        %v1625 = vld [vmem:[#allocation8 + $0x20] sm:$0xff]
        %v1626 = vld [vmem:[#allocation8 + $0x28] sm:$0xff]
        %v1627 = vld [vmem:[#allocation8 + $0x30] sm:$0xff]
        %v1628 = vld [vmem:[#allocation8 + $0x38] sm:$0xff]
        %v1629 = vld [vmem:[#allocation8 + $0x40] sm:$0xff]
        %v1630 = vld [vmem:[#allocation8 + $0x48] sm:$0xff]
        %v1631 = vld [vmem:[#allocation8 + $0x50] sm:$0xff]
        %v1632 = vld [vmem:[#allocation8 + $0x58] sm:$0xff]
        %v1633 = vld [vmem:[#allocation8 + $0x60] sm:$0xff]
        %v1634 = vld [vmem:[#allocation8 + $0x68] sm:$0xff]
        %v1635 = vld [vmem:[#allocation8 + $0x70] sm:$0xff]
        %v1636 = vld [vmem:[#allocation8 + $0x78] sm:$0xff]
        %v1637 = vld [vmem:[#allocation8 + $0x80] sm:$0xff]
        %v1638 = vld [vmem:[#allocation8 + $0x88] sm:$0xff]
        %v1639 = vld [vmem:[#allocation8 + $0x90] sm:$0xff]
        %v1640 = vld [vmem:[#allocation8 + $0x98] sm:$0xff]
        %v1641 = vld [vmem:[#allocation8 + $0xa0] sm:$0xff]
        %v1642 = vld [vmem:[#allocation8 + $0xa8] sm:$0xff]
        %v1643 = vld [vmem:[#allocation8 + $0xb0] sm:$0xff]
        %v1644 = vld [vmem:[#allocation8 + $0xb8] sm:$0xff]
        %v1645 = vld [vmem:[#allocation8 + $0xc0] sm:$0xff]
        %v1646 = vld [vmem:[#allocation8 + $0xc8] sm:$0xff]
        %v1647 = vld [vmem:[#allocation8 + $0xd0] sm:$0xff]
        %v1648 = vld [vmem:[#allocation8 + $0xd8] sm:$0xff]
        %v1649 = vld [vmem:[#allocation8 + $0xe0] sm:$0xff]
        %v1650 = vld [vmem:[#allocation8 + $0xe8] sm:$0xff]
        %v1651 = vld [vmem:[#allocation8 + $0xf0] sm:$0xff]
        %v1652 = vld [vmem:[#allocation8 + $0xf8] sm:$0xff]
        %v1685 = vunpack.c.l.b16 %v1621
        %v1686 = vunpack.c.h.b16 %v1621
        %v1687 = vunpack.c.l.b16 %v1622
        %v1688 = vunpack.c.h.b16 %v1622
        %v1689 = vunpack.c.l.b16 %v1623
        %v1690 = vunpack.c.h.b16 %v1623
        %v1691 = vunpack.c.l.b16 %v1624
        %v1692 = vunpack.c.h.b16 %v1624
        %v1693 = vunpack.c.l.b16 %v1625
        %v1694 = vunpack.c.h.b16 %v1625
        %v1695 = vunpack.c.l.b16 %v1626
        %v1696 = vunpack.c.h.b16 %v1626
        %v1697 = vunpack.c.l.b16 %v1627
        %v1698 = vunpack.c.h.b16 %v1627
        %v1699 = vunpack.c.l.b16 %v1628
        %v1700 = vunpack.c.h.b16 %v1628
        %v1701 = vunpack.c.l.b16 %v1629
        %v1702 = vunpack.c.h.b16 %v1629
        %v1703 = vunpack.c.l.b16 %v1630
        %v1704 = vunpack.c.h.b16 %v1630
        %v1705 = vunpack.c.l.b16 %v1631
        %v1706 = vunpack.c.h.b16 %v1631
        %v1707 = vunpack.c.l.b16 %v1632
        %v1708 = vunpack.c.h.b16 %v1632
        %v1709 = vunpack.c.l.b16 %v1633
        %v1710 = vunpack.c.h.b16 %v1633
        %v1711 = vunpack.c.l.b16 %v1634
        %v1712 = vunpack.c.h.b16 %v1634
        %v1713 = vunpack.c.l.b16 %v1635
        %v1714 = vunpack.c.h.b16 %v1635
        %v1715 = vunpack.c.l.b16 %v1636
        %v1716 = vunpack.c.h.b16 %v1636
        %v1717 = vunpack.c.l.b16 %v1637
        %v1718 = vunpack.c.h.b16 %v1637
        %v1719 = vunpack.c.l.b16 %v1638
        %v1720 = vunpack.c.h.b16 %v1638
        %v1721 = vunpack.c.l.b16 %v1639
        %v1722 = vunpack.c.h.b16 %v1639
        %v1723 = vunpack.c.l.b16 %v1640
        %v1724 = vunpack.c.h.b16 %v1640
        %v1725 = vunpack.c.l.b16 %v1641
        %v1726 = vunpack.c.h.b16 %v1641
        %v1727 = vunpack.c.l.b16 %v1642
        %v1728 = vunpack.c.h.b16 %v1642
        %v1729 = vunpack.c.l.b16 %v1643
        %v1730 = vunpack.c.h.b16 %v1643
        %v1731 = vunpack.c.l.b16 %v1644
        %v1732 = vunpack.c.h.b16 %v1644
        %v1733 = vunpack.c.l.b16 %v1645
        %v1734 = vunpack.c.h.b16 %v1645
        %v1735 = vunpack.c.l.b16 %v1646
        %v1736 = vunpack.c.h.b16 %v1646
        %v1737 = vunpack.c.l.b16 %v1647
        %v1738 = vunpack.c.h.b16 %v1647
        %v1739 = vunpack.c.l.b16 %v1648
        %v1740 = vunpack.c.h.b16 %v1648
        %v1741 = vunpack.c.l.b16 %v1649
        %v1742 = vunpack.c.h.b16 %v1649
        %v1743 = vunpack.c.l.b16 %v1650
        %v1744 = vunpack.c.h.b16 %v1650
        %v1745 = vunpack.c.l.b16 %v1651
        %v1746 = vunpack.c.h.b16 %v1651
        %v1747 = vunpack.c.l.b16 %v1652
        %v1748 = vunpack.c.h.b16 %v1652
        %v1749 = vpack.c.b16 %v1689, %v1685
        %v1750 = vpack.c.b16 %v1690, %v1686
        %v1751 = vpack.c.b16 %v1691, %v1687
        %v1752 = vpack.c.b16 %v1692, %v1688
        %v1753 = vpack.c.b16 %v1697, %v1693
        %v1754 = vpack.c.b16 %v1698, %v1694
        %v1755 = vpack.c.b16 %v1699, %v1695
        %v1756 = vpack.c.b16 %v1700, %v1696
        %v1757 = vpack.c.b16 %v1705, %v1701
        %v1758 = vpack.c.b16 %v1706, %v1702
        %v1759 = vpack.c.b16 %v1707, %v1703
        %v1760 = vpack.c.b16 %v1708, %v1704
        %v1761 = vpack.c.b16 %v1713, %v1709
        %v1762 = vpack.c.b16 %v1714, %v1710
        %v1763 = vpack.c.b16 %v1715, %v1711
        %v1764 = vpack.c.b16 %v1716, %v1712
        %v1765 = vpack.c.b16 %v1721, %v1717
        %v1766 = vpack.c.b16 %v1722, %v1718
        %v1767 = vpack.c.b16 %v1723, %v1719
        %v1768 = vpack.c.b16 %v1724, %v1720
        %v1769 = vpack.c.b16 %v1729, %v1725
        %v1770 = vpack.c.b16 %v1730, %v1726
        %v1771 = vpack.c.b16 %v1731, %v1727
        %v1772 = vpack.c.b16 %v1732, %v1728
        %v1773 = vpack.c.b16 %v1737, %v1733
        %v1774 = vpack.c.b16 %v1738, %v1734
        %v1775 = vpack.c.b16 %v1739, %v1735
        %v1776 = vpack.c.b16 %v1740, %v1736
        %v1777 = vpack.c.b16 %v1745, %v1741
        %v1778 = vpack.c.b16 %v1746, %v1742
        %v1779 = vpack.c.b16 %v1747, %v1743
        %v1780 = vpack.c.b16 %v1748, %v1744
        %1813 = vmatpush.bf16.msra.mxu0 %v1777
        %1814 = vmatpush.bf16.msra.mxu0 %v1773
        %1815 = vmatpush.bf16.msra.mxu0 %v1769
        %1816 = vmatpush.bf16.msra.mxu0 %v1765
        %1817 = vmatpush.bf16.msra.mxu0 %v1761
        %1818 = vmatpush.bf16.msra.mxu0 %v1757
        %1819 = vmatpush.bf16.msra.mxu0 %v1753
        %1820 = vmatpush.bf16.msra.mxu0 %v1749
        %1821 = vmatmul.bf16.gmra.mxu0 %v1607
        %v1822 = vpop.f32.mrf.mxu0
        %v1823 = vadd.f32 0.0, %v1822
        %v1824 = vpop.f32.mrf.mxu0
        %1825 = vdwg.mxu0
        %1826 = vmatpush.bf16.msra.mxu0 %v1778
        %1827 = vmatpush.bf16.msra.mxu0 %v1774
        %1828 = vmatpush.bf16.msra.mxu0 %v1770
        %1829 = vmatpush.bf16.msra.mxu0 %v1766
        %1830 = vmatpush.bf16.msra.mxu0 %v1762
        %1831 = vmatpush.bf16.msra.mxu0 %v1758
        %1832 = vmatpush.bf16.msra.mxu0 %v1754
        %1833 = vmatpush.bf16.msra.mxu0 %v1750
        %1834 = vmatmul.bf16.gmra.mxu0 %v1607
        %v1835 = vpop.f32.mrf.mxu0
        %v1836 = vadd.f32 0.0, %v1835
        %v1837 = vpop.f32.mrf.mxu0
        %1838 = vdwg.mxu0
        %1839 = vmatpush.bf16.msra.mxu0 %v1779
        %1840 = vmatpush.bf16.msra.mxu0 %v1775
        %1841 = vmatpush.bf16.msra.mxu0 %v1771
        %1842 = vmatpush.bf16.msra.mxu0 %v1767
        %1843 = vmatpush.bf16.msra.mxu0 %v1763
        %1844 = vmatpush.bf16.msra.mxu0 %v1759
        %1845 = vmatpush.bf16.msra.mxu0 %v1755
        %1846 = vmatpush.bf16.msra.mxu0 %v1751
        %1847 = vmatmul.bf16.gmra.mxu0 %v1607
        %v1848 = vpop.f32.mrf.mxu0
        %v1849 = vadd.f32 0.0, %v1848
        %v1850 = vpop.f32.mrf.mxu0
        %1851 = vdwg.mxu0
        %1852 = vmatpush.bf16.msra.mxu0 %v1780
        %1853 = vmatpush.bf16.msra.mxu0 %v1776
        %1854 = vmatpush.bf16.msra.mxu0 %v1772
        %1855 = vmatpush.bf16.msra.mxu0 %v1768
        %1856 = vmatpush.bf16.msra.mxu0 %v1764
        %1857 = vmatpush.bf16.msra.mxu0 %v1760
        %1858 = vmatpush.bf16.msra.mxu0 %v1756
        %1859 = vmatpush.bf16.msra.mxu0 %v1752
        %1860 = vmatmul.bf16.gmra.mxu0 %v1607
        %v1861 = vpop.f32.mrf.mxu0
        %v1862 = vadd.f32 0.0, %v1861
        %v1863 = vpop.f32.mrf.mxu0
        %1864 = vdwg.mxu0
        %v1865 = vadd.f32 %v1617, %v1823
        %v1866 = vadd.f32 %v1618, %v1836
        %v1867 = vadd.f32 %v1619, %v1849
        %v1868 = vadd.f32 %v1620, %v1862
        %v1869 = vxor.u32 %v1865, 2147483648
        %v1870 = vxor.u32 %v1866, 2147483648
        %v1871 = vxor.u32 %v1867, 2147483648
        %v1872 = vmul.f32 %v1869, 1.442695
        %v1873 = vpow.pop %v1872
        %v1874 = vmul.f32 %v1870, 1.442695
        %v1875 = vpow.pop %v1874
        %v1876 = vmul.f32 %v1871, 1.442695
        %v1877 = vpow.pop %v1876
        %v1878 = vadd.f32 %v1873, 1.0
        %v1879 = vadd.f32 %v1875, 1.0
        %v1880 = vadd.f32 %v1877, 1.0
        %v1881 = vrcp.pop %v1878
        %v1882 = vmul.f32 %v1878, %v1881
        %v1883 = vsub.f32 1.0, %v1882
        %v1884 = vmul.f32 %v1881, %v1883
        %v1885 = vadd.f32 %v1881, %v1884
        %vm1886 = vweird.f32 %v1878
        %vm1887 = vweird.f32 %v1881
        %vm1888 = vmor %vm1886, %vm1887
        %v1889 = vsel %vm1888, %v1881, %v1885
        %v1890 = vand.u32 2147483647, %v1878
        %vm1891 = vcmp.eq.f32.partialorder %v1890, 8.507059e+37
        %v1892 = vand.u32 %v1878, 2147483648
        %v1893 = vor.u32 1.1754944e-38, %v1892
        %v1894 = vsel %vm1891, %v1893, %v1889
        %v1895 = vmul.f32 1.0, %v1894
        %v1896 = vrcp.pop %v1879
        %v1897 = vmul.f32 %v1879, %v1896
        %v1898 = vsub.f32 1.0, %v1897
        %v1899 = vmul.f32 %v1896, %v1898
        %v1900 = vadd.f32 %v1896, %v1899
        %vm1901 = vweird.f32 %v1879
        %vm1902 = vweird.f32 %v1896
        %vm1903 = vmor %vm1901, %vm1902
        %v1904 = vsel %vm1903, %v1896, %v1900
        %v1905 = vand.u32 2147483647, %v1879
        %vm1906 = vcmp.eq.f32.partialorder %v1905, 8.507059e+37
        %v1907 = vand.u32 %v1879, 2147483648
        %v1908 = vor.u32 1.1754944e-38, %v1907
        %v1909 = vsel %vm1906, %v1908, %v1904
        %v1910 = vmul.f32 1.0, %v1909
        %v1911 = vrcp.pop %v1880
        %v1912 = vmul.f32 %v1880, %v1911
        %v1913 = vsub.f32 1.0, %v1912
        %v1914 = vmul.f32 %v1911, %v1913
        %v1915 = vadd.f32 %v1911, %v1914
        %vm1916 = vweird.f32 %v1880
        %vm1917 = vweird.f32 %v1911
        %vm1918 = vmor %vm1916, %vm1917
        %v1919 = vsel %vm1918, %v1911, %v1915
        %v1920 = vand.u32 2147483647, %v1880
        %vm1921 = vcmp.eq.f32.partialorder %v1920, 8.507059e+37
        %v1922 = vand.u32 %v1880, 2147483648
        %v1923 = vor.u32 1.1754944e-38, %v1922
        %v1924 = vsel %vm1921, %v1923, %v1919
        %v1925 = vmul.f32 1.0, %v1924
        %v1926 = vtanh.pop %v1868
        %v1927 = vmul.f32 %v1910, %v1604
        %v1928 = vmul.f32 %v1895, %v1926
        %v1929 = vadd.f32 %v1927, %v1928
        %v1930 = vtanh.pop %v1929
        %v1931 = vmul.f32 %v1925, %v1930
        %v1932 = vpack.c.bf16 %v1931, %v1931
        %s1933 = scalar_lea.vmem %s264, 12 [#allocation11]
        %1934 = vst [vmem:[%s1933] sm:$0xf] %v1932
        %s1935 = scalar_lea.vmem [#allocation2], 64
        %v1936 = vld [vmem:[%s1935] sm:$0xff]
        %v1937 = vld [vmem:[%s1935 + $0x8] sm:$0xff]
        %v1938 = vunpack.c.l.bf16 %v1936
        %v1939 = vunpack.c.h.bf16 %v1936
        %v1940 = vunpack.c.l.bf16 %v1937
        %v1941 = vunpack.c.h.bf16 %v1937
        %v1942 = vadd.f32 %v1938, %v635
        %v1943 = vadd.f32 %v1939, %v636
        %v1944 = vadd.f32 %v1940, %v637
        %v1945 = vadd.f32 %v1941, %v638
        %v1946 = vld [vmem:[#allocation8] sm:$0xff]
        %v1947 = vld [vmem:[#allocation8 + $0x8] sm:$0xff]
        %v1948 = vld [vmem:[#allocation8 + $0x10] sm:$0xff]
        %v1949 = vld [vmem:[#allocation8 + $0x18] sm:$0xff]
        %v1950 = vld [vmem:[#allocation8 + $0x20] sm:$0xff]
        %v1951 = vld [vmem:[#allocation8 + $0x28] sm:$0xff]
        %v1952 = vld [vmem:[#allocation8 + $0x30] sm:$0xff]
        %v1953 = vld [vmem:[#allocation8 + $0x38] sm:$0xff]
        %v1954 = vld [vmem:[#allocation8 + $0x40] sm:$0xff]
        %v1955 = vld [vmem:[#allocation8 + $0x48] sm:$0xff]
        %v1956 = vld [vmem:[#allocation8 + $0x50] sm:$0xff]
        %v1957 = vld [vmem:[#allocation8 + $0x58] sm:$0xff]
        %v1958 = vld [vmem:[#allocation8 + $0x60] sm:$0xff]
        %v1959 = vld [vmem:[#allocation8 + $0x68] sm:$0xff]
        %v1960 = vld [vmem:[#allocation8 + $0x70] sm:$0xff]
        %v1961 = vld [vmem:[#allocation8 + $0x78] sm:$0xff]
        %v1962 = vld [vmem:[#allocation8 + $0x80] sm:$0xff]
        %v1963 = vld [vmem:[#allocation8 + $0x88] sm:$0xff]
        %v1964 = vld [vmem:[#allocation8 + $0x90] sm:$0xff]
        %v1965 = vld [vmem:[#allocation8 + $0x98] sm:$0xff]
        %v1966 = vld [vmem:[#allocation8 + $0xa0] sm:$0xff]
        %v1967 = vld [vmem:[#allocation8 + $0xa8] sm:$0xff]
        %v1968 = vld [vmem:[#allocation8 + $0xb0] sm:$0xff]
        %v1969 = vld [vmem:[#allocation8 + $0xb8] sm:$0xff]
        %v1970 = vld [vmem:[#allocation8 + $0xc0] sm:$0xff]
        %v1971 = vld [vmem:[#allocation8 + $0xc8] sm:$0xff]
        %v1972 = vld [vmem:[#allocation8 + $0xd0] sm:$0xff]
        %v1973 = vld [vmem:[#allocation8 + $0xd8] sm:$0xff]
        %v1974 = vld [vmem:[#allocation8 + $0xe0] sm:$0xff]
        %v1975 = vld [vmem:[#allocation8 + $0xe8] sm:$0xff]
        %v1976 = vld [vmem:[#allocation8 + $0xf0] sm:$0xff]
        %v1977 = vld [vmem:[#allocation8 + $0xf8] sm:$0xff]
        %v2010 = vunpack.c.l.b16 %v1946
        %v2011 = vunpack.c.h.b16 %v1946
        %v2012 = vunpack.c.l.b16 %v1947
        %v2013 = vunpack.c.h.b16 %v1947
        %v2014 = vunpack.c.l.b16 %v1948
        %v2015 = vunpack.c.h.b16 %v1948
        %v2016 = vunpack.c.l.b16 %v1949
        %v2017 = vunpack.c.h.b16 %v1949
        %v2018 = vunpack.c.l.b16 %v1950
        %v2019 = vunpack.c.h.b16 %v1950
        %v2020 = vunpack.c.l.b16 %v1951
        %v2021 = vunpack.c.h.b16 %v1951
        %v2022 = vunpack.c.l.b16 %v1952
        %v2023 = vunpack.c.h.b16 %v1952
        %v2024 = vunpack.c.l.b16 %v1953
        %v2025 = vunpack.c.h.b16 %v1953
        %v2026 = vunpack.c.l.b16 %v1954
        %v2027 = vunpack.c.h.b16 %v1954
        %v2028 = vunpack.c.l.b16 %v1955
        %v2029 = vunpack.c.h.b16 %v1955
        %v2030 = vunpack.c.l.b16 %v1956
        %v2031 = vunpack.c.h.b16 %v1956
        %v2032 = vunpack.c.l.b16 %v1957
        %v2033 = vunpack.c.h.b16 %v1957
        %v2034 = vunpack.c.l.b16 %v1958
        %v2035 = vunpack.c.h.b16 %v1958
        %v2036 = vunpack.c.l.b16 %v1959
        %v2037 = vunpack.c.h.b16 %v1959
        %v2038 = vunpack.c.l.b16 %v1960
        %v2039 = vunpack.c.h.b16 %v1960
        %v2040 = vunpack.c.l.b16 %v1961
        %v2041 = vunpack.c.h.b16 %v1961
        %v2042 = vunpack.c.l.b16 %v1962
        %v2043 = vunpack.c.h.b16 %v1962
        %v2044 = vunpack.c.l.b16 %v1963
        %v2045 = vunpack.c.h.b16 %v1963
        %v2046 = vunpack.c.l.b16 %v1964
        %v2047 = vunpack.c.h.b16 %v1964
        %v2048 = vunpack.c.l.b16 %v1965
        %v2049 = vunpack.c.h.b16 %v1965
        %v2050 = vunpack.c.l.b16 %v1966
        %v2051 = vunpack.c.h.b16 %v1966
        %v2052 = vunpack.c.l.b16 %v1967
        %v2053 = vunpack.c.h.b16 %v1967
        %v2054 = vunpack.c.l.b16 %v1968
        %v2055 = vunpack.c.h.b16 %v1968
        %v2056 = vunpack.c.l.b16 %v1969
        %v2057 = vunpack.c.h.b16 %v1969
        %v2058 = vunpack.c.l.b16 %v1970
        %v2059 = vunpack.c.h.b16 %v1970
        %v2060 = vunpack.c.l.b16 %v1971
        %v2061 = vunpack.c.h.b16 %v1971
        %v2062 = vunpack.c.l.b16 %v1972
        %v2063 = vunpack.c.h.b16 %v1972
        %v2064 = vunpack.c.l.b16 %v1973
        %v2065 = vunpack.c.h.b16 %v1973
        %v2066 = vunpack.c.l.b16 %v1974
        %v2067 = vunpack.c.h.b16 %v1974
        %v2068 = vunpack.c.l.b16 %v1975
        %v2069 = vunpack.c.h.b16 %v1975
        %v2070 = vunpack.c.l.b16 %v1976
        %v2071 = vunpack.c.h.b16 %v1976
        %v2072 = vunpack.c.l.b16 %v1977
        %v2073 = vunpack.c.h.b16 %v1977
        %v2074 = vpack.c.b16 %v2014, %v2010
        %v2075 = vpack.c.b16 %v2015, %v2011
        %v2076 = vpack.c.b16 %v2016, %v2012
        %v2077 = vpack.c.b16 %v2017, %v2013
        %v2078 = vpack.c.b16 %v2022, %v2018
        %v2079 = vpack.c.b16 %v2023, %v2019
        %v2080 = vpack.c.b16 %v2024, %v2020
        %v2081 = vpack.c.b16 %v2025, %v2021
        %v2082 = vpack.c.b16 %v2030, %v2026
        %v2083 = vpack.c.b16 %v2031, %v2027
        %v2084 = vpack.c.b16 %v2032, %v2028
        %v2085 = vpack.c.b16 %v2033, %v2029
        %v2086 = vpack.c.b16 %v2038, %v2034
        %v2087 = vpack.c.b16 %v2039, %v2035
        %v2088 = vpack.c.b16 %v2040, %v2036
        %v2089 = vpack.c.b16 %v2041, %v2037
        %v2090 = vpack.c.b16 %v2046, %v2042
        %v2091 = vpack.c.b16 %v2047, %v2043
        %v2092 = vpack.c.b16 %v2048, %v2044
        %v2093 = vpack.c.b16 %v2049, %v2045
        %v2094 = vpack.c.b16 %v2054, %v2050
        %v2095 = vpack.c.b16 %v2055, %v2051
        %v2096 = vpack.c.b16 %v2056, %v2052
        %v2097 = vpack.c.b16 %v2057, %v2053
        %v2098 = vpack.c.b16 %v2062, %v2058
        %v2099 = vpack.c.b16 %v2063, %v2059
        %v2100 = vpack.c.b16 %v2064, %v2060
        %v2101 = vpack.c.b16 %v2065, %v2061
        %v2102 = vpack.c.b16 %v2070, %v2066
        %v2103 = vpack.c.b16 %v2071, %v2067
        %v2104 = vpack.c.b16 %v2072, %v2068
        %v2105 = vpack.c.b16 %v2073, %v2069
        %2138 = vmatpush.bf16.msra.mxu0 %v2102
        %2139 = vmatpush.bf16.msra.mxu0 %v2098
        %2140 = vmatpush.bf16.msra.mxu0 %v2094
        %2141 = vmatpush.bf16.msra.mxu0 %v2090
        %2142 = vmatpush.bf16.msra.mxu0 %v2086
        %2143 = vmatpush.bf16.msra.mxu0 %v2082
        %2144 = vmatpush.bf16.msra.mxu0 %v2078
        %2145 = vmatpush.bf16.msra.mxu0 %v2074
        %2146 = vmatmul.bf16.gmra.mxu0 %v1932
        %v2147 = vpop.f32.mrf.mxu0
        %v2148 = vadd.f32 0.0, %v2147
        %v2149 = vpop.f32.mrf.mxu0
        %2150 = vdwg.mxu0
        %2151 = vmatpush.bf16.msra.mxu0 %v2103
        %2152 = vmatpush.bf16.msra.mxu0 %v2099
        %2153 = vmatpush.bf16.msra.mxu0 %v2095
        %2154 = vmatpush.bf16.msra.mxu0 %v2091
        %2155 = vmatpush.bf16.msra.mxu0 %v2087
        %2156 = vmatpush.bf16.msra.mxu0 %v2083
        %2157 = vmatpush.bf16.msra.mxu0 %v2079
        %2158 = vmatpush.bf16.msra.mxu0 %v2075
        %2159 = vmatmul.bf16.gmra.mxu0 %v1932
        %v2160 = vpop.f32.mrf.mxu0
        %v2161 = vadd.f32 0.0, %v2160
        %v2162 = vpop.f32.mrf.mxu0
        %2163 = vdwg.mxu0
        %2164 = vmatpush.bf16.msra.mxu0 %v2104
        %2165 = vmatpush.bf16.msra.mxu0 %v2100
        %2166 = vmatpush.bf16.msra.mxu0 %v2096
        %2167 = vmatpush.bf16.msra.mxu0 %v2092
        %2168 = vmatpush.bf16.msra.mxu0 %v2088
        %2169 = vmatpush.bf16.msra.mxu0 %v2084
        %2170 = vmatpush.bf16.msra.mxu0 %v2080
        %2171 = vmatpush.bf16.msra.mxu0 %v2076
        %2172 = vmatmul.bf16.gmra.mxu0 %v1932
        %v2173 = vpop.f32.mrf.mxu0
        %v2174 = vadd.f32 0.0, %v2173
        %v2175 = vpop.f32.mrf.mxu0
        %2176 = vdwg.mxu0
        %2177 = vmatpush.bf16.msra.mxu0 %v2105
        %2178 = vmatpush.bf16.msra.mxu0 %v2101
        %2179 = vmatpush.bf16.msra.mxu0 %v2097
        %2180 = vmatpush.bf16.msra.mxu0 %v2093
        %2181 = vmatpush.bf16.msra.mxu0 %v2089
        %2182 = vmatpush.bf16.msra.mxu0 %v2085
        %2183 = vmatpush.bf16.msra.mxu0 %v2081
        %2184 = vmatpush.bf16.msra.mxu0 %v2077
        %2185 = vmatmul.bf16.gmra.mxu0 %v1932
        %v2186 = vpop.f32.mrf.mxu0
        %v2187 = vadd.f32 0.0, %v2186
        %v2188 = vpop.f32.mrf.mxu0
        %2189 = vdwg.mxu0
        %v2190 = vadd.f32 %v1942, %v2148
        %v2191 = vadd.f32 %v1943, %v2161
        %v2192 = vadd.f32 %v1944, %v2174
        %v2193 = vadd.f32 %v1945, %v2187
        %v2194 = vxor.u32 %v2190, 2147483648
        %v2195 = vxor.u32 %v2191, 2147483648
        %v2196 = vxor.u32 %v2192, 2147483648
        %v2197 = vmul.f32 %v2194, 1.442695
        %v2198 = vpow.pop %v2197
        %v2199 = vmul.f32 %v2195, 1.442695
        %v2200 = vpow.pop %v2199
        %v2201 = vmul.f32 %v2196, 1.442695
        %v2202 = vpow.pop %v2201
        %v2203 = vadd.f32 %v2198, 1.0
        %v2204 = vadd.f32 %v2200, 1.0
        %v2205 = vadd.f32 %v2202, 1.0
        %v2206 = vrcp.pop %v2203
        %v2207 = vmul.f32 %v2203, %v2206
        %v2208 = vsub.f32 1.0, %v2207
        %v2209 = vmul.f32 %v2206, %v2208
        %v2210 = vadd.f32 %v2206, %v2209
        %vm2211 = vweird.f32 %v2203
        %vm2212 = vweird.f32 %v2206
        %vm2213 = vmor %vm2211, %vm2212
        %v2214 = vsel %vm2213, %v2206, %v2210
        %v2215 = vand.u32 2147483647, %v2203
        %vm2216 = vcmp.eq.f32.partialorder %v2215, 8.507059e+37
        %v2217 = vand.u32 %v2203, 2147483648
        %v2218 = vor.u32 1.1754944e-38, %v2217
        %v2219 = vsel %vm2216, %v2218, %v2214
        %v2220 = vmul.f32 1.0, %v2219
        %v2221 = vrcp.pop %v2204
        %v2222 = vmul.f32 %v2204, %v2221
        %v2223 = vsub.f32 1.0, %v2222
        %v2224 = vmul.f32 %v2221, %v2223
        %v2225 = vadd.f32 %v2221, %v2224
        %vm2226 = vweird.f32 %v2204
        %vm2227 = vweird.f32 %v2221
        %vm2228 = vmor %vm2226, %vm2227
        %v2229 = vsel %vm2228, %v2221, %v2225
        %v2230 = vand.u32 2147483647, %v2204
        %vm2231 = vcmp.eq.f32.partialorder %v2230, 8.507059e+37
        %v2232 = vand.u32 %v2204, 2147483648
        %v2233 = vor.u32 1.1754944e-38, %v2232
        %v2234 = vsel %vm2231, %v2233, %v2229
        %v2235 = vmul.f32 1.0, %v2234
        %v2236 = vrcp.pop %v2205
        %v2237 = vmul.f32 %v2205, %v2236
        %v2238 = vsub.f32 1.0, %v2237
        %v2239 = vmul.f32 %v2236, %v2238
        %v2240 = vadd.f32 %v2236, %v2239
        %vm2241 = vweird.f32 %v2205
        %vm2242 = vweird.f32 %v2236
        %vm2243 = vmor %vm2241, %vm2242
        %v2244 = vsel %vm2243, %v2236, %v2240
        %v2245 = vand.u32 2147483647, %v2205
        %vm2246 = vcmp.eq.f32.partialorder %v2245, 8.507059e+37
        %v2247 = vand.u32 %v2205, 2147483648
        %v2248 = vor.u32 1.1754944e-38, %v2247
        %v2249 = vsel %vm2246, %v2248, %v2244
        %v2250 = vmul.f32 1.0, %v2249
        %v2251 = vtanh.pop %v2193
        %v2252 = vmul.f32 %v2235, %v1929
        %v2253 = vmul.f32 %v2220, %v2251
        %v2254 = vadd.f32 %v2252, %v2253
        %v2255 = vtanh.pop %v2254
        %v2256 = vmul.f32 %v2250, %v2255
        %v2257 = vpack.c.bf16 %v2256, %v2256
        %s2258 = scalar_lea.vmem %s264, 16 [#allocation11]
        %2259 = vst [vmem:[%s2258] sm:$0xf] %v2257
        %s2260 = scalar_lea.vmem [#allocation2], 80
        %v2261 = vld [vmem:[%s2260] sm:$0xff]
        %v2262 = vld [vmem:[%s2260 + $0x8] sm:$0xff]
        %v2263 = vunpack.c.l.bf16 %v2261
        %v2264 = vunpack.c.h.bf16 %v2261
        %v2265 = vunpack.c.l.bf16 %v2262
        %v2266 = vunpack.c.h.bf16 %v2262
        %v2267 = vadd.f32 %v2263, %v635
        %v2268 = vadd.f32 %v2264, %v636
        %v2269 = vadd.f32 %v2265, %v637
        %v2270 = vadd.f32 %v2266, %v638
        %v2271 = vld [vmem:[#allocation8] sm:$0xff]
        %v2272 = vld [vmem:[#allocation8 + $0x8] sm:$0xff]
        %v2273 = vld [vmem:[#allocation8 + $0x10] sm:$0xff]
        %v2274 = vld [vmem:[#allocation8 + $0x18] sm:$0xff]
        %v2275 = vld [vmem:[#allocation8 + $0x20] sm:$0xff]
        %v2276 = vld [vmem:[#allocation8 + $0x28] sm:$0xff]
        %v2277 = vld [vmem:[#allocation8 + $0x30] sm:$0xff]
        %v2278 = vld [vmem:[#allocation8 + $0x38] sm:$0xff]
        %v2279 = vld [vmem:[#allocation8 + $0x40] sm:$0xff]
        %v2280 = vld [vmem:[#allocation8 + $0x48] sm:$0xff]
        %v2281 = vld [vmem:[#allocation8 + $0x50] sm:$0xff]
        %v2282 = vld [vmem:[#allocation8 + $0x58] sm:$0xff]
        %v2283 = vld [vmem:[#allocation8 + $0x60] sm:$0xff]
        %v2284 = vld [vmem:[#allocation8 + $0x68] sm:$0xff]
        %v2285 = vld [vmem:[#allocation8 + $0x70] sm:$0xff]
        %v2286 = vld [vmem:[#allocation8 + $0x78] sm:$0xff]
        %v2287 = vld [vmem:[#allocation8 + $0x80] sm:$0xff]
        %v2288 = vld [vmem:[#allocation8 + $0x88] sm:$0xff]
        %v2289 = vld [vmem:[#allocation8 + $0x90] sm:$0xff]
        %v2290 = vld [vmem:[#allocation8 + $0x98] sm:$0xff]
        %v2291 = vld [vmem:[#allocation8 + $0xa0] sm:$0xff]
        %v2292 = vld [vmem:[#allocation8 + $0xa8] sm:$0xff]
        %v2293 = vld [vmem:[#allocation8 + $0xb0] sm:$0xff]
        %v2294 = vld [vmem:[#allocation8 + $0xb8] sm:$0xff]
        %v2295 = vld [vmem:[#allocation8 + $0xc0] sm:$0xff]
        %v2296 = vld [vmem:[#allocation8 + $0xc8] sm:$0xff]
        %v2297 = vld [vmem:[#allocation8 + $0xd0] sm:$0xff]
        %v2298 = vld [vmem:[#allocation8 + $0xd8] sm:$0xff]
        %v2299 = vld [vmem:[#allocation8 + $0xe0] sm:$0xff]
        %v2300 = vld [vmem:[#allocation8 + $0xe8] sm:$0xff]
        %v2301 = vld [vmem:[#allocation8 + $0xf0] sm:$0xff]
        %v2302 = vld [vmem:[#allocation8 + $0xf8] sm:$0xff]
        %v2335 = vunpack.c.l.b16 %v2271
        %v2336 = vunpack.c.h.b16 %v2271
        %v2337 = vunpack.c.l.b16 %v2272
        %v2338 = vunpack.c.h.b16 %v2272
        %v2339 = vunpack.c.l.b16 %v2273
        %v2340 = vunpack.c.h.b16 %v2273
        %v2341 = vunpack.c.l.b16 %v2274
        %v2342 = vunpack.c.h.b16 %v2274
        %v2343 = vunpack.c.l.b16 %v2275
        %v2344 = vunpack.c.h.b16 %v2275
        %v2345 = vunpack.c.l.b16 %v2276
        %v2346 = vunpack.c.h.b16 %v2276
        %v2347 = vunpack.c.l.b16 %v2277
        %v2348 = vunpack.c.h.b16 %v2277
        %v2349 = vunpack.c.l.b16 %v2278
        %v2350 = vunpack.c.h.b16 %v2278
        %v2351 = vunpack.c.l.b16 %v2279
        %v2352 = vunpack.c.h.b16 %v2279
        %v2353 = vunpack.c.l.b16 %v2280
        %v2354 = vunpack.c.h.b16 %v2280
        %v2355 = vunpack.c.l.b16 %v2281
        %v2356 = vunpack.c.h.b16 %v2281
        %v2357 = vunpack.c.l.b16 %v2282
        %v2358 = vunpack.c.h.b16 %v2282
        %v2359 = vunpack.c.l.b16 %v2283
        %v2360 = vunpack.c.h.b16 %v2283
        %v2361 = vunpack.c.l.b16 %v2284
        %v2362 = vunpack.c.h.b16 %v2284
        %v2363 = vunpack.c.l.b16 %v2285
        %v2364 = vunpack.c.h.b16 %v2285
        %v2365 = vunpack.c.l.b16 %v2286
        %v2366 = vunpack.c.h.b16 %v2286
        %v2367 = vunpack.c.l.b16 %v2287
        %v2368 = vunpack.c.h.b16 %v2287
        %v2369 = vunpack.c.l.b16 %v2288
        %v2370 = vunpack.c.h.b16 %v2288
        %v2371 = vunpack.c.l.b16 %v2289
        %v2372 = vunpack.c.h.b16 %v2289
        %v2373 = vunpack.c.l.b16 %v2290
        %v2374 = vunpack.c.h.b16 %v2290
        %v2375 = vunpack.c.l.b16 %v2291
        %v2376 = vunpack.c.h.b16 %v2291
        %v2377 = vunpack.c.l.b16 %v2292
        %v2378 = vunpack.c.h.b16 %v2292
        %v2379 = vunpack.c.l.b16 %v2293
        %v2380 = vunpack.c.h.b16 %v2293
        %v2381 = vunpack.c.l.b16 %v2294
        %v2382 = vunpack.c.h.b16 %v2294
        %v2383 = vunpack.c.l.b16 %v2295
        %v2384 = vunpack.c.h.b16 %v2295
        %v2385 = vunpack.c.l.b16 %v2296
        %v2386 = vunpack.c.h.b16 %v2296
        %v2387 = vunpack.c.l.b16 %v2297
        %v2388 = vunpack.c.h.b16 %v2297
        %v2389 = vunpack.c.l.b16 %v2298
        %v2390 = vunpack.c.h.b16 %v2298
        %v2391 = vunpack.c.l.b16 %v2299
        %v2392 = vunpack.c.h.b16 %v2299
        %v2393 = vunpack.c.l.b16 %v2300
        %v2394 = vunpack.c.h.b16 %v2300
        %v2395 = vunpack.c.l.b16 %v2301
        %v2396 = vunpack.c.h.b16 %v2301
        %v2397 = vunpack.c.l.b16 %v2302
        %v2398 = vunpack.c.h.b16 %v2302
        %v2399 = vpack.c.b16 %v2339, %v2335
        %v2400 = vpack.c.b16 %v2340, %v2336
        %v2401 = vpack.c.b16 %v2341, %v2337
        %v2402 = vpack.c.b16 %v2342, %v2338
        %v2403 = vpack.c.b16 %v2347, %v2343
        %v2404 = vpack.c.b16 %v2348, %v2344
        %v2405 = vpack.c.b16 %v2349, %v2345
        %v2406 = vpack.c.b16 %v2350, %v2346
        %v2407 = vpack.c.b16 %v2355, %v2351
        %v2408 = vpack.c.b16 %v2356, %v2352
        %v2409 = vpack.c.b16 %v2357, %v2353
        %v2410 = vpack.c.b16 %v2358, %v2354
        %v2411 = vpack.c.b16 %v2363, %v2359
        %v2412 = vpack.c.b16 %v2364, %v2360
        %v2413 = vpack.c.b16 %v2365, %v2361
        %v2414 = vpack.c.b16 %v2366, %v2362
        %v2415 = vpack.c.b16 %v2371, %v2367
        %v2416 = vpack.c.b16 %v2372, %v2368
        %v2417 = vpack.c.b16 %v2373, %v2369
        %v2418 = vpack.c.b16 %v2374, %v2370
        %v2419 = vpack.c.b16 %v2379, %v2375
        %v2420 = vpack.c.b16 %v2380, %v2376
        %v2421 = vpack.c.b16 %v2381, %v2377
        %v2422 = vpack.c.b16 %v2382, %v2378
        %v2423 = vpack.c.b16 %v2387, %v2383
        %v2424 = vpack.c.b16 %v2388, %v2384
        %v2425 = vpack.c.b16 %v2389, %v2385
        %v2426 = vpack.c.b16 %v2390, %v2386
        %v2427 = vpack.c.b16 %v2395, %v2391
        %v2428 = vpack.c.b16 %v2396, %v2392
        %v2429 = vpack.c.b16 %v2397, %v2393
        %v2430 = vpack.c.b16 %v2398, %v2394
        %2463 = vmatpush.bf16.msra.mxu0 %v2427
        %2464 = vmatpush.bf16.msra.mxu0 %v2423
        %2465 = vmatpush.bf16.msra.mxu0 %v2419
        %2466 = vmatpush.bf16.msra.mxu0 %v2415
        %2467 = vmatpush.bf16.msra.mxu0 %v2411
        %2468 = vmatpush.bf16.msra.mxu0 %v2407
        %2469 = vmatpush.bf16.msra.mxu0 %v2403
        %2470 = vmatpush.bf16.msra.mxu0 %v2399
        %2471 = vmatmul.bf16.gmra.mxu0 %v2257
        %v2472 = vpop.f32.mrf.mxu0
        %v2473 = vadd.f32 0.0, %v2472
        %v2474 = vpop.f32.mrf.mxu0
        %2475 = vdwg.mxu0
        %2476 = vmatpush.bf16.msra.mxu0 %v2428
        %2477 = vmatpush.bf16.msra.mxu0 %v2424
        %2478 = vmatpush.bf16.msra.mxu0 %v2420
        %2479 = vmatpush.bf16.msra.mxu0 %v2416
        %2480 = vmatpush.bf16.msra.mxu0 %v2412
        %2481 = vmatpush.bf16.msra.mxu0 %v2408
        %2482 = vmatpush.bf16.msra.mxu0 %v2404
        %2483 = vmatpush.bf16.msra.mxu0 %v2400
        %2484 = vmatmul.bf16.gmra.mxu0 %v2257
        %v2485 = vpop.f32.mrf.mxu0
        %v2486 = vadd.f32 0.0, %v2485
        %v2487 = vpop.f32.mrf.mxu0
        %2488 = vdwg.mxu0
        %2489 = vmatpush.bf16.msra.mxu0 %v2429
        %2490 = vmatpush.bf16.msra.mxu0 %v2425
        %2491 = vmatpush.bf16.msra.mxu0 %v2421
        %2492 = vmatpush.bf16.msra.mxu0 %v2417
        %2493 = vmatpush.bf16.msra.mxu0 %v2413
        %2494 = vmatpush.bf16.msra.mxu0 %v2409
        %2495 = vmatpush.bf16.msra.mxu0 %v2405
        %2496 = vmatpush.bf16.msra.mxu0 %v2401
        %2497 = vmatmul.bf16.gmra.mxu0 %v2257
        %v2498 = vpop.f32.mrf.mxu0
        %v2499 = vadd.f32 0.0, %v2498
        %v2500 = vpop.f32.mrf.mxu0
        %2501 = vdwg.mxu0
        %2502 = vmatpush.bf16.msra.mxu0 %v2430
        %2503 = vmatpush.bf16.msra.mxu0 %v2426
        %2504 = vmatpush.bf16.msra.mxu0 %v2422
        %2505 = vmatpush.bf16.msra.mxu0 %v2418
        %2506 = vmatpush.bf16.msra.mxu0 %v2414
        %2507 = vmatpush.bf16.msra.mxu0 %v2410
        %2508 = vmatpush.bf16.msra.mxu0 %v2406
        %2509 = vmatpush.bf16.msra.mxu0 %v2402
        %2510 = vmatmul.bf16.gmra.mxu0 %v2257
        %v2511 = vpop.f32.mrf.mxu0
        %v2512 = vadd.f32 0.0, %v2511
        %v2513 = vpop.f32.mrf.mxu0
        %2514 = vdwg.mxu0
        %v2515 = vadd.f32 %v2267, %v2473
        %v2516 = vadd.f32 %v2268, %v2486
        %v2517 = vadd.f32 %v2269, %v2499
        %v2518 = vadd.f32 %v2270, %v2512
        %v2519 = vxor.u32 %v2515, 2147483648
        %v2520 = vxor.u32 %v2516, 2147483648
        %v2521 = vxor.u32 %v2517, 2147483648
        %v2522 = vmul.f32 %v2519, 1.442695
        %v2523 = vpow.pop %v2522
        %v2524 = vmul.f32 %v2520, 1.442695
        %v2525 = vpow.pop %v2524
        %v2526 = vmul.f32 %v2521, 1.442695
        %v2527 = vpow.pop %v2526
        %v2528 = vadd.f32 %v2523, 1.0
        %v2529 = vadd.f32 %v2525, 1.0
        %v2530 = vadd.f32 %v2527, 1.0
        %v2531 = vrcp.pop %v2528
        %v2532 = vmul.f32 %v2528, %v2531
        %v2533 = vsub.f32 1.0, %v2532
        %v2534 = vmul.f32 %v2531, %v2533
        %v2535 = vadd.f32 %v2531, %v2534
        %vm2536 = vweird.f32 %v2528
        %vm2537 = vweird.f32 %v2531
        %vm2538 = vmor %vm2536, %vm2537
        %v2539 = vsel %vm2538, %v2531, %v2535
        %v2540 = vand.u32 2147483647, %v2528
        %vm2541 = vcmp.eq.f32.partialorder %v2540, 8.507059e+37
        %v2542 = vand.u32 %v2528, 2147483648
        %v2543 = vor.u32 1.1754944e-38, %v2542
        %v2544 = vsel %vm2541, %v2543, %v2539
        %v2545 = vmul.f32 1.0, %v2544
        %v2546 = vrcp.pop %v2529
        %v2547 = vmul.f32 %v2529, %v2546
        %v2548 = vsub.f32 1.0, %v2547
        %v2549 = vmul.f32 %v2546, %v2548
        %v2550 = vadd.f32 %v2546, %v2549
        %vm2551 = vweird.f32 %v2529
        %vm2552 = vweird.f32 %v2546
        %vm2553 = vmor %vm2551, %vm2552
        %v2554 = vsel %vm2553, %v2546, %v2550
        %v2555 = vand.u32 2147483647, %v2529
        %vm2556 = vcmp.eq.f32.partialorder %v2555, 8.507059e+37
        %v2557 = vand.u32 %v2529, 2147483648
        %v2558 = vor.u32 1.1754944e-38, %v2557
        %v2559 = vsel %vm2556, %v2558, %v2554
        %v2560 = vmul.f32 1.0, %v2559
        %v2561 = vrcp.pop %v2530
        %v2562 = vmul.f32 %v2530, %v2561
        %v2563 = vsub.f32 1.0, %v2562
        %v2564 = vmul.f32 %v2561, %v2563
        %v2565 = vadd.f32 %v2561, %v2564
        %vm2566 = vweird.f32 %v2530
        %vm2567 = vweird.f32 %v2561
        %vm2568 = vmor %vm2566, %vm2567
        %v2569 = vsel %vm2568, %v2561, %v2565
        %v2570 = vand.u32 2147483647, %v2530
        %vm2571 = vcmp.eq.f32.partialorder %v2570, 8.507059e+37
        %v2572 = vand.u32 %v2530, 2147483648
        %v2573 = vor.u32 1.1754944e-38, %v2572
        %v2574 = vsel %vm2571, %v2573, %v2569
        %v2575 = vmul.f32 1.0, %v2574
        %v2576 = vtanh.pop %v2518
        %v2577 = vmul.f32 %v2560, %v2254
        %v2578 = vmul.f32 %v2545, %v2576
        %v2579 = vadd.f32 %v2577, %v2578
        %v2580 = vtanh.pop %v2579
        %v2581 = vmul.f32 %v2575, %v2580
        %v2582 = vpack.c.bf16 %v2581, %v2581
        %s2583 = scalar_lea.vmem %s264, 20 [#allocation11]
        %2584 = vst [vmem:[%s2583] sm:$0xf] %v2582
        %s2585 = scalar_lea.vmem [#allocation2], 96
        %v2586 = vld [vmem:[%s2585] sm:$0xff]
        %v2587 = vld [vmem:[%s2585 + $0x8] sm:$0xff]
        %v2588 = vunpack.c.l.bf16 %v2586
        %v2589 = vunpack.c.h.bf16 %v2586
        %v2590 = vunpack.c.l.bf16 %v2587
        %v2591 = vunpack.c.h.bf16 %v2587
        %v2592 = vadd.f32 %v2588, %v635
        %v2593 = vadd.f32 %v2589, %v636
        %v2594 = vadd.f32 %v2590, %v637
        %v2595 = vadd.f32 %v2591, %v638
        %v2596 = vld [vmem:[#allocation8] sm:$0xff]
        %v2597 = vld [vmem:[#allocation8 + $0x8] sm:$0xff]
        %v2598 = vld [vmem:[#allocation8 + $0x10] sm:$0xff]
        %v2599 = vld [vmem:[#allocation8 + $0x18] sm:$0xff]
        %v2600 = vld [vmem:[#allocation8 + $0x20] sm:$0xff]
        %v2601 = vld [vmem:[#allocation8 + $0x28] sm:$0xff]
        %v2602 = vld [vmem:[#allocation8 + $0x30] sm:$0xff]
        %v2603 = vld [vmem:[#allocation8 + $0x38] sm:$0xff]
        %v2604 = vld [vmem:[#allocation8 + $0x40] sm:$0xff]
        %v2605 = vld [vmem:[#allocation8 + $0x48] sm:$0xff]
        %v2606 = vld [vmem:[#allocation8 + $0x50] sm:$0xff]
        %v2607 = vld [vmem:[#allocation8 + $0x58] sm:$0xff]
        %v2608 = vld [vmem:[#allocation8 + $0x60] sm:$0xff]
        %v2609 = vld [vmem:[#allocation8 + $0x68] sm:$0xff]
        %v2610 = vld [vmem:[#allocation8 + $0x70] sm:$0xff]
        %v2611 = vld [vmem:[#allocation8 + $0x78] sm:$0xff]
        %v2612 = vld [vmem:[#allocation8 + $0x80] sm:$0xff]
        %v2613 = vld [vmem:[#allocation8 + $0x88] sm:$0xff]
        %v2614 = vld [vmem:[#allocation8 + $0x90] sm:$0xff]
        %v2615 = vld [vmem:[#allocation8 + $0x98] sm:$0xff]
        %v2616 = vld [vmem:[#allocation8 + $0xa0] sm:$0xff]
        %v2617 = vld [vmem:[#allocation8 + $0xa8] sm:$0xff]
        %v2618 = vld [vmem:[#allocation8 + $0xb0] sm:$0xff]
        %v2619 = vld [vmem:[#allocation8 + $0xb8] sm:$0xff]
        %v2620 = vld [vmem:[#allocation8 + $0xc0] sm:$0xff]
        %v2621 = vld [vmem:[#allocation8 + $0xc8] sm:$0xff]
        %v2622 = vld [vmem:[#allocation8 + $0xd0] sm:$0xff]
        %v2623 = vld [vmem:[#allocation8 + $0xd8] sm:$0xff]
        %v2624 = vld [vmem:[#allocation8 + $0xe0] sm:$0xff]
        %v2625 = vld [vmem:[#allocation8 + $0xe8] sm:$0xff]
        %v2626 = vld [vmem:[#allocation8 + $0xf0] sm:$0xff]
        %v2627 = vld [vmem:[#allocation8 + $0xf8] sm:$0xff]
        %v2660 = vunpack.c.l.b16 %v2596
        %v2661 = vunpack.c.h.b16 %v2596
        %v2662 = vunpack.c.l.b16 %v2597
        %v2663 = vunpack.c.h.b16 %v2597
        %v2664 = vunpack.c.l.b16 %v2598
        %v2665 = vunpack.c.h.b16 %v2598
        %v2666 = vunpack.c.l.b16 %v2599
        %v2667 = vunpack.c.h.b16 %v2599
        %v2668 = vunpack.c.l.b16 %v2600
        %v2669 = vunpack.c.h.b16 %v2600
        %v2670 = vunpack.c.l.b16 %v2601
        %v2671 = vunpack.c.h.b16 %v2601
        %v2672 = vunpack.c.l.b16 %v2602
        %v2673 = vunpack.c.h.b16 %v2602
        %v2674 = vunpack.c.l.b16 %v2603
        %v2675 = vunpack.c.h.b16 %v2603
        %v2676 = vunpack.c.l.b16 %v2604
        %v2677 = vunpack.c.h.b16 %v2604
        %v2678 = vunpack.c.l.b16 %v2605
        %v2679 = vunpack.c.h.b16 %v2605
        %v2680 = vunpack.c.l.b16 %v2606
        %v2681 = vunpack.c.h.b16 %v2606
        %v2682 = vunpack.c.l.b16 %v2607
        %v2683 = vunpack.c.h.b16 %v2607
        %v2684 = vunpack.c.l.b16 %v2608
        %v2685 = vunpack.c.h.b16 %v2608
        %v2686 = vunpack.c.l.b16 %v2609
        %v2687 = vunpack.c.h.b16 %v2609
        %v2688 = vunpack.c.l.b16 %v2610
        %v2689 = vunpack.c.h.b16 %v2610
        %v2690 = vunpack.c.l.b16 %v2611
        %v2691 = vunpack.c.h.b16 %v2611
        %v2692 = vunpack.c.l.b16 %v2612
        %v2693 = vunpack.c.h.b16 %v2612
        %v2694 = vunpack.c.l.b16 %v2613
        %v2695 = vunpack.c.h.b16 %v2613
        %v2696 = vunpack.c.l.b16 %v2614
        %v2697 = vunpack.c.h.b16 %v2614
        %v2698 = vunpack.c.l.b16 %v2615
        %v2699 = vunpack.c.h.b16 %v2615
        %v2700 = vunpack.c.l.b16 %v2616
        %v2701 = vunpack.c.h.b16 %v2616
        %v2702 = vunpack.c.l.b16 %v2617
        %v2703 = vunpack.c.h.b16 %v2617
        %v2704 = vunpack.c.l.b16 %v2618
        %v2705 = vunpack.c.h.b16 %v2618
        %v2706 = vunpack.c.l.b16 %v2619
        %v2707 = vunpack.c.h.b16 %v2619
        %v2708 = vunpack.c.l.b16 %v2620
        %v2709 = vunpack.c.h.b16 %v2620
        %v2710 = vunpack.c.l.b16 %v2621
        %v2711 = vunpack.c.h.b16 %v2621
        %v2712 = vunpack.c.l.b16 %v2622
        %v2713 = vunpack.c.h.b16 %v2622
        %v2714 = vunpack.c.l.b16 %v2623
        %v2715 = vunpack.c.h.b16 %v2623
        %v2716 = vunpack.c.l.b16 %v2624
        %v2717 = vunpack.c.h.b16 %v2624
        %v2718 = vunpack.c.l.b16 %v2625
        %v2719 = vunpack.c.h.b16 %v2625
        %v2720 = vunpack.c.l.b16 %v2626
        %v2721 = vunpack.c.h.b16 %v2626
        %v2722 = vunpack.c.l.b16 %v2627
        %v2723 = vunpack.c.h.b16 %v2627
        %v2724 = vpack.c.b16 %v2664, %v2660
        %v2725 = vpack.c.b16 %v2665, %v2661
        %v2726 = vpack.c.b16 %v2666, %v2662
        %v2727 = vpack.c.b16 %v2667, %v2663
        %v2728 = vpack.c.b16 %v2672, %v2668
        %v2729 = vpack.c.b16 %v2673, %v2669
        %v2730 = vpack.c.b16 %v2674, %v2670
        %v2731 = vpack.c.b16 %v2675, %v2671
        %v2732 = vpack.c.b16 %v2680, %v2676
        %v2733 = vpack.c.b16 %v2681, %v2677
        %v2734 = vpack.c.b16 %v2682, %v2678
        %v2735 = vpack.c.b16 %v2683, %v2679
        %v2736 = vpack.c.b16 %v2688, %v2684
        %v2737 = vpack.c.b16 %v2689, %v2685
        %v2738 = vpack.c.b16 %v2690, %v2686
        %v2739 = vpack.c.b16 %v2691, %v2687
        %v2740 = vpack.c.b16 %v2696, %v2692
        %v2741 = vpack.c.b16 %v2697, %v2693
        %v2742 = vpack.c.b16 %v2698, %v2694
        %v2743 = vpack.c.b16 %v2699, %v2695
        %v2744 = vpack.c.b16 %v2704, %v2700
        %v2745 = vpack.c.b16 %v2705, %v2701
        %v2746 = vpack.c.b16 %v2706, %v2702
        %v2747 = vpack.c.b16 %v2707, %v2703
        %v2748 = vpack.c.b16 %v2712, %v2708
        %v2749 = vpack.c.b16 %v2713, %v2709
        %v2750 = vpack.c.b16 %v2714, %v2710
        %v2751 = vpack.c.b16 %v2715, %v2711
        %v2752 = vpack.c.b16 %v2720, %v2716
        %v2753 = vpack.c.b16 %v2721, %v2717
        %v2754 = vpack.c.b16 %v2722, %v2718
        %v2755 = vpack.c.b16 %v2723, %v2719
        %2788 = vmatpush.bf16.msra.mxu0 %v2752
        %2789 = vmatpush.bf16.msra.mxu0 %v2748
        %2790 = vmatpush.bf16.msra.mxu0 %v2744
        %2791 = vmatpush.bf16.msra.mxu0 %v2740
        %2792 = vmatpush.bf16.msra.mxu0 %v2736
        %2793 = vmatpush.bf16.msra.mxu0 %v2732
        %2794 = vmatpush.bf16.msra.mxu0 %v2728
        %2795 = vmatpush.bf16.msra.mxu0 %v2724
        %2796 = vmatmul.bf16.gmra.mxu0 %v2582
        %v2797 = vpop.f32.mrf.mxu0
        %v2798 = vadd.f32 0.0, %v2797
        %v2799 = vpop.f32.mrf.mxu0
        %2800 = vdwg.mxu0
        %2801 = vmatpush.bf16.msra.mxu0 %v2753
        %2802 = vmatpush.bf16.msra.mxu0 %v2749
        %2803 = vmatpush.bf16.msra.mxu0 %v2745
        %2804 = vmatpush.bf16.msra.mxu0 %v2741
        %2805 = vmatpush.bf16.msra.mxu0 %v2737
        %2806 = vmatpush.bf16.msra.mxu0 %v2733
        %2807 = vmatpush.bf16.msra.mxu0 %v2729
        %2808 = vmatpush.bf16.msra.mxu0 %v2725
        %2809 = vmatmul.bf16.gmra.mxu0 %v2582
        %v2810 = vpop.f32.mrf.mxu0
        %v2811 = vadd.f32 0.0, %v2810
        %v2812 = vpop.f32.mrf.mxu0
        %2813 = vdwg.mxu0
        %2814 = vmatpush.bf16.msra.mxu0 %v2754
        %2815 = vmatpush.bf16.msra.mxu0 %v2750
        %2816 = vmatpush.bf16.msra.mxu0 %v2746
        %2817 = vmatpush.bf16.msra.mxu0 %v2742
        %2818 = vmatpush.bf16.msra.mxu0 %v2738
        %2819 = vmatpush.bf16.msra.mxu0 %v2734
        %2820 = vmatpush.bf16.msra.mxu0 %v2730
        %2821 = vmatpush.bf16.msra.mxu0 %v2726
        %2822 = vmatmul.bf16.gmra.mxu0 %v2582
        %v2823 = vpop.f32.mrf.mxu0
        %v2824 = vadd.f32 0.0, %v2823
        %v2825 = vpop.f32.mrf.mxu0
        %2826 = vdwg.mxu0
        %2827 = vmatpush.bf16.msra.mxu0 %v2755
        %2828 = vmatpush.bf16.msra.mxu0 %v2751
        %2829 = vmatpush.bf16.msra.mxu0 %v2747
        %2830 = vmatpush.bf16.msra.mxu0 %v2743
        %2831 = vmatpush.bf16.msra.mxu0 %v2739
        %2832 = vmatpush.bf16.msra.mxu0 %v2735
        %2833 = vmatpush.bf16.msra.mxu0 %v2731
        %2834 = vmatpush.bf16.msra.mxu0 %v2727
        %2835 = vmatmul.bf16.gmra.mxu0 %v2582
        %v2836 = vpop.f32.mrf.mxu0
        %v2837 = vadd.f32 0.0, %v2836
        %v2838 = vpop.f32.mrf.mxu0
        %2839 = vdwg.mxu0
        %v2840 = vadd.f32 %v2592, %v2798
        %v2841 = vadd.f32 %v2593, %v2811
        %v2842 = vadd.f32 %v2594, %v2824
        %v2843 = vadd.f32 %v2595, %v2837
        %v2844 = vxor.u32 %v2840, 2147483648
        %v2845 = vxor.u32 %v2841, 2147483648
        %v2846 = vxor.u32 %v2842, 2147483648
        %v2847 = vmul.f32 %v2844, 1.442695
        %v2848 = vpow.pop %v2847
        %v2849 = vmul.f32 %v2845, 1.442695
        %v2850 = vpow.pop %v2849
        %v2851 = vmul.f32 %v2846, 1.442695
        %v2852 = vpow.pop %v2851
        %v2853 = vadd.f32 %v2848, 1.0
        %v2854 = vadd.f32 %v2850, 1.0
        %v2855 = vadd.f32 %v2852, 1.0
        %v2856 = vrcp.pop %v2853
        %v2857 = vmul.f32 %v2853, %v2856
        %v2858 = vsub.f32 1.0, %v2857
        %v2859 = vmul.f32 %v2856, %v2858
        %v2860 = vadd.f32 %v2856, %v2859
        %vm2861 = vweird.f32 %v2853
        %vm2862 = vweird.f32 %v2856
        %vm2863 = vmor %vm2861, %vm2862
        %v2864 = vsel %vm2863, %v2856, %v2860
        %v2865 = vand.u32 2147483647, %v2853
        %vm2866 = vcmp.eq.f32.partialorder %v2865, 8.507059e+37
        %v2867 = vand.u32 %v2853, 2147483648
        %v2868 = vor.u32 1.1754944e-38, %v2867
        %v2869 = vsel %vm2866, %v2868, %v2864
        %v2870 = vmul.f32 1.0, %v2869
        %v2871 = vrcp.pop %v2854
        %v2872 = vmul.f32 %v2854, %v2871
        %v2873 = vsub.f32 1.0, %v2872
        %v2874 = vmul.f32 %v2871, %v2873
        %v2875 = vadd.f32 %v2871, %v2874
        %vm2876 = vweird.f32 %v2854
        %vm2877 = vweird.f32 %v2871
        %vm2878 = vmor %vm2876, %vm2877
        %v2879 = vsel %vm2878, %v2871, %v2875
        %v2880 = vand.u32 2147483647, %v2854
        %vm2881 = vcmp.eq.f32.partialorder %v2880, 8.507059e+37
        %v2882 = vand.u32 %v2854, 2147483648
        %v2883 = vor.u32 1.1754944e-38, %v2882
        %v2884 = vsel %vm2881, %v2883, %v2879
        %v2885 = vmul.f32 1.0, %v2884
        %v2886 = vrcp.pop %v2855
        %v2887 = vmul.f32 %v2855, %v2886
        %v2888 = vsub.f32 1.0, %v2887
        %v2889 = vmul.f32 %v2886, %v2888
        %v2890 = vadd.f32 %v2886, %v2889
        %vm2891 = vweird.f32 %v2855
        %vm2892 = vweird.f32 %v2886
        %vm2893 = vmor %vm2891, %vm2892
        %v2894 = vsel %vm2893, %v2886, %v2890
        %v2895 = vand.u32 2147483647, %v2855
        %vm2896 = vcmp.eq.f32.partialorder %v2895, 8.507059e+37
        %v2897 = vand.u32 %v2855, 2147483648
        %v2898 = vor.u32 1.1754944e-38, %v2897
        %v2899 = vsel %vm2896, %v2898, %v2894
        %v2900 = vmul.f32 1.0, %v2899
        %v2901 = vtanh.pop %v2843
        %v2902 = vmul.f32 %v2885, %v2579
        %v2903 = vmul.f32 %v2870, %v2901
        %v2904 = vadd.f32 %v2902, %v2903
        %v2905 = vtanh.pop %v2904
        %v2906 = vmul.f32 %v2900, %v2905
        %v2907 = vpack.c.bf16 %v2906, %v2906
        %s2908 = scalar_lea.vmem %s264, 24 [#allocation11]
        %2909 = vst [vmem:[%s2908] sm:$0xf] %v2907
        %s2910 = sand.u32 %s120, 1
        %s2911 = scalar_lea.sflag [#allocation5], %s2910
        %s2912 = sand.u32 %s120, 1
        %s2913 = smul.addr %s2912, 28
        %s2914 = scalar_lea.vmem [#allocation11], %s2913
        // Predicated region
        $region53: #{tpu_custom_call.1} parent=35 // pred_check
          %p2915 = pneg %p130
        $region54: #{tpu_custom_call.1} parent=35 // pred_check_branch
          %2917 = sbr.rel (%p2915) target = $region56
        $region55: #{tpu_custom_call.1} parent=35 // pred_region
          %2919 = vsyncadd %s2911, 0
          %s2920 = smul.addr %s23, 4
          %s2921 = scalar_lea.hbm %s4, %s2920
          %s2922 = sshll.u32 %s2914, 4
          %s2923 = int_to_ptr.vmem [resolvable:$true] %s2922
          %s2924 = sshll.u32 %s2921, 4
          %s2925 = int_to_ptr.hbm [resolvable:$true] %s2924
          %2930 = dma.vmem_to_hbm [thread:$0]  %s2923, 448, %s2925, %s2911, 64, 128, 4
        $region56: #{tpu_custom_call.1} parent=35 // pred_fallthru
          _
      $region36: #{tpu_custom_call.1} parent=5 // pred_fallthru
        _
      %p2931 = scmp.le.s32.totalorder 2, %s18
      // Predicated region
      $region57: #{tpu_custom_call.1} parent=5 // pred_check
        %p2932 = pneg %p2931
      $region58: #{tpu_custom_call.1} parent=5 // pred_check_branch
        %2934 = sbr.rel (%p2932) target = $region60
      $region59: #{tpu_custom_call.1} parent=5 // pred_region
        %s2935 = ssub.s32 %s18, 2
        // Predicated region
        $region61: #{tpu_custom_call.1} parent=59 // pred_check
          %p2936 = pneg %p136
        $region62: #{tpu_custom_call.1} parent=59 // pred_check_branch
          %2938 = sbr.rel (%p2936) target = $region64
        $region63: #{tpu_custom_call.1} parent=59 // pred_region
          %s2939 = sand.u32 %s121, 1
          %s2940 = scalar_lea.sflag [#allocation5], %s2939
          %s2941 = sand.u32 %s121, 1
          %s2942 = smul.addr %s2941, 28
          %s2943 = scalar_lea.vmem [#allocation11], %s2942
          %2945 = dma.done %s2940, 448
        $region64: #{tpu_custom_call.1} parent=59 // pred_fallthru
          _
      $region60: #{tpu_custom_call.1} parent=5 // pred_fallthru
        _
    $region6: #{tpu_custom_call.1} parent=1 // loop_footer
      %s22 = sadd.s32 1, %s18
    $region7: #{tpu_custom_call.1} parent=1 // loop_footer_branch
      %17 = sbr.rel target = $region3
    $region8: #{tpu_custom_call.1} parent=1 // loop_exit
      _
    %2946 = vsyncpa [#allocation4], 1
    %s2947 = scalar_lea.sflag [#allocation4], 1
    %2948 = vsyncpa %s2947, 1
    %2949 = vsyncpa [#allocation7], 1
    %2950 = vsyncpa [#allocation10], 1
    %2951 = vsyncpa [#allocation5], 1
    %s2952 = scalar_lea.sflag [#allocation5], 1
    %2953 = vsyncpa %s2952, 1

</llo_original>
